<compile_context>
chip_gen: v5e
topology: v5e:2x2
jax: 0.10.0
libtpu: 0.0.40
codegen_flags: <defaults>
</compile_context>

<pallas_src>
import jax
import jax.numpy as jnp
from jax.experimental import pallas as pl
from jax.experimental.pallas import tpu as pltpu


# ----------------------------------------------------------------------------
# Pallas kernel: fused forward for TILE_B batch elements per grid step.
# ----------------------------------------------------------------------------
def cnn_kernel(x_ref, doc_ref, kprev_ref, knext_ref, pool_ref,
               w1_ref, b1_ref, w2_ref, b2_ref, w3_ref, b3_ref, w4_ref, b4_ref,
               wd_ref, bd_ref, wfx_ref, wfd_ref, bf_ref,
               out_ref):
    M = x_ref.shape[0]              # tile_b * L rows (batch*length, flattened)
    cdt = w2_ref.dtype              # MXU operand dtype (f32 or bf16)

    keep_prev = kprev_ref[...]      # (M,1) f32: 0.0 at each sequence's first row
    keep_next = knext_ref[...]      # (M,1) f32: 0.0 at each sequence's last row

    def mxu(a, w):
        # cast operands for the MXU only; accumulate in f32.
        return jnp.dot(a.astype(cdt), w.astype(cdt),
                       preferred_element_type=jnp.float32)

    def conv(a, w_ref, b_ref):
        # One fused-tap matmul per layer: z = [P_prev | P_cur | P_next],
        # y[l] = P_prev[l-1] + P_cur[l] + P_next[l+1] with zero padding at each
        # element's sequence boundary (keep masks stop roll bleed-through across
        # the flattened batch boundaries and the tile wrap-around).
        co = b_ref.shape[1]
        z = mxu(a, w_ref[...])                                   # [M, 3*co]
        y = (pltpu.roll(z[:, :co], shift=1, axis=0) * keep_prev
             + z[:, co:2 * co]
             + pltpu.roll(z[:, 2 * co:], shift=M - 1, axis=0) * keep_next
             + b_ref[...])
        return jnp.maximum(y, 0.0)                               # ReLU (f32)

    h = conv(x_ref[...], w1_ref, b1_ref)     # conv1 (node|edge channels merged)
    h = conv(h, w2_ref, b2_ref)              # conv2
    h = conv(h, w3_ref, b3_ref)              # conv3
    h = conv(h, w4_ref, b4_ref)              # conv4                 [M, H] f32

    # AdaptiveAvgPool1d(1) as a matmul with a block-diagonal 1/L matrix (MXU).
    pooled = mxu(pool_ref[...], h)                               # [tile_b, H]

    # doc branch: relu(doc @ Wd + bd)
    doc_emb = jnp.maximum(mxu(doc_ref[...], wd_ref[...]) + bd_ref[...], 0.0)

    # fc over concat([pooled, doc_emb]) rewritten as a split matmul.
    out = mxu(pooled, wfx_ref[...]) + mxu(doc_emb, wfd_ref[...]) + bf_ref[...]
    out_ref[...] = out.astype(out_ref.dtype)
    # NOTE: reference defines nn.Sigmoid() but never applies it -> raw fc output.


# ----------------------------------------------------------------------------
# Tiling heuristics (generation-aware, but safe fallbacks everywhere).
# ----------------------------------------------------------------------------
def _tensorcores_per_chip():
    try:
        kind = jax.devices()[0].device_kind.lower()
    except Exception:
        return 1
    return 2 if ("v7" in kind or "tpu7" in kind) else 1


def _select_tiling(B, L, n_cores, target_rows=2048):
    """Pick (tile_b, nblk): tile_b batch elements per grid step, nblk steps."""
    def r8(v):
        return -(-v // 8) * 8
    # per-step row budget (M = tile_b * L), tile_b kept a multiple of 8 sublanes
    cap = max(8, (target_rows // max(L, 1)) // 8 * 8)
    if n_cores >= 2:
        # 2 TensorCores (v7x): keep an even number of >=2 parallel steps.
        tile_b = max(8, min(cap, r8(-(-B // 2))))
        nblk = max(2, -(-B // tile_b))
        if nblk % 2:
            nblk += 1
    else:
        # single TC (v5e/v6e): one step for small B, otherwise big tiles.
        tile_b = max(8, min(cap, r8(B)))
        nblk = max(1, -(-B // tile_b))
    return tile_b, nblk


# ----------------------------------------------------------------------------
# Wrapper: batch tiling, padding/flattening, constant inputs, BlockSpecs.
# ----------------------------------------------------------------------------
def cnn_forward(kp, node_features, edge_features, doc_features, *,
                tile_b=None, target_rows=2048):
    B, Nn, Dn = node_features.shape
    _, Ne, De = edge_features.shape
    Dd = doc_features.shape[1]
    L = max(Nn, Ne)
    Dc = Dn + De
    H = kp["b1"].shape[1]
    O = kp["bf"].shape[1]
    cdt = kp["w1"].dtype

    if tile_b is None:
        tile_b, nblk = _select_tiling(B, L, _tensorcores_per_chip(), target_rows)
    else:
        tile_b = max(1, min(tile_b, B))
        nblk = -(-B // tile_b)
        if nblk > 1 and tile_b % 8 != 0:       # keep the (8,128) sublane rule
            tile_b = -(-tile_b // 8) * 8
            nblk = -(-B // tile_b)
    Bp = nblk * tile_b
    M = tile_b * L

    # Pad sequence length and batch, concat real node|edge channels (no zero
    # channel padding), flatten (batch, length) -> rows.  Streamed inputs are
    # cast to the MXU operand dtype wrapper-side (halves DMA for bf16 path).
    nf = jnp.pad(node_features, ((0, Bp - B), (0, L - Nn), (0, 0)))
    ef = jnp.pad(edge_features, ((0, Bp - B), (0, L - Ne), (0, 0)))
    x = jnp.concatenate([nf, ef], axis=2).reshape(Bp * L, Dc).astype(cdt)
    doc = jnp.pad(doc_features, ((0, Bp - B), (0, 0))).astype(cdt)

    # Per-tile constants (fixed block index -> fetched once, not per step):
    # boundary keep-masks and the block-diagonal mean-pool matrix.
    pos = jnp.arange(L, dtype=jnp.int32)
    keep_prev = jnp.tile((pos != 0).astype(jnp.float32), tile_b).reshape(M, 1)
    keep_next = jnp.tile((pos != L - 1).astype(jnp.float32), tile_b).reshape(M, 1)
    pool_mat = (jnp.repeat(jnp.eye(tile_b, dtype=jnp.float32), L, axis=1)
                / float(L)).astype(cdt)                        # [tile_b, M]

    def cspec(a):
        nd = a.ndim
        return pl.BlockSpec(a.shape, lambda b: (0,) * nd)

    grid_spec = pltpu.PrefetchScalarGridSpec(
        num_scalar_prefetch=0,
        grid=(nblk,),
        in_specs=[
            pl.BlockSpec((M, Dc), lambda b: (b, 0)),           # node|edge rows
            pl.BlockSpec((tile_b, Dd), lambda b: (b, 0)),      # doc
            cspec(keep_prev), cspec(keep_next), cspec(pool_mat),
            cspec(kp["w1"]), cspec(kp["b1"]),
            cspec(kp["w2"]), cspec(kp["b2"]),
            cspec(kp["w3"]), cspec(kp["b3"]),
            cspec(kp["w4"]), cspec(kp["b4"]),
            cspec(kp["wd"]), cspec(kp["bd"]),
            cspec(kp["wfx"]), cspec(kp["wfd"]), cspec(kp["bf"]),
        ],
        out_specs=pl.BlockSpec((tile_b, O), lambda b: (b, 0)),
    )

    # Advisory cost estimate (latency-bound custom call; helps XLA scheduling).
    itemsize = jnp.dtype(cdt).itemsize
    flops_step = (2 * M * Dc * 3 * H + 3 * (2 * M * H * 3 * H)
                  + 2 * tile_b * M * H + 2 * tile_b * Dd * H
                  + 2 * tile_b * 2 * H * O)
    w_bytes = sum(int(v.size) * jnp.dtype(v.dtype).itemsize for v in kp.values())
    bytes_accessed = ((int(x.size) + int(doc.size) + int(pool_mat.size)) * itemsize
                      + (int(keep_prev.size) + int(keep_next.size)) * 4
                      + w_bytes + Bp * O * 4)
    cost = pl.CostEstimate(flops=int(nblk * flops_step), transcendentals=0,
                           bytes_accessed=int(bytes_accessed))

    out = pl.pallas_call(
        cnn_kernel,
        out_shape=jax.ShapeDtypeStruct((Bp, O), jnp.float32),
        grid_spec=grid_spec,
        compiler_params=pltpu.CompilerParams(
            dimension_semantics=("parallel",)),                # megacore on v7x
        cost_estimate=cost,
    )(x, doc, keep_prev, keep_next, pool_mat,
      kp["w1"], kp["b1"], kp["w2"], kp["b2"], kp["w3"], kp["b3"],
      kp["w4"], kp["b4"], kp["wd"], kp["bd"], kp["wfx"], kp["wfd"], kp["bf"])
    return out[:B]


# ----------------------------------------------------------------------------
# Parameter init (PyTorch layouts) and conversion to kernel layouts.
# ----------------------------------------------------------------------------
def init_params(key, input_dim, hidden_dim, output_dim, doc_dim):
    ks = jax.random.split(key, 12)
    cin = input_dim * 2

    def nrm(k, shape):
        return (0.1 * jax.random.normal(k, shape)).astype(jnp.float32)

    conv = [
        (nrm(ks[0], (hidden_dim, cin, 3)),        nrm(ks[4], (hidden_dim,))),
        (nrm(ks[1], (hidden_dim, hidden_dim, 3)), nrm(ks[5], (hidden_dim,))),
        (nrm(ks[2], (hidden_dim, hidden_dim, 3)), nrm(ks[6], (hidden_dim,))),
        (nrm(ks[3], (hidden_dim, hidden_dim, 3)), nrm(ks[7], (hidden_dim,))),
    ]
    return dict(conv=conv,
                doc_w=nrm(ks[8], (hidden_dim, doc_dim)),   # [out, in]
                doc_b=nrm(ks[9], (hidden_dim,)),
                fc_w=nrm(ks[10], (output_dim, hidden_dim * 2)),
                fc_b=nrm(ks[11], (output_dim,)))


def convert_params(tp, node_dim, edge_dim, compute_dtype=jnp.float32):
    """Torch layouts -> fused-tap / merged / split kernel layouts.

    Conv weight [O, I, 3] -> [I, 3*O] with output-column block k = w[:, :, k].T,
    so one matmul yields [P_prev | P_cur | P_next].  conv1's node and edge
    channel groups are merged (the reference's zero-padded channels dropped).
    Biases stay f32 (elementwise path); matmul operands use compute_dtype.
    """
    (w1, b1), (w2, b2), (w3, b3), (w4, b4) = tp["conv"]
    H = w1.shape[0]
    Dm = w1.shape[1] // 2            # == max feature dim of the reference padding

    def fuse(w):                     # [O, I, 3] -> [I, 3*O]
        return jnp.transpose(w, (1, 2, 0)).reshape(w.shape[1], -1).astype(compute_dtype)

    def bias(b):
        return b[None, :].astype(jnp.float32)

    w1_merged = jnp.concatenate([w1[:, :node_dim, :],
                                 w1[:, Dm:Dm + edge_dim, :]], axis=1)

    return dict(
        w1=fuse(w1_merged), b1=bias(b1),
        w2=fuse(w2), b2=bias(b2),
        w3=fuse(w3), b3=bias(b3),
        w4=fuse(w4), b4=bias(b4),
        wd=tp["doc_w"].T.astype(compute_dtype), bd=bias(tp["doc_b"]),
        wfx=tp["fc_w"][:, :H].T.astype(compute_dtype),
        wfd=tp["fc_w"][:, H:].T.astype(compute_dtype),
        bf=bias(tp["fc_b"]),
    )


# ----------------------------------------------------------------------------
# Pure-JAX reference (mirrors the PyTorch forward exactly) for validation.
# ----------------------------------------------------------------------------
def reference_forward(tp, node_features, edge_features, doc_features):
    B, Nn, Dn = node_features.shape
    _, Ne, De = edge_features.shape
    L, Dm = max(Nn, Ne), max(Dn, De)
    nf = jnp.pad(node_features, ((0, 0), (0, L - Nn), (0, Dm - Dn)))
    ef = jnp.pad(edge_features, ((0, 0), (0, L - Ne), (0, Dm - De)))
    x = jnp.concatenate([nf, ef], axis=2).transpose(0, 2, 1)   # [B, C, L]

    def conv1d(x_ncl, w, b):  # w: [O, I, 3], padding=1
        xp = jnp.pad(x_ncl, ((0, 0), (0, 0), (1, 1)))
        Ls = x_ncl.shape[2]
        y = sum(jnp.einsum('bil,oi->bol', xp[:, :, k:k + Ls], w[:, :, k])
                for k in range(3))
        return y + b[None, :, None]

    h = x
    for (w, b) in tp["conv"]:
        h = jnp.maximum(conv1d(h, w, b), 0.0)
    pooled = jnp.mean(h, axis=2)                                     # [B, H]
    doc_emb = jnp.maximum(doc_features @ tp["doc_w"].T + tp["doc_b"], 0.0)
    combined = jnp.concatenate([pooled, doc_emb], axis=1)
    return combined @ tp["fc_w"].T + tp["fc_b"]


if __name__ == "__main__":
    # small, self-consistent shapes; B=16, L=16.  Auto tiling: one grid step on
    # single-TC chips (M = 256), two parallel steps on 2-TC chips.
    B, input_dim, hidden_dim, output_dim, doc_dim = 16, 4, 32, 4, 8
    num_nodes, num_edges = 10, 16          # max_len L = 16
    node_dim = edge_dim = input_dim        # max_dim = input_dim -> C_in = 2*input_dim

    key = jax.random.PRNGKey(0)
    k_node, k_edge, k_doc, k_params = jax.random.split(key, 4)
    node_features = jax.random.normal(k_node, (B, num_nodes, node_dim), jnp.float32)
    edge_features = jax.random.normal(k_edge, (B, num_edges, edge_dim), jnp.float32)
    doc_features = jax.random.normal(k_doc, (B, doc_dim), jnp.float32)

    tp = init_params(k_params, input_dim, hidden_dim, output_dim, doc_dim)
    ref = reference_forward(tp, node_features, edge_features, doc_features)

    # f32 MXU-operand path.  (Both kernel and reference use XLA/Mosaic default
    # matmul precision, so agreement is to bf16-pass accuracy, not bit-exact.)
    kp_f32 = convert_params(tp, node_dim, edge_dim, jnp.float32)
    out_f32 = jax.block_until_ready(
        cnn_forward(kp_f32, node_features, edge_features, doc_features))
    assert out_f32.shape == (B, output_dim)
    assert jnp.allclose(out_f32, ref, rtol=2e-2, atol=2e-2), (out_f32, ref)

    # bf16 MXU-operand path (f32 accumulate, f32 elementwise): loose check.
    kp_bf16 = convert_params(tp, node_dim, edge_dim, jnp.bfloat16)
    out_bf16 = jax.block_until_ready(
        cnn_forward(kp_bf16, node_features, edge_features, doc_features))
    assert out_bf16.shape == (B, output_dim)
    assert jnp.allclose(out_bf16, ref, rtol=5e-2, atol=5e-2), (out_bf16, ref)

    print("KERNEL_OK")
</pallas_src>

<mosaic_0001>
module attributes {stable_mosaic.version = 11 : i64} {
  func.func @cnn_kernel(%arg0: i32, %arg1: memref<256x8xf32, #tpu.memory_space<vmem>>, %arg2: memref<16x8xf32, #tpu.memory_space<vmem>>, %arg3: memref<256x1xf32, #tpu.memory_space<vmem>>, %arg4: memref<256x1xf32, #tpu.memory_space<vmem>>, %arg5: memref<16x256xf32, #tpu.memory_space<vmem>>, %arg6: memref<8x96xf32, #tpu.memory_space<vmem>>, %arg7: memref<1x32xf32, #tpu.memory_space<vmem>>, %arg8: memref<32x96xf32, #tpu.memory_space<vmem>>, %arg9: memref<1x32xf32, #tpu.memory_space<vmem>>, %arg10: memref<32x96xf32, #tpu.memory_space<vmem>>, %arg11: memref<1x32xf32, #tpu.memory_space<vmem>>, %arg12: memref<32x96xf32, #tpu.memory_space<vmem>>, %arg13: memref<1x32xf32, #tpu.memory_space<vmem>>, %arg14: memref<8x32xf32, #tpu.memory_space<vmem>>, %arg15: memref<1x32xf32, #tpu.memory_space<vmem>>, %arg16: memref<32x4xf32, #tpu.memory_space<vmem>>, %arg17: memref<32x4xf32, #tpu.memory_space<vmem>>, %arg18: memref<1x4xf32, #tpu.memory_space<vmem>>, %arg19: memref<16x4xf32, #tpu.memory_space<vmem>>) attributes {dimension_semantics = [#tpu.dimension_semantics<parallel>], iteration_bounds = array<i64: 1>, scalar_prefetch = 0 : i64, scratch_operands = 0 : i64, tpu.core_type = #tpu.core_type<tc>, window_params = [{transform_indices = @transform_0, window_bounds = array<i64: 256, 8>}, {transform_indices = @transform_1, window_bounds = array<i64: 16, 8>}, {pipeline_mode = #tpu.pipeline_mode<synchronous>, transform_indices = @transform_2, window_bounds = array<i64: 256, 1>}, {pipeline_mode = #tpu.pipeline_mode<synchronous>, transform_indices = @transform_3, window_bounds = array<i64: 256, 1>}, {pipeline_mode = #tpu.pipeline_mode<synchronous>, transform_indices = @transform_4, window_bounds = array<i64: 16, 256>}, {pipeline_mode = #tpu.pipeline_mode<synchronous>, transform_indices = @transform_5, window_bounds = array<i64: 8, 96>}, {pipeline_mode = #tpu.pipeline_mode<synchronous>, transform_indices = @transform_6, window_bounds = array<i64: 1, 32>}, {pipeline_mode = #tpu.pipeline_mode<synchronous>, transform_indices = @transform_7, window_bounds = array<i64: 32, 96>}, {pipeline_mode = #tpu.pipeline_mode<synchronous>, transform_indices = @transform_8, window_bounds = array<i64: 1, 32>}, {pipeline_mode = #tpu.pipeline_mode<synchronous>, transform_indices = @transform_9, window_bounds = array<i64: 32, 96>}, {pipeline_mode = #tpu.pipeline_mode<synchronous>, transform_indices = @transform_10, window_bounds = array<i64: 1, 32>}, {pipeline_mode = #tpu.pipeline_mode<synchronous>, transform_indices = @transform_11, window_bounds = array<i64: 32, 96>}, {pipeline_mode = #tpu.pipeline_mode<synchronous>, transform_indices = @transform_12, window_bounds = array<i64: 1, 32>}, {pipeline_mode = #tpu.pipeline_mode<synchronous>, transform_indices = @transform_13, window_bounds = array<i64: 8, 32>}, {pipeline_mode = #tpu.pipeline_mode<synchronous>, transform_indices = @transform_14, window_bounds = array<i64: 1, 32>}, {pipeline_mode = #tpu.pipeline_mode<synchronous>, transform_indices = @transform_15, window_bounds = array<i64: 32, 4>}, {pipeline_mode = #tpu.pipeline_mode<synchronous>, transform_indices = @transform_16, window_bounds = array<i64: 32, 4>}, {pipeline_mode = #tpu.pipeline_mode<synchronous>, transform_indices = @transform_17, window_bounds = array<i64: 1, 4>}, {transform_indices = @transform_18, window_bounds = array<i64: 16, 4>}]} {
    %c0 = arith.constant 0 : index
    %c0_0 = arith.constant 0 : index
    %0 = vector.load %arg3[%c0, %c0_0] : memref<256x1xf32, #tpu.memory_space<vmem>>, vector<256x1xf32>
    %c0_1 = arith.constant 0 : index
    %c0_2 = arith.constant 0 : index
    %1 = vector.load %arg4[%c0_1, %c0_2] : memref<256x1xf32, #tpu.memory_space<vmem>>, vector<256x1xf32>
    %c0_3 = arith.constant 0 : index
    %c0_4 = arith.constant 0 : index
    %2 = vector.load %arg1[%c0_3, %c0_4] : memref<256x8xf32, #tpu.memory_space<vmem>>, vector<256x8xf32>
    %c0_5 = arith.constant 0 : index
    %c0_6 = arith.constant 0 : index
    %3 = vector.load %arg6[%c0_5, %c0_6] : memref<8x96xf32, #tpu.memory_space<vmem>>, vector<8x96xf32>
    %cst = arith.constant dense<0.000000e+00> : vector<256x96xf32>
    %4 = tpu.matmul %2, %3, %cst {dimension_numbers = #tpu.dot_dimension_numbers<[1], [0], [0], [1], [0, 0, 1, 1], [], []>} : vector<256x8xf32>, vector<8x96xf32>, vector<256x96xf32> -> vector<256x96xf32>
    %5 = vector.extract_strided_slice %4 {offsets = [0, 0], sizes = [256, 32], strides = [1, 1]} : vector<256x96xf32> to vector<256x32xf32>
    %c1_i32 = arith.constant 1 : i32
    %6 = tpu.dynamic_rotate %5 by %c1_i32 dim 0 : vector<256x32xf32>, i32 -> vector<256x32xf32>
    %7 = vector.broadcast %0 : vector<256x1xf32> to vector<256x32xf32>
    %8 = arith.mulf %6, %7 : vector<256x32xf32>
    %9 = vector.extract_strided_slice %4 {offsets = [0, 32], sizes = [256, 32], strides = [1, 1]} : vector<256x96xf32> to vector<256x32xf32>
    %10 = arith.addf %8, %9 : vector<256x32xf32>
    %11 = vector.extract_strided_slice %4 {offsets = [0, 64], sizes = [256, 32], strides = [1, 1]} : vector<256x96xf32> to vector<256x32xf32>
    %c255_i32 = arith.constant 255 : i32
    %12 = tpu.dynamic_rotate %11 by %c255_i32 dim 0 : vector<256x32xf32>, i32 -> vector<256x32xf32>
    %13 = vector.broadcast %1 : vector<256x1xf32> to vector<256x32xf32>
    %14 = arith.mulf %12, %13 : vector<256x32xf32>
    %15 = arith.addf %10, %14 : vector<256x32xf32>
    %c0_7 = arith.constant 0 : index
    %c0_8 = arith.constant 0 : index
    %16 = vector.load %arg7[%c0_7, %c0_8] : memref<1x32xf32, #tpu.memory_space<vmem>>, vector<1x32xf32>
    %17 = vector.broadcast %16 : vector<1x32xf32> to vector<256x32xf32>
    %18 = arith.addf %15, %17 : vector<256x32xf32>
    %cst_9 = arith.constant 0.000000e+00 : f32
    %19 = vector.broadcast %cst_9 : f32 to vector<256x32xf32>
    %20 = arith.maximumf %18, %19 : vector<256x32xf32>
    %c0_10 = arith.constant 0 : index
    %c0_11 = arith.constant 0 : index
    %21 = vector.load %arg8[%c0_10, %c0_11] : memref<32x96xf32, #tpu.memory_space<vmem>>, vector<32x96xf32>
    %cst_12 = arith.constant dense<0.000000e+00> : vector<256x96xf32>
    %22 = tpu.matmul %20, %21, %cst_12 {dimension_numbers = #tpu.dot_dimension_numbers<[1], [0], [0], [1], [0, 0, 1, 1], [], []>} : vector<256x32xf32>, vector<32x96xf32>, vector<256x96xf32> -> vector<256x96xf32>
    %23 = vector.extract_strided_slice %22 {offsets = [0, 0], sizes = [256, 32], strides = [1, 1]} : vector<256x96xf32> to vector<256x32xf32>
    %c1_i32_13 = arith.constant 1 : i32
    %24 = tpu.dynamic_rotate %23 by %c1_i32_13 dim 0 : vector<256x32xf32>, i32 -> vector<256x32xf32>
    %25 = vector.broadcast %0 : vector<256x1xf32> to vector<256x32xf32>
    %26 = arith.mulf %24, %25 : vector<256x32xf32>
    %27 = vector.extract_strided_slice %22 {offsets = [0, 32], sizes = [256, 32], strides = [1, 1]} : vector<256x96xf32> to vector<256x32xf32>
    %28 = arith.addf %26, %27 : vector<256x32xf32>
    %29 = vector.extract_strided_slice %22 {offsets = [0, 64], sizes = [256, 32], strides = [1, 1]} : vector<256x96xf32> to vector<256x32xf32>
    %c255_i32_14 = arith.constant 255 : i32
    %30 = tpu.dynamic_rotate %29 by %c255_i32_14 dim 0 : vector<256x32xf32>, i32 -> vector<256x32xf32>
    %31 = vector.broadcast %1 : vector<256x1xf32> to vector<256x32xf32>
    %32 = arith.mulf %30, %31 : vector<256x32xf32>
    %33 = arith.addf %28, %32 : vector<256x32xf32>
    %c0_15 = arith.constant 0 : index
    %c0_16 = arith.constant 0 : index
    %34 = vector.load %arg9[%c0_15, %c0_16] : memref<1x32xf32, #tpu.memory_space<vmem>>, vector<1x32xf32>
    %35 = vector.broadcast %34 : vector<1x32xf32> to vector<256x32xf32>
    %36 = arith.addf %33, %35 : vector<256x32xf32>
    %cst_17 = arith.constant 0.000000e+00 : f32
    %37 = vector.broadcast %cst_17 : f32 to vector<256x32xf32>
    %38 = arith.maximumf %36, %37 : vector<256x32xf32>
    %c0_18 = arith.constant 0 : index
    %c0_19 = arith.constant 0 : index
    %39 = vector.load %arg10[%c0_18, %c0_19] : memref<32x96xf32, #tpu.memory_space<vmem>>, vector<32x96xf32>
    %cst_20 = arith.constant dense<0.000000e+00> : vector<256x96xf32>
    %40 = tpu.matmul %38, %39, %cst_20 {dimension_numbers = #tpu.dot_dimension_numbers<[1], [0], [0], [1], [0, 0, 1, 1], [], []>} : vector<256x32xf32>, vector<32x96xf32>, vector<256x96xf32> -> vector<256x96xf32>
    %41 = vector.extract_strided_slice %40 {offsets = [0, 0], sizes = [256, 32], strides = [1, 1]} : vector<256x96xf32> to vector<256x32xf32>
    %c1_i32_21 = arith.constant 1 : i32
    %42 = tpu.dynamic_rotate %41 by %c1_i32_21 dim 0 : vector<256x32xf32>, i32 -> vector<256x32xf32>
    %43 = vector.broadcast %0 : vector<256x1xf32> to vector<256x32xf32>
    %44 = arith.mulf %42, %43 : vector<256x32xf32>
    %45 = vector.extract_strided_slice %40 {offsets = [0, 32], sizes = [256, 32], strides = [1, 1]} : vector<256x96xf32> to vector<256x32xf32>
    %46 = arith.addf %44, %45 : vector<256x32xf32>
    %47 = vector.extract_strided_slice %40 {offsets = [0, 64], sizes = [256, 32], strides = [1, 1]} : vector<256x96xf32> to vector<256x32xf32>
    %c255_i32_22 = arith.constant 255 : i32
    %48 = tpu.dynamic_rotate %47 by %c255_i32_22 dim 0 : vector<256x32xf32>, i32 -> vector<256x32xf32>
    %49 = vector.broadcast %1 : vector<256x1xf32> to vector<256x32xf32>
    %50 = arith.mulf %48, %49 : vector<256x32xf32>
    %51 = arith.addf %46, %50 : vector<256x32xf32>
    %c0_23 = arith.constant 0 : index
    %c0_24 = arith.constant 0 : index
    %52 = vector.load %arg11[%c0_23, %c0_24] : memref<1x32xf32, #tpu.memory_space<vmem>>, vector<1x32xf32>
    %53 = vector.broadcast %52 : vector<1x32xf32> to vector<256x32xf32>
    %54 = arith.addf %51, %53 : vector<256x32xf32>
    %cst_25 = arith.constant 0.000000e+00 : f32
    %55 = vector.broadcast %cst_25 : f32 to vector<256x32xf32>
    %56 = arith.maximumf %54, %55 : vector<256x32xf32>
    %c0_26 = arith.constant 0 : index
    %c0_27 = arith.constant 0 : index
    %57 = vector.load %arg12[%c0_26, %c0_27] : memref<32x96xf32, #tpu.memory_space<vmem>>, vector<32x96xf32>
    %cst_28 = arith.constant dense<0.000000e+00> : vector<256x96xf32>
    %58 = tpu.matmul %56, %57, %cst_28 {dimension_numbers = #tpu.dot_dimension_numbers<[1], [0], [0], [1], [0, 0, 1, 1], [], []>} : vector<256x32xf32>, vector<32x96xf32>, vector<256x96xf32> -> vector<256x96xf32>
    %59 = vector.extract_strided_slice %58 {offsets = [0, 0], sizes = [256, 32], strides = [1, 1]} : vector<256x96xf32> to vector<256x32xf32>
    %c1_i32_29 = arith.constant 1 : i32
    %60 = tpu.dynamic_rotate %59 by %c1_i32_29 dim 0 : vector<256x32xf32>, i32 -> vector<256x32xf32>
    %61 = vector.broadcast %0 : vector<256x1xf32> to vector<256x32xf32>
    %62 = arith.mulf %60, %61 : vector<256x32xf32>
    %63 = vector.extract_strided_slice %58 {offsets = [0, 32], sizes = [256, 32], strides = [1, 1]} : vector<256x96xf32> to vector<256x32xf32>
    %64 = arith.addf %62, %63 : vector<256x32xf32>
    %65 = vector.extract_strided_slice %58 {offsets = [0, 64], sizes = [256, 32], strides = [1, 1]} : vector<256x96xf32> to vector<256x32xf32>
    %c255_i32_30 = arith.constant 255 : i32
    %66 = tpu.dynamic_rotate %65 by %c255_i32_30 dim 0 : vector<256x32xf32>, i32 -> vector<256x32xf32>
    %67 = vector.broadcast %1 : vector<256x1xf32> to vector<256x32xf32>
    %68 = arith.mulf %66, %67 : vector<256x32xf32>
    %69 = arith.addf %64, %68 : vector<256x32xf32>
    %c0_31 = arith.constant 0 : index
    %c0_32 = arith.constant 0 : index
    %70 = vector.load %arg13[%c0_31, %c0_32] : memref<1x32xf32, #tpu.memory_space<vmem>>, vector<1x32xf32>
    %71 = vector.broadcast %70 : vector<1x32xf32> to vector<256x32xf32>
    %72 = arith.addf %69, %71 : vector<256x32xf32>
    %cst_33 = arith.constant 0.000000e+00 : f32
    %73 = vector.broadcast %cst_33 : f32 to vector<256x32xf32>
    %74 = arith.maximumf %72, %73 : vector<256x32xf32>
    %c0_34 = arith.constant 0 : index
    %c0_35 = arith.constant 0 : index
    %75 = vector.load %arg5[%c0_34, %c0_35] : memref<16x256xf32, #tpu.memory_space<vmem>>, vector<16x256xf32>
    %cst_36 = arith.constant dense<0.000000e+00> : vector<16x32xf32>
    %76 = tpu.matmul %75, %74, %cst_36 {dimension_numbers = #tpu.dot_dimension_numbers<[1], [0], [0], [1], [0, 0, 1, 1], [], []>} : vector<16x256xf32>, vector<256x32xf32>, vector<16x32xf32> -> vector<16x32xf32>
    %c0_37 = arith.constant 0 : index
    %c0_38 = arith.constant 0 : index
    %77 = vector.load %arg2[%c0_37, %c0_38] : memref<16x8xf32, #tpu.memory_space<vmem>>, vector<16x8xf32>
    %c0_39 = arith.constant 0 : index
    %c0_40 = arith.constant 0 : index
    %78 = vector.load %arg14[%c0_39, %c0_40] : memref<8x32xf32, #tpu.memory_space<vmem>>, vector<8x32xf32>
    %cst_41 = arith.constant dense<0.000000e+00> : vector<16x32xf32>
    %79 = tpu.matmul %77, %78, %cst_41 {dimension_numbers = #tpu.dot_dimension_numbers<[1], [0], [0], [1], [0, 0, 1, 1], [], []>} : vector<16x8xf32>, vector<8x32xf32>, vector<16x32xf32> -> vector<16x32xf32>
    %c0_42 = arith.constant 0 : index
    %c0_43 = arith.constant 0 : index
    %80 = vector.load %arg15[%c0_42, %c0_43] : memref<1x32xf32, #tpu.memory_space<vmem>>, vector<1x32xf32>
    %81 = vector.broadcast %80 : vector<1x32xf32> to vector<16x32xf32>
    %82 = arith.addf %79, %81 : vector<16x32xf32>
    %cst_44 = arith.constant 0.000000e+00 : f32
    %83 = vector.broadcast %cst_44 : f32 to vector<16x32xf32>
    %84 = arith.maximumf %82, %83 : vector<16x32xf32>
    %c0_45 = arith.constant 0 : index
    %c0_46 = arith.constant 0 : index
    %85 = vector.load %arg16[%c0_45, %c0_46] : memref<32x4xf32, #tpu.memory_space<vmem>>, vector<32x4xf32>
    %cst_47 = arith.constant dense<0.000000e+00> : vector<16x4xf32>
    %86 = tpu.matmul %76, %85, %cst_47 {dimension_numbers = #tpu.dot_dimension_numbers<[1], [0], [0], [1], [0, 0, 1, 1], [], []>} : vector<16x32xf32>, vector<32x4xf32>, vector<16x4xf32> -> vector<16x4xf32>
    %c0_48 = arith.constant 0 : index
    %c0_49 = arith.constant 0 : index
    %87 = vector.load %arg17[%c0_48, %c0_49] : memref<32x4xf32, #tpu.memory_space<vmem>>, vector<32x4xf32>
    %cst_50 = arith.constant dense<0.000000e+00> : vector<16x4xf32>
    %88 = tpu.matmul %84, %87, %cst_50 {dimension_numbers = #tpu.dot_dimension_numbers<[1], [0], [0], [1], [0, 0, 1, 1], [], []>} : vector<16x32xf32>, vector<32x4xf32>, vector<16x4xf32> -> vector<16x4xf32>
    %89 = arith.addf %86, %88 : vector<16x4xf32>
    %c0_51 = arith.constant 0 : index
    %c0_52 = arith.constant 0 : index
    %90 = vector.load %arg18[%c0_51, %c0_52] : memref<1x4xf32, #tpu.memory_space<vmem>>, vector<1x4xf32>
    %91 = vector.broadcast %90 : vector<1x4xf32> to vector<16x4xf32>
    %92 = arith.addf %89, %91 : vector<16x4xf32>
    %c0_53 = arith.constant 0 : index
    %c0_54 = arith.constant 0 : index
    %93 = vector.load %arg19[%c0_53, %c0_54] : memref<16x4xf32, #tpu.memory_space<vmem>>, vector<16x4xf32>
    tpu.vector_store %arg19[%c0_53, %c0_54], %92 {strides = array<i32>} : memref<16x4xf32, #tpu.memory_space<vmem>>, vector<16x4xf32>,
    return
  }
  func.func @transform_0(%arg0: i32) -> (i32, i32) {
    %c0_i32 = arith.constant 0 : i32
    %c0_i32_0 = arith.constant 0 : i32
    return %arg0, %c0_i32 : i32, i32
  }
  func.func @transform_1(%arg0: i32) -> (i32, i32) {
    %c0_i32 = arith.constant 0 : i32
    %c0_i32_0 = arith.constant 0 : i32
    return %arg0, %c0_i32 : i32, i32
  }
  func.func @transform_2(%arg0: i32) -> (i32, i32) {
    %c0_i32 = arith.constant 0 : i32
    %c0_i32_0 = arith.constant 0 : i32
    %c0_i32_1 = arith.constant 0 : i32
    return %c0_i32, %c0_i32_0 : i32, i32
  }
  func.func @transform_3(%arg0: i32) -> (i32, i32) {
    %c0_i32 = arith.constant 0 : i32
    %c0_i32_0 = arith.constant 0 : i32
    %c0_i32_1 = arith.constant 0 : i32
    return %c0_i32, %c0_i32_0 : i32, i32
  }
  func.func @transform_4(%arg0: i32) -> (i32, i32) {
    %c0_i32 = arith.constant 0 : i32
    %c0_i32_0 = arith.constant 0 : i32
    %c0_i32_1 = arith.constant 0 : i32
    return %c0_i32, %c0_i32_0 : i32, i32
  }
  func.func @transform_5(%arg0: i32) -> (i32, i32) {
    %c0_i32 = arith.constant 0 : i32
    %c0_i32_0 = arith.constant 0 : i32
    %c0_i32_1 = arith.constant 0 : i32
    return %c0_i32, %c0_i32_0 : i32, i32
  }
  func.func @transform_6(%arg0: i32) -> (i32, i32) {
    %c0_i32 = arith.constant 0 : i32
    %c0_i32_0 = arith.constant 0 : i32
    %c0_i32_1 = arith.constant 0 : i32
    return %c0_i32, %c0_i32_0 : i32, i32
  }
  func.func @transform_7(%arg0: i32) -> (i32, i32) {
    %c0_i32 = arith.constant 0 : i32
    %c0_i32_0 = arith.constant 0 : i32
    %c0_i32_1 = arith.constant 0 : i32
    return %c0_i32, %c0_i32_0 : i32, i32
  }
  func.func @transform_8(%arg0: i32) -> (i32, i32) {
    %c0_i32 = arith.constant 0 : i32
    %c0_i32_0 = arith.constant 0 : i32
    %c0_i32_1 = arith.constant 0 : i32
    return %c0_i32, %c0_i32_0 : i32, i32
  }
  func.func @transform_9(%arg0: i32) -> (i32, i32) {
    %c0_i32 = arith.constant 0 : i32
    %c0_i32_0 = arith.constant 0 : i32
    %c0_i32_1 = arith.constant 0 : i32
    return %c0_i32, %c0_i32_0 : i32, i32
  }
  func.func @transform_10(%arg0: i32) -> (i32, i32) {
    %c0_i32 = arith.constant 0 : i32
    %c0_i32_0 = arith.constant 0 : i32
    %c0_i32_1 = arith.constant 0 : i32
    return %c0_i32, %c0_i32_0 : i32, i32
  }
  func.func @transform_11(%arg0: i32) -> (i32, i32) {
    %c0_i32 = arith.constant 0 : i32
    %c0_i32_0 = arith.constant 0 : i32
    %c0_i32_1 = arith.constant 0 : i32
    return %c0_i32, %c0_i32_0 : i32, i32
  }
  func.func @transform_12(%arg0: i32) -> (i32, i32) {
    %c0_i32 = arith.constant 0 : i32
    %c0_i32_0 = arith.constant 0 : i32
    %c0_i32_1 = arith.constant 0 : i32
    return %c0_i32, %c0_i32_0 : i32, i32
  }
  func.func @transform_13(%arg0: i32) -> (i32, i32) {
    %c0_i32 = arith.constant 0 : i32
    %c0_i32_0 = arith.constant 0 : i32
    %c0_i32_1 = arith.constant 0 : i32
    return %c0_i32, %c0_i32_0 : i32, i32
  }
  func.func @transform_14(%arg0: i32) -> (i32, i32) {
    %c0_i32 = arith.constant 0 : i32
    %c0_i32_0 = arith.constant 0 : i32
    %c0_i32_1 = arith.constant 0 : i32
    return %c0_i32, %c0_i32_0 : i32, i32
  }
  func.func @transform_15(%arg0: i32) -> (i32, i32) {
    %c0_i32 = arith.constant 0 : i32
    %c0_i32_0 = arith.constant 0 : i32
    %c0_i32_1 = arith.constant 0 : i32
    return %c0_i32, %c0_i32_0 : i32, i32
  }
  func.func @transform_16(%arg0: i32) -> (i32, i32) {
    %c0_i32 = arith.constant 0 : i32
    %c0_i32_0 = arith.constant 0 : i32
    %c0_i32_1 = arith.constant 0 : i32
    return %c0_i32, %c0_i32_0 : i32, i32
  }
  func.func @transform_17(%arg0: i32) -> (i32, i32) {
    %c0_i32 = arith.constant 0 : i32
    %c0_i32_0 = arith.constant 0 : i32
    %c0_i32_1 = arith.constant 0 : i32
    return %c0_i32, %c0_i32_0 : i32, i32
  }
  func.func @transform_18(%arg0: i32) -> (i32, i32) {
    %c0_i32 = arith.constant 0 : i32
    %c0_i32_0 = arith.constant 0 : i32
    return %arg0, %c0_i32 : i32, i32
  }
}

</mosaic_0001>

<llo_original>
// kernel: tpu_custom_call.1
$region0: #{tpu_custom_call.1}
  #allocation0 [shape = 'u32[]', space=smem, size = 0x4, offset = 0x4, fixed_abs, tag = 'smem constant byte address 0x4 - core index']
  #allocation1 [shape = 'u32[72,128]{1,0:T(1,128)}', space=vmem, size = 0x9000, scoped, tag = 'internal scratch']
  %s0 = inlined_call_operand.vmem [shape: f32[256,8], index: 0, kind: input, shape index: {}]
  %s1 = inlined_call_operand.vmem [shape: f32[16,8], index: 1, kind: input, shape index: {}]
  %s2 = inlined_call_operand.vmem [shape: f32[256,1], index: 2, kind: input, shape index: {}]
  %s3 = inlined_call_operand.vmem [shape: f32[256,1], index: 3, kind: input, shape index: {}]
  %s4 = inlined_call_operand.vmem [shape: f32[16,256], index: 4, kind: input, shape index: {}]
  %s5 = inlined_call_operand.vmem [shape: f32[8,96], index: 5, kind: input, shape index: {}]
  %s6 = inlined_call_operand.vmem [shape: f32[1,32], index: 6, kind: input, shape index: {}]
  %s7 = inlined_call_operand.vmem [shape: f32[32,96], index: 7, kind: input, shape index: {}]
  %s8 = inlined_call_operand.vmem [shape: f32[1,32], index: 8, kind: input, shape index: {}]
  %s9 = inlined_call_operand.vmem [shape: f32[32,96], index: 9, kind: input, shape index: {}]
  %s10 = inlined_call_operand.vmem [shape: f32[1,32], index: 10, kind: input, shape index: {}]
  %s11 = inlined_call_operand.vmem [shape: f32[32,96], index: 11, kind: input, shape index: {}]
  %s12 = inlined_call_operand.vmem [shape: f32[1,32], index: 12, kind: input, shape index: {}]
  %s13 = inlined_call_operand.vmem [shape: f32[8,32], index: 13, kind: input, shape index: {}]
  %s14 = inlined_call_operand.vmem [shape: f32[1,32], index: 14, kind: input, shape index: {}]
  %s15 = inlined_call_operand.vmem [shape: f32[32,4], index: 15, kind: input, shape index: {}]
  %s16 = inlined_call_operand.vmem [shape: f32[32,4], index: 16, kind: input, shape index: {}]
  %s17 = inlined_call_operand.vmem [shape: f32[1,4], index: 17, kind: input, shape index: {}]
  %s18 = inlined_call_operand.vmem [shape: f32[16,4], index: 18, kind: output, shape index: {}]
  %s19 = sld [smem:[#allocation0]]
  $region82: #{tpu_custom_call.1} parent=0
    _
  %s21 = ssub.s32 1, %s19
  %s22 = scalar_select 0, %s21, %s19
  // Predicated region
  $region2: #{tpu_custom_call.1} parent=0 // pred_check
    _
  $region3: #{tpu_custom_call.1} parent=0 // pred_check_branch
    %24 = sbr.rel (0) target = $region5
  $region4: #{tpu_custom_call.1} parent=0 // pred_region
    _
  $region5: #{tpu_custom_call.1} parent=0 // pred_fallthru
    _
  // Predicated region
  $region6: #{tpu_custom_call.1} parent=0 // pred_check
    _
  $region7: #{tpu_custom_call.1} parent=0 // pred_check_branch
    %26 = sbr.rel (0) target = $region9
  $region8: #{tpu_custom_call.1} parent=0 // pred_region
    _
  $region9: #{tpu_custom_call.1} parent=0 // pred_fallthru
    _
  // Predicated region
  $region10: #{tpu_custom_call.1} parent=0 // pred_check
    _
  $region11: #{tpu_custom_call.1} parent=0 // pred_check_branch
    %28 = sbr.rel (0) target = $region13
  $region12: #{tpu_custom_call.1} parent=0 // pred_region
    _
  $region13: #{tpu_custom_call.1} parent=0 // pred_fallthru
    _
  // Predicated region
  $region14: #{tpu_custom_call.1} parent=0 // pred_check
    _
  $region15: #{tpu_custom_call.1} parent=0 // pred_check_branch
    %30 = sbr.rel (0) target = $region17
  $region16: #{tpu_custom_call.1} parent=0 // pred_region
    _
  $region17: #{tpu_custom_call.1} parent=0 // pred_fallthru
    _
  // Predicated region
  $region18: #{tpu_custom_call.1} parent=0 // pred_check
    _
  $region19: #{tpu_custom_call.1} parent=0 // pred_check_branch
    %32 = sbr.rel (0) target = $region21
  $region20: #{tpu_custom_call.1} parent=0 // pred_region
    _
  $region21: #{tpu_custom_call.1} parent=0 // pred_fallthru
    _
  // Predicated region
  $region22: #{tpu_custom_call.1} parent=0 // pred_check
    _
  $region23: #{tpu_custom_call.1} parent=0 // pred_check_branch
    %34 = sbr.rel (0) target = $region25
  $region24: #{tpu_custom_call.1} parent=0 // pred_region
    _
  $region25: #{tpu_custom_call.1} parent=0 // pred_fallthru
    _
  // Predicated region
  $region26: #{tpu_custom_call.1} parent=0 // pred_check
    _
  $region27: #{tpu_custom_call.1} parent=0 // pred_check_branch
    %36 = sbr.rel (0) target = $region29
  $region28: #{tpu_custom_call.1} parent=0 // pred_region
    _
  $region29: #{tpu_custom_call.1} parent=0 // pred_fallthru
    _
  // Predicated region
  $region30: #{tpu_custom_call.1} parent=0 // pred_check
    _
  $region31: #{tpu_custom_call.1} parent=0 // pred_check_branch
    %38 = sbr.rel (0) target = $region33
  $region32: #{tpu_custom_call.1} parent=0 // pred_region
    _
  $region33: #{tpu_custom_call.1} parent=0 // pred_fallthru
    _
  // Predicated region
  $region34: #{tpu_custom_call.1} parent=0 // pred_check
    _
  $region35: #{tpu_custom_call.1} parent=0 // pred_check_branch
    %40 = sbr.rel (0) target = $region37
  $region36: #{tpu_custom_call.1} parent=0 // pred_region
    _
  $region37: #{tpu_custom_call.1} parent=0 // pred_fallthru
    _
  // Predicated region
  $region38: #{tpu_custom_call.1} parent=0 // pred_check
    _
  $region39: #{tpu_custom_call.1} parent=0 // pred_check_branch
    %42 = sbr.rel (0) target = $region41
  $region40: #{tpu_custom_call.1} parent=0 // pred_region
    _
  $region41: #{tpu_custom_call.1} parent=0 // pred_fallthru
    _
  // Predicated region
  $region42: #{tpu_custom_call.1} parent=0 // pred_check
    _
  $region43: #{tpu_custom_call.1} parent=0 // pred_check_branch
    %44 = sbr.rel (0) target = $region45
  $region44: #{tpu_custom_call.1} parent=0 // pred_region
    _
  $region45: #{tpu_custom_call.1} parent=0 // pred_fallthru
    _
  // Predicated region
  $region46: #{tpu_custom_call.1} parent=0 // pred_check
    _
  $region47: #{tpu_custom_call.1} parent=0 // pred_check_branch
    %46 = sbr.rel (0) target = $region49
  $region48: #{tpu_custom_call.1} parent=0 // pred_region
    _
  $region49: #{tpu_custom_call.1} parent=0 // pred_fallthru
    _
  // Predicated region
  $region50: #{tpu_custom_call.1} parent=0 // pred_check
    _
  $region51: #{tpu_custom_call.1} parent=0 // pred_check_branch
    %48 = sbr.rel (0) target = $region53
  $region52: #{tpu_custom_call.1} parent=0 // pred_region
    _
  $region53: #{tpu_custom_call.1} parent=0 // pred_fallthru
    _
  // Predicated region
  $region54: #{tpu_custom_call.1} parent=0 // pred_check
    _
  $region55: #{tpu_custom_call.1} parent=0 // pred_check_branch
    %50 = sbr.rel (0) target = $region57
  $region56: #{tpu_custom_call.1} parent=0 // pred_region
    _
  $region57: #{tpu_custom_call.1} parent=0 // pred_fallthru
    _
  // Predicated region
  $region58: #{tpu_custom_call.1} parent=0 // pred_check
    _
  $region59: #{tpu_custom_call.1} parent=0 // pred_check_branch
    %52 = sbr.rel (0) target = $region61
  $region60: #{tpu_custom_call.1} parent=0 // pred_region
    _
  $region61: #{tpu_custom_call.1} parent=0 // pred_fallthru
    _
  // Predicated region
  $region62: #{tpu_custom_call.1} parent=0 // pred_check
    _
  $region63: #{tpu_custom_call.1} parent=0 // pred_check_branch
    %54 = sbr.rel (0) target = $region65
  $region64: #{tpu_custom_call.1} parent=0 // pred_region
    _
  $region65: #{tpu_custom_call.1} parent=0 // pred_fallthru
    _
  // Predicated region
  $region66: #{tpu_custom_call.1} parent=0 // pred_check
    _
  $region67: #{tpu_custom_call.1} parent=0 // pred_check_branch
    %56 = sbr.rel (0) target = $region69
  $region68: #{tpu_custom_call.1} parent=0 // pred_region
    _
  $region69: #{tpu_custom_call.1} parent=0 // pred_fallthru
    _
  // Predicated region
  $region70: #{tpu_custom_call.1} parent=0 // pred_check
    _
  $region71: #{tpu_custom_call.1} parent=0 // pred_check_branch
    %58 = sbr.rel (0) target = $region73
  $region72: #{tpu_custom_call.1} parent=0 // pred_region
    _
  $region73: #{tpu_custom_call.1} parent=0 // pred_fallthru
    _
  %v59 = vld [vmem:[%s2] sm:$0xff]
  %v60 = vld [vmem:[%s2 + $0x8] sm:$0xff]
  %v61 = vld [vmem:[%s2 + $0x10] sm:$0xff]
  %v62 = vld [vmem:[%s2 + $0x18] sm:$0xff]
  %v63 = vld [vmem:[%s2 + $0x20] sm:$0xff]
  %v64 = vld [vmem:[%s2 + $0x28] sm:$0xff]
  %v65 = vld [vmem:[%s2 + $0x30] sm:$0xff]
  %v66 = vld [vmem:[%s2 + $0x38] sm:$0xff]
  %v67 = vld [vmem:[%s2 + $0x40] sm:$0xff]
  %v68 = vld [vmem:[%s2 + $0x48] sm:$0xff]
  %v69 = vld [vmem:[%s2 + $0x50] sm:$0xff]
  %v70 = vld [vmem:[%s2 + $0x58] sm:$0xff]
  %v71 = vld [vmem:[%s2 + $0x60] sm:$0xff]
  %v72 = vld [vmem:[%s2 + $0x68] sm:$0xff]
  %v73 = vld [vmem:[%s2 + $0x70] sm:$0xff]
  %v74 = vld [vmem:[%s2 + $0x78] sm:$0xff]
  %v75 = vld [vmem:[%s2 + $0x80] sm:$0xff]
  %v76 = vld [vmem:[%s2 + $0x88] sm:$0xff]
  %v77 = vld [vmem:[%s2 + $0x90] sm:$0xff]
  %v78 = vld [vmem:[%s2 + $0x98] sm:$0xff]
  %v79 = vld [vmem:[%s2 + $0xa0] sm:$0xff]
  %v80 = vld [vmem:[%s2 + $0xa8] sm:$0xff]
  %v81 = vld [vmem:[%s2 + $0xb0] sm:$0xff]
  %v82 = vld [vmem:[%s2 + $0xb8] sm:$0xff]
  %v83 = vld [vmem:[%s2 + $0xc0] sm:$0xff]
  %v84 = vld [vmem:[%s2 + $0xc8] sm:$0xff]
  %v85 = vld [vmem:[%s2 + $0xd0] sm:$0xff]
  %v86 = vld [vmem:[%s2 + $0xd8] sm:$0xff]
  %v87 = vld [vmem:[%s2 + $0xe0] sm:$0xff]
  %v88 = vld [vmem:[%s2 + $0xe8] sm:$0xff]
  %v89 = vld [vmem:[%s2 + $0xf0] sm:$0xff]
  %v90 = vld [vmem:[%s2 + $0xf8] sm:$0xff]
  %v91 = vld [vmem:[%s3] sm:$0xff]
  %v92 = vld [vmem:[%s3 + $0x8] sm:$0xff]
  %v93 = vld [vmem:[%s3 + $0x10] sm:$0xff]
  %v94 = vld [vmem:[%s3 + $0x18] sm:$0xff]
  %v95 = vld [vmem:[%s3 + $0x20] sm:$0xff]
  %v96 = vld [vmem:[%s3 + $0x28] sm:$0xff]
  %v97 = vld [vmem:[%s3 + $0x30] sm:$0xff]
  %v98 = vld [vmem:[%s3 + $0x38] sm:$0xff]
  %v99 = vld [vmem:[%s3 + $0x40] sm:$0xff]
  %v100 = vld [vmem:[%s3 + $0x48] sm:$0xff]
  %v101 = vld [vmem:[%s3 + $0x50] sm:$0xff]
  %v102 = vld [vmem:[%s3 + $0x58] sm:$0xff]
  %v103 = vld [vmem:[%s3 + $0x60] sm:$0xff]
  %v104 = vld [vmem:[%s3 + $0x68] sm:$0xff]
  %v105 = vld [vmem:[%s3 + $0x70] sm:$0xff]
  %v106 = vld [vmem:[%s3 + $0x78] sm:$0xff]
  %v107 = vld [vmem:[%s3 + $0x80] sm:$0xff]
  %v108 = vld [vmem:[%s3 + $0x88] sm:$0xff]
  %v109 = vld [vmem:[%s3 + $0x90] sm:$0xff]
  %v110 = vld [vmem:[%s3 + $0x98] sm:$0xff]
  %v111 = vld [vmem:[%s3 + $0xa0] sm:$0xff]
  %v112 = vld [vmem:[%s3 + $0xa8] sm:$0xff]
  %v113 = vld [vmem:[%s3 + $0xb0] sm:$0xff]
  %v114 = vld [vmem:[%s3 + $0xb8] sm:$0xff]
  %v115 = vld [vmem:[%s3 + $0xc0] sm:$0xff]
  %v116 = vld [vmem:[%s3 + $0xc8] sm:$0xff]
  %v117 = vld [vmem:[%s3 + $0xd0] sm:$0xff]
  %v118 = vld [vmem:[%s3 + $0xd8] sm:$0xff]
  %v119 = vld [vmem:[%s3 + $0xe0] sm:$0xff]
  %v120 = vld [vmem:[%s3 + $0xe8] sm:$0xff]
  %v121 = vld [vmem:[%s3 + $0xf0] sm:$0xff]
  %v122 = vld [vmem:[%s3 + $0xf8] sm:$0xff]
  %v123 = vld [vmem:[%s0] sm:$0xff]
  %v124 = vld [vmem:[%s0 + $0x8] sm:$0xff]
  %v125 = vld [vmem:[%s0 + $0x10] sm:$0xff]
  %v126 = vld [vmem:[%s0 + $0x18] sm:$0xff]
  %v127 = vld [vmem:[%s0 + $0x20] sm:$0xff]
  %v128 = vld [vmem:[%s0 + $0x28] sm:$0xff]
  %v129 = vld [vmem:[%s0 + $0x30] sm:$0xff]
  %v130 = vld [vmem:[%s0 + $0x38] sm:$0xff]
  %v131 = vld [vmem:[%s0 + $0x40] sm:$0xff]
  %v132 = vld [vmem:[%s0 + $0x48] sm:$0xff]
  %v133 = vld [vmem:[%s0 + $0x50] sm:$0xff]
  %v134 = vld [vmem:[%s0 + $0x58] sm:$0xff]
  %v135 = vld [vmem:[%s0 + $0x60] sm:$0xff]
  %v136 = vld [vmem:[%s0 + $0x68] sm:$0xff]
  %v137 = vld [vmem:[%s0 + $0x70] sm:$0xff]
  %v138 = vld [vmem:[%s0 + $0x78] sm:$0xff]
  %v139 = vld [vmem:[%s0 + $0x80] sm:$0xff]
  %v140 = vld [vmem:[%s0 + $0x88] sm:$0xff]
  %v141 = vld [vmem:[%s0 + $0x90] sm:$0xff]
  %v142 = vld [vmem:[%s0 + $0x98] sm:$0xff]
  %v143 = vld [vmem:[%s0 + $0xa0] sm:$0xff]
  %v144 = vld [vmem:[%s0 + $0xa8] sm:$0xff]
  %v145 = vld [vmem:[%s0 + $0xb0] sm:$0xff]
  %v146 = vld [vmem:[%s0 + $0xb8] sm:$0xff]
  %v147 = vld [vmem:[%s0 + $0xc0] sm:$0xff]
  %v148 = vld [vmem:[%s0 + $0xc8] sm:$0xff]
  %v149 = vld [vmem:[%s0 + $0xd0] sm:$0xff]
  %v150 = vld [vmem:[%s0 + $0xd8] sm:$0xff]
  %v151 = vld [vmem:[%s0 + $0xe0] sm:$0xff]
  %v152 = vld [vmem:[%s0 + $0xe8] sm:$0xff]
  %v153 = vld [vmem:[%s0 + $0xf0] sm:$0xff]
  %v154 = vld [vmem:[%s0 + $0xf8] sm:$0xff]
  %v155 = vld [vmem:[%s5] sm:$0xff]
  %vm156 = vcmask 64512
  %v158 = vsel %vm156, %v123, 0
  %v161 = vsel %vm156, %v124, 0
  %v164 = vsel %vm156, %v125, 0
  %v167 = vsel %vm156, %v126, 0
  %v170 = vsel %vm156, %v127, 0
  %v173 = vsel %vm156, %v128, 0
  %v176 = vsel %vm156, %v129, 0
  %v179 = vsel %vm156, %v130, 0
  %v182 = vsel %vm156, %v131, 0
  %v185 = vsel %vm156, %v132, 0
  %v188 = vsel %vm156, %v133, 0
  %v191 = vsel %vm156, %v134, 0
  %v194 = vsel %vm156, %v135, 0
  %v197 = vsel %vm156, %v136, 0
  %v200 = vsel %vm156, %v137, 0
  %v203 = vsel %vm156, %v138, 0
  %v206 = vsel %vm156, %v139, 0
  %v209 = vsel %vm156, %v140, 0
  %v212 = vsel %vm156, %v141, 0
  %v215 = vsel %vm156, %v142, 0
  %v218 = vsel %vm156, %v143, 0
  %v221 = vsel %vm156, %v144, 0
  %v224 = vsel %vm156, %v145, 0
  %v227 = vsel %vm156, %v146, 0
  %v230 = vsel %vm156, %v147, 0
  %v233 = vsel %vm156, %v148, 0
  %v236 = vsel %vm156, %v149, 0
  %v239 = vsel %vm156, %v150, 0
  %v242 = vsel %vm156, %v151, 0
  %v245 = vsel %vm156, %v152, 0
  %v248 = vsel %vm156, %v153, 0
  %v251 = vsel %vm156, %v154, 0
  %253 = vmatpush.msra.mxu0 0.0
  %254 = vmatpush.msra.mxu0 0.0
  %255 = vmatpush.msra.mxu0 0.0
  %256 = vmatpush.msra.mxu0 0.0
  %257 = vmatpush.msra.mxu0 0.0
  %258 = vmatpush.msra.mxu0 0.0
  %259 = vmatpush.msra.mxu0 0.0
  %260 = vmatpush.msra.mxu0 0.0
  %261 = vmatpush.msra.mxu0 0.0
  %262 = vmatpush.msra.mxu0 0.0
  %263 = vmatpush.msra.mxu0 0.0
  %264 = vmatpush.msra.mxu0 0.0
  %265 = vmatpush.msra.mxu0 0.0
  %266 = vmatpush.msra.mxu0 0.0
  %267 = vmatpush.msra.mxu0 0.0
  %268 = vmatpush.msra.mxu0 %v155
  %269 = vmatmul.f32.gmra.mxu0 %v158
  %v270 = vpop.f32.mrf.mxu0
  %v271 = vadd.f32 0.0, %v270
  %272 = vmatmul.f32.gmra.mxu0 %v161
  %v273 = vpop.f32.mrf.mxu0
  %v274 = vadd.f32 0.0, %v273
  %275 = vmatmul.f32.gmra.mxu0 %v164
  %v276 = vpop.f32.mrf.mxu0
  %v277 = vadd.f32 0.0, %v276
  %278 = vmatmul.f32.gmra.mxu0 %v167
  %v279 = vpop.f32.mrf.mxu0
  %v280 = vadd.f32 0.0, %v279
  %281 = vmatmul.f32.gmra.mxu0 %v170
  %v282 = vpop.f32.mrf.mxu0
  %v283 = vadd.f32 0.0, %v282
  %284 = vmatmul.f32.gmra.mxu0 %v173
  %v285 = vpop.f32.mrf.mxu0
  %v286 = vadd.f32 0.0, %v285
  %287 = vmatmul.f32.gmra.mxu0 %v176
  %v288 = vpop.f32.mrf.mxu0
  %v289 = vadd.f32 0.0, %v288
  %290 = vmatmul.f32.gmra.mxu0 %v179
  %v291 = vpop.f32.mrf.mxu0
  %v292 = vadd.f32 0.0, %v291
  %293 = vmatmul.f32.gmra.mxu0 %v182
  %v294 = vpop.f32.mrf.mxu0
  %v295 = vadd.f32 0.0, %v294
  %296 = vmatmul.f32.gmra.mxu0 %v185
  %v297 = vpop.f32.mrf.mxu0
  %v298 = vadd.f32 0.0, %v297
  %299 = vmatmul.f32.gmra.mxu0 %v188
  %v300 = vpop.f32.mrf.mxu0
  %v301 = vadd.f32 0.0, %v300
  %302 = vmatmul.f32.gmra.mxu0 %v191
  %v303 = vpop.f32.mrf.mxu0
  %v304 = vadd.f32 0.0, %v303
  %305 = vmatmul.f32.gmra.mxu0 %v194
  %v306 = vpop.f32.mrf.mxu0
  %v307 = vadd.f32 0.0, %v306
  %308 = vmatmul.f32.gmra.mxu0 %v197
  %v309 = vpop.f32.mrf.mxu0
  %v310 = vadd.f32 0.0, %v309
  %311 = vmatmul.f32.gmra.mxu0 %v200
  %v312 = vpop.f32.mrf.mxu0
  %v313 = vadd.f32 0.0, %v312
  %314 = vmatmul.f32.gmra.mxu0 %v203
  %v315 = vpop.f32.mrf.mxu0
  %v316 = vadd.f32 0.0, %v315
  %317 = vmatmul.f32.gmra.mxu0 %v206
  %v318 = vpop.f32.mrf.mxu0
  %v319 = vadd.f32 0.0, %v318
  %320 = vmatmul.f32.gmra.mxu0 %v209
  %v321 = vpop.f32.mrf.mxu0
  %v322 = vadd.f32 0.0, %v321
  %323 = vmatmul.f32.gmra.mxu0 %v212
  %v324 = vpop.f32.mrf.mxu0
  %v325 = vadd.f32 0.0, %v324
  %326 = vmatmul.f32.gmra.mxu0 %v215
  %v327 = vpop.f32.mrf.mxu0
  %v328 = vadd.f32 0.0, %v327
  %329 = vmatmul.f32.gmra.mxu0 %v218
  %v330 = vpop.f32.mrf.mxu0
  %v331 = vadd.f32 0.0, %v330
  %332 = vmatmul.f32.gmra.mxu0 %v221
  %v333 = vpop.f32.mrf.mxu0
  %v334 = vadd.f32 0.0, %v333
  %335 = vmatmul.f32.gmra.mxu0 %v224
  %v336 = vpop.f32.mrf.mxu0
  %v337 = vadd.f32 0.0, %v336
  %338 = vmatmul.f32.gmra.mxu0 %v227
  %v339 = vpop.f32.mrf.mxu0
  %v340 = vadd.f32 0.0, %v339
  %341 = vmatmul.f32.gmra.mxu0 %v230
  %v342 = vpop.f32.mrf.mxu0
  %v343 = vadd.f32 0.0, %v342
  %344 = vmatmul.f32.gmra.mxu0 %v233
  %v345 = vpop.f32.mrf.mxu0
  %v346 = vadd.f32 0.0, %v345
  %347 = vmatmul.f32.gmra.mxu0 %v236
  %v348 = vpop.f32.mrf.mxu0
  %v349 = vadd.f32 0.0, %v348
  %350 = vmatmul.f32.gmra.mxu0 %v239
  %v351 = vpop.f32.mrf.mxu0
  %v352 = vadd.f32 0.0, %v351
  %353 = vmatmul.f32.gmra.mxu0 %v242
  %v354 = vpop.f32.mrf.mxu0
  %v355 = vadd.f32 0.0, %v354
  %356 = vmatmul.f32.gmra.mxu0 %v245
  %v357 = vpop.f32.mrf.mxu0
  %v358 = vadd.f32 0.0, %v357
  %359 = vmatmul.f32.gmra.mxu0 %v248
  %v360 = vpop.f32.mrf.mxu0
  %v361 = vadd.f32 0.0, %v360
  %362 = vmatmul.f32.gmra.mxu0 %v251
  %v363 = vpop.f32.mrf.mxu0
  %v364 = vadd.f32 0.0, %v363
  %365 = vdwg.mxu0
  %v366 = vrot.slane %v271, 7
  %v367 = vrot.slane %v274, 7
  %v368 = vrot.slane %v277, 7
  %v369 = vrot.slane %v280, 7
  %v370 = vrot.slane %v283, 7
  %v371 = vrot.slane %v286, 7
  %v372 = vrot.slane %v289, 7
  %v373 = vrot.slane %v292, 7
  %v374 = vrot.slane %v295, 7
  %v375 = vrot.slane %v298, 7
  %v376 = vrot.slane %v301, 7
  %v377 = vrot.slane %v304, 7
  %v378 = vrot.slane %v307, 7
  %v379 = vrot.slane %v310, 7
  %v380 = vrot.slane %v313, 7
  %v381 = vrot.slane %v316, 7
  %v382 = vrot.slane %v319, 7
  %v383 = vrot.slane %v322, 7
  %v384 = vrot.slane %v325, 7
  %v385 = vrot.slane %v328, 7
  %v386 = vrot.slane %v331, 7
  %v387 = vrot.slane %v334, 7
  %v388 = vrot.slane %v337, 7
  %v389 = vrot.slane %v340, 7
  %v390 = vrot.slane %v343, 7
  %v391 = vrot.slane %v346, 7
  %v392 = vrot.slane %v349, 7
  %v393 = vrot.slane %v352, 7
  %v394 = vrot.slane %v355, 7
  %v395 = vrot.slane %v358, 7
  %v396 = vrot.slane %v361, 7
  %v397 = vrot.slane %v364, 7
  %v398 = vlaneseq
  %v399 = vshrl.u32 %v398, 7
  %vm400 = vcmp.lt.s32.totalorder %v399, 1
  %v401 = vsel %vm400, %v396, %v397
  %v402 = vsel %vm400, %v395, %v396
  %v403 = vsel %vm400, %v394, %v395
  %v404 = vsel %vm400, %v393, %v394
  %v405 = vsel %vm400, %v392, %v393
  %v406 = vsel %vm400, %v391, %v392
  %v407 = vsel %vm400, %v390, %v391
  %v408 = vsel %vm400, %v389, %v390
  %v409 = vsel %vm400, %v388, %v389
  %v410 = vsel %vm400, %v387, %v388
  %v411 = vsel %vm400, %v386, %v387
  %v412 = vsel %vm400, %v385, %v386
  %v413 = vsel %vm400, %v384, %v385
  %v414 = vsel %vm400, %v383, %v384
  %v415 = vsel %vm400, %v382, %v383
  %v416 = vsel %vm400, %v381, %v382
  %v417 = vsel %vm400, %v380, %v381
  %v418 = vsel %vm400, %v379, %v380
  %v419 = vsel %vm400, %v378, %v379
  %v420 = vsel %vm400, %v377, %v378
  %v421 = vsel %vm400, %v376, %v377
  %v422 = vsel %vm400, %v375, %v376
  %v423 = vsel %vm400, %v374, %v375
  %v424 = vsel %vm400, %v373, %v374
  %v425 = vsel %vm400, %v372, %v373
  %v426 = vsel %vm400, %v371, %v372
  %v427 = vsel %vm400, %v370, %v371
  %v428 = vsel %vm400, %v369, %v370
  %v429 = vsel %vm400, %v368, %v369
  %v430 = vsel %vm400, %v367, %v368
  %v431 = vsel %vm400, %v366, %v367
  %v432 = vsel %vm400, %v397, %v366
  %434 = vset.pattern.permute.xlu0 0
  %435 = vperm.xlu0 %434, %v59
  %v436 = vpop.permute.xlu0 %435
  %439 = vset.pattern.permute.xlu0 0
  %440 = vperm.xlu0 %439, %v60
  %v441 = vpop.permute.xlu0 %440
  %444 = vset.pattern.permute.xlu0 0
  %445 = vperm.xlu0 %444, %v61
  %v446 = vpop.permute.xlu0 %445
  %449 = vset.pattern.permute.xlu0 0
  %450 = vperm.xlu0 %449, %v62
  %v451 = vpop.permute.xlu0 %450
  %454 = vset.pattern.permute.xlu0 0
  %455 = vperm.xlu0 %454, %v63
  %v456 = vpop.permute.xlu0 %455
  %459 = vset.pattern.permute.xlu0 0
  %460 = vperm.xlu0 %459, %v64
  %v461 = vpop.permute.xlu0 %460
  %464 = vset.pattern.permute.xlu0 0
  %465 = vperm.xlu0 %464, %v65
  %v466 = vpop.permute.xlu0 %465
  %469 = vset.pattern.permute.xlu0 0
  %470 = vperm.xlu0 %469, %v66
  %v471 = vpop.permute.xlu0 %470
  %474 = vset.pattern.permute.xlu0 0
  %475 = vperm.xlu0 %474, %v67
  %v476 = vpop.permute.xlu0 %475
  %479 = vset.pattern.permute.xlu0 0
  %480 = vperm.xlu0 %479, %v68
  %v481 = vpop.permute.xlu0 %480
  %484 = vset.pattern.permute.xlu0 0
  %485 = vperm.xlu0 %484, %v69
  %v486 = vpop.permute.xlu0 %485
  %489 = vset.pattern.permute.xlu0 0
  %490 = vperm.xlu0 %489, %v70
  %v491 = vpop.permute.xlu0 %490
  %494 = vset.pattern.permute.xlu0 0
  %495 = vperm.xlu0 %494, %v71
  %v496 = vpop.permute.xlu0 %495
  %499 = vset.pattern.permute.xlu0 0
  %500 = vperm.xlu0 %499, %v72
  %v501 = vpop.permute.xlu0 %500
  %504 = vset.pattern.permute.xlu0 0
  %505 = vperm.xlu0 %504, %v73
  %v506 = vpop.permute.xlu0 %505
  %509 = vset.pattern.permute.xlu0 0
  %510 = vperm.xlu0 %509, %v74
  %v511 = vpop.permute.xlu0 %510
  %514 = vset.pattern.permute.xlu0 0
  %515 = vperm.xlu0 %514, %v75
  %v516 = vpop.permute.xlu0 %515
  %519 = vset.pattern.permute.xlu0 0
  %520 = vperm.xlu0 %519, %v76
  %v521 = vpop.permute.xlu0 %520
  %524 = vset.pattern.permute.xlu0 0
  %525 = vperm.xlu0 %524, %v77
  %v526 = vpop.permute.xlu0 %525
  %529 = vset.pattern.permute.xlu0 0
  %530 = vperm.xlu0 %529, %v78
  %v531 = vpop.permute.xlu0 %530
  %534 = vset.pattern.permute.xlu0 0
  %535 = vperm.xlu0 %534, %v79
  %v536 = vpop.permute.xlu0 %535
  %539 = vset.pattern.permute.xlu0 0
  %540 = vperm.xlu0 %539, %v80
  %v541 = vpop.permute.xlu0 %540
  %544 = vset.pattern.permute.xlu0 0
  %545 = vperm.xlu0 %544, %v81
  %v546 = vpop.permute.xlu0 %545
  %549 = vset.pattern.permute.xlu0 0
  %550 = vperm.xlu0 %549, %v82
  %v551 = vpop.permute.xlu0 %550
  %554 = vset.pattern.permute.xlu0 0
  %555 = vperm.xlu0 %554, %v83
  %v556 = vpop.permute.xlu0 %555
  %559 = vset.pattern.permute.xlu0 0
  %560 = vperm.xlu0 %559, %v84
  %v561 = vpop.permute.xlu0 %560
  %564 = vset.pattern.permute.xlu0 0
  %565 = vperm.xlu0 %564, %v85
  %v566 = vpop.permute.xlu0 %565
  %569 = vset.pattern.permute.xlu0 0
  %570 = vperm.xlu0 %569, %v86
  %v571 = vpop.permute.xlu0 %570
  %574 = vset.pattern.permute.xlu0 0
  %575 = vperm.xlu0 %574, %v87
  %v576 = vpop.permute.xlu0 %575
  %579 = vset.pattern.permute.xlu0 0
  %580 = vperm.xlu0 %579, %v88
  %v581 = vpop.permute.xlu0 %580
  %584 = vset.pattern.permute.xlu0 0
  %585 = vperm.xlu0 %584, %v89
  %v586 = vpop.permute.xlu0 %585
  %589 = vset.pattern.permute.xlu0 0
  %590 = vperm.xlu0 %589, %v90
  %v591 = vpop.permute.xlu0 %590
  %v593 = vmul.f32 %v432, %v436
  %v594 = vmul.f32 %v431, %v441
  %v595 = vmul.f32 %v430, %v446
  %v596 = vmul.f32 %v429, %v451
  %v597 = vmul.f32 %v428, %v456
  %v598 = vmul.f32 %v427, %v461
  %v599 = vmul.f32 %v426, %v466
  %v600 = vmul.f32 %v425, %v471
  %v601 = vmul.f32 %v424, %v476
  %v602 = vmul.f32 %v423, %v481
  %v603 = vmul.f32 %v422, %v486
  %v604 = vmul.f32 %v421, %v491
  %v605 = vmul.f32 %v420, %v496
  %v606 = vmul.f32 %v419, %v501
  %v607 = vmul.f32 %v418, %v506
  %v608 = vmul.f32 %v417, %v511
  %v609 = vmul.f32 %v416, %v516
  %v610 = vmul.f32 %v415, %v521
  %v611 = vmul.f32 %v414, %v526
  %v612 = vmul.f32 %v413, %v531
  %v613 = vmul.f32 %v412, %v536
  %v614 = vmul.f32 %v411, %v541
  %v615 = vmul.f32 %v410, %v546
  %v616 = vmul.f32 %v409, %v551
  %v617 = vmul.f32 %v408, %v556
  %v618 = vmul.f32 %v407, %v561
  %v619 = vmul.f32 %v406, %v566
  %v620 = vmul.f32 %v405, %v571
  %v621 = vmul.f32 %v404, %v576
  %v622 = vmul.f32 %v403, %v581
  %v623 = vmul.f32 %v402, %v586
  %v624 = vmul.f32 %v401, %v591
  %657 = vrot.lane.b32.xlu0 %v271, 96
  %v658 = vpop.permute.xlu0 %657
  %659 = vrot.lane.b32.xlu0 %v274, 96
  %v660 = vpop.permute.xlu0 %659
  %661 = vrot.lane.b32.xlu0 %v277, 96
  %v662 = vpop.permute.xlu0 %661
  %663 = vrot.lane.b32.xlu0 %v280, 96
  %v664 = vpop.permute.xlu0 %663
  %665 = vrot.lane.b32.xlu0 %v283, 96
  %v666 = vpop.permute.xlu0 %665
  %667 = vrot.lane.b32.xlu0 %v286, 96
  %v668 = vpop.permute.xlu0 %667
  %669 = vrot.lane.b32.xlu0 %v289, 96
  %v670 = vpop.permute.xlu0 %669
  %671 = vrot.lane.b32.xlu0 %v292, 96
  %v672 = vpop.permute.xlu0 %671
  %673 = vrot.lane.b32.xlu0 %v295, 96
  %v674 = vpop.permute.xlu0 %673
  %675 = vrot.lane.b32.xlu0 %v298, 96
  %v676 = vpop.permute.xlu0 %675
  %677 = vrot.lane.b32.xlu0 %v301, 96
  %v678 = vpop.permute.xlu0 %677
  %679 = vrot.lane.b32.xlu0 %v304, 96
  %v680 = vpop.permute.xlu0 %679
  %681 = vrot.lane.b32.xlu0 %v307, 96
  %v682 = vpop.permute.xlu0 %681
  %683 = vrot.lane.b32.xlu0 %v310, 96
  %v684 = vpop.permute.xlu0 %683
  %685 = vrot.lane.b32.xlu0 %v313, 96
  %v686 = vpop.permute.xlu0 %685
  %687 = vrot.lane.b32.xlu0 %v316, 96
  %v688 = vpop.permute.xlu0 %687
  %689 = vrot.lane.b32.xlu0 %v319, 96
  %v690 = vpop.permute.xlu0 %689
  %691 = vrot.lane.b32.xlu0 %v322, 96
  %v692 = vpop.permute.xlu0 %691
  %693 = vrot.lane.b32.xlu0 %v325, 96
  %v694 = vpop.permute.xlu0 %693
  %695 = vrot.lane.b32.xlu0 %v328, 96
  %v696 = vpop.permute.xlu0 %695
  %697 = vrot.lane.b32.xlu0 %v331, 96
  %v698 = vpop.permute.xlu0 %697
  %699 = vrot.lane.b32.xlu0 %v334, 96
  %v700 = vpop.permute.xlu0 %699
  %701 = vrot.lane.b32.xlu0 %v337, 96
  %v702 = vpop.permute.xlu0 %701
  %703 = vrot.lane.b32.xlu0 %v340, 96
  %v704 = vpop.permute.xlu0 %703
  %705 = vrot.lane.b32.xlu0 %v343, 96
  %v706 = vpop.permute.xlu0 %705
  %707 = vrot.lane.b32.xlu0 %v346, 96
  %v708 = vpop.permute.xlu0 %707
  %709 = vrot.lane.b32.xlu0 %v349, 96
  %v710 = vpop.permute.xlu0 %709
  %711 = vrot.lane.b32.xlu0 %v352, 96
  %v712 = vpop.permute.xlu0 %711
  %713 = vrot.lane.b32.xlu0 %v355, 96
  %v714 = vpop.permute.xlu0 %713
  %715 = vrot.lane.b32.xlu0 %v358, 96
  %v716 = vpop.permute.xlu0 %715
  %717 = vrot.lane.b32.xlu0 %v361, 96
  %v718 = vpop.permute.xlu0 %717
  %719 = vrot.lane.b32.xlu0 %v364, 96
  %v720 = vpop.permute.xlu0 %719
  %v753 = vadd.f32 %v593, %v658
  %v754 = vadd.f32 %v594, %v660
  %v755 = vadd.f32 %v595, %v662
  %v756 = vadd.f32 %v596, %v664
  %v757 = vadd.f32 %v597, %v666
  %v758 = vadd.f32 %v598, %v668
  %v759 = vadd.f32 %v599, %v670
  %v760 = vadd.f32 %v600, %v672
  %v761 = vadd.f32 %v601, %v674
  %v762 = vadd.f32 %v602, %v676
  %v763 = vadd.f32 %v603, %v678
  %v764 = vadd.f32 %v604, %v680
  %v765 = vadd.f32 %v605, %v682
  %v766 = vadd.f32 %v606, %v684
  %v767 = vadd.f32 %v607, %v686
  %v768 = vadd.f32 %v608, %v688
  %v769 = vadd.f32 %v609, %v690
  %v770 = vadd.f32 %v610, %v692
  %v771 = vadd.f32 %v611, %v694
  %v772 = vadd.f32 %v612, %v696
  %v773 = vadd.f32 %v613, %v698
  %v774 = vadd.f32 %v614, %v700
  %v775 = vadd.f32 %v615, %v702
  %v776 = vadd.f32 %v616, %v704
  %v777 = vadd.f32 %v617, %v706
  %v778 = vadd.f32 %v618, %v708
  %v779 = vadd.f32 %v619, %v710
  %v780 = vadd.f32 %v620, %v712
  %v781 = vadd.f32 %v621, %v714
  %v782 = vadd.f32 %v622, %v716
  %v783 = vadd.f32 %v623, %v718
  %v784 = vadd.f32 %v624, %v720
  %785 = vrot.lane.b32.xlu0 %v271, 64
  %v786 = vpop.permute.xlu0 %785
  %787 = vrot.lane.b32.xlu0 %v274, 64
  %v788 = vpop.permute.xlu0 %787
  %789 = vrot.lane.b32.xlu0 %v277, 64
  %v790 = vpop.permute.xlu0 %789
  %791 = vrot.lane.b32.xlu0 %v280, 64
  %v792 = vpop.permute.xlu0 %791
  %793 = vrot.lane.b32.xlu0 %v283, 64
  %v794 = vpop.permute.xlu0 %793
  %795 = vrot.lane.b32.xlu0 %v286, 64
  %v796 = vpop.permute.xlu0 %795
  %797 = vrot.lane.b32.xlu0 %v289, 64
  %v798 = vpop.permute.xlu0 %797
  %799 = vrot.lane.b32.xlu0 %v292, 64
  %v800 = vpop.permute.xlu0 %799
  %801 = vrot.lane.b32.xlu0 %v295, 64
  %v802 = vpop.permute.xlu0 %801
  %803 = vrot.lane.b32.xlu0 %v298, 64
  %v804 = vpop.permute.xlu0 %803
  %805 = vrot.lane.b32.xlu0 %v301, 64
  %v806 = vpop.permute.xlu0 %805
  %807 = vrot.lane.b32.xlu0 %v304, 64
  %v808 = vpop.permute.xlu0 %807
  %809 = vrot.lane.b32.xlu0 %v307, 64
  %v810 = vpop.permute.xlu0 %809
  %811 = vrot.lane.b32.xlu0 %v310, 64
  %v812 = vpop.permute.xlu0 %811
  %813 = vrot.lane.b32.xlu0 %v313, 64
  %v814 = vpop.permute.xlu0 %813
  %815 = vrot.lane.b32.xlu0 %v316, 64
  %v816 = vpop.permute.xlu0 %815
  %817 = vrot.lane.b32.xlu0 %v319, 64
  %v818 = vpop.permute.xlu0 %817
  %819 = vrot.lane.b32.xlu0 %v322, 64
  %v820 = vpop.permute.xlu0 %819
  %821 = vrot.lane.b32.xlu0 %v325, 64
  %v822 = vpop.permute.xlu0 %821
  %823 = vrot.lane.b32.xlu0 %v328, 64
  %v824 = vpop.permute.xlu0 %823
  %825 = vrot.lane.b32.xlu0 %v331, 64
  %v826 = vpop.permute.xlu0 %825
  %827 = vrot.lane.b32.xlu0 %v334, 64
  %v828 = vpop.permute.xlu0 %827
  %829 = vrot.lane.b32.xlu0 %v337, 64
  %v830 = vpop.permute.xlu0 %829
  %831 = vrot.lane.b32.xlu0 %v340, 64
  %v832 = vpop.permute.xlu0 %831
  %833 = vrot.lane.b32.xlu0 %v343, 64
  %v834 = vpop.permute.xlu0 %833
  %835 = vrot.lane.b32.xlu0 %v346, 64
  %v836 = vpop.permute.xlu0 %835
  %837 = vrot.lane.b32.xlu0 %v349, 64
  %v838 = vpop.permute.xlu0 %837
  %839 = vrot.lane.b32.xlu0 %v352, 64
  %v840 = vpop.permute.xlu0 %839
  %841 = vrot.lane.b32.xlu0 %v355, 64
  %v842 = vpop.permute.xlu0 %841
  %843 = vrot.lane.b32.xlu0 %v358, 64
  %v844 = vpop.permute.xlu0 %843
  %845 = vrot.lane.b32.xlu0 %v361, 64
  %v846 = vpop.permute.xlu0 %845
  %847 = vrot.lane.b32.xlu0 %v364, 64
  %v848 = vpop.permute.xlu0 %847
  %v881 = vrot.slane %v786, 1
  %v882 = vrot.slane %v788, 1
  %v883 = vrot.slane %v790, 1
  %v884 = vrot.slane %v792, 1
  %v885 = vrot.slane %v794, 1
  %v886 = vrot.slane %v796, 1
  %v887 = vrot.slane %v798, 1
  %v888 = vrot.slane %v800, 1
  %v889 = vrot.slane %v802, 1
  %v890 = vrot.slane %v804, 1
  %v891 = vrot.slane %v806, 1
  %v892 = vrot.slane %v808, 1
  %v893 = vrot.slane %v810, 1
  %v894 = vrot.slane %v812, 1
  %v895 = vrot.slane %v814, 1
  %v896 = vrot.slane %v816, 1
  %v897 = vrot.slane %v818, 1
  %v898 = vrot.slane %v820, 1
  %v899 = vrot.slane %v822, 1
  %v900 = vrot.slane %v824, 1
  %v901 = vrot.slane %v826, 1
  %v902 = vrot.slane %v828, 1
  %v903 = vrot.slane %v830, 1
  %v904 = vrot.slane %v832, 1
  %v905 = vrot.slane %v834, 1
  %v906 = vrot.slane %v836, 1
  %v907 = vrot.slane %v838, 1
  %v908 = vrot.slane %v840, 1
  %v909 = vrot.slane %v842, 1
  %v910 = vrot.slane %v844, 1
  %v911 = vrot.slane %v846, 1
  %v912 = vrot.slane %v848, 1
  %vm913 = vcmp.lt.s32.totalorder %v399, 7
  %v914 = vsel %vm913, %v911, %v912
  %v915 = vsel %vm913, %v910, %v911
  %v916 = vsel %vm913, %v909, %v910
  %v917 = vsel %vm913, %v908, %v909
  %v918 = vsel %vm913, %v907, %v908
  %v919 = vsel %vm913, %v906, %v907
  %v920 = vsel %vm913, %v905, %v906
  %v921 = vsel %vm913, %v904, %v905
  %v922 = vsel %vm913, %v903, %v904
  %v923 = vsel %vm913, %v902, %v903
  %v924 = vsel %vm913, %v901, %v902
  %v925 = vsel %vm913, %v900, %v901
  %v926 = vsel %vm913, %v899, %v900
  %v927 = vsel %vm913, %v898, %v899
  %v928 = vsel %vm913, %v897, %v898
  %v929 = vsel %vm913, %v896, %v897
  %v930 = vsel %vm913, %v895, %v896
  %v931 = vsel %vm913, %v894, %v895
  %v932 = vsel %vm913, %v893, %v894
  %v933 = vsel %vm913, %v892, %v893
  %v934 = vsel %vm913, %v891, %v892
  %v935 = vsel %vm913, %v890, %v891
  %v936 = vsel %vm913, %v889, %v890
  %v937 = vsel %vm913, %v888, %v889
  %v938 = vsel %vm913, %v887, %v888
  %v939 = vsel %vm913, %v886, %v887
  %v940 = vsel %vm913, %v885, %v886
  %v941 = vsel %vm913, %v884, %v885
  %v942 = vsel %vm913, %v883, %v884
  %v943 = vsel %vm913, %v882, %v883
  %v944 = vsel %vm913, %v881, %v882
  %v945 = vsel %vm913, %v912, %v881
  %947 = vset.pattern.permute.xlu0 0
  %948 = vperm.xlu0 %947, %v91
  %v949 = vpop.permute.xlu0 %948
  %952 = vset.pattern.permute.xlu0 0
  %953 = vperm.xlu0 %952, %v92
  %v954 = vpop.permute.xlu0 %953
  %957 = vset.pattern.permute.xlu0 0
  %958 = vperm.xlu0 %957, %v93
  %v959 = vpop.permute.xlu0 %958
  %962 = vset.pattern.permute.xlu0 0
  %963 = vperm.xlu0 %962, %v94
  %v964 = vpop.permute.xlu0 %963
  %967 = vset.pattern.permute.xlu0 0
  %968 = vperm.xlu0 %967, %v95
  %v969 = vpop.permute.xlu0 %968
  %972 = vset.pattern.permute.xlu0 0
  %973 = vperm.xlu0 %972, %v96
  %v974 = vpop.permute.xlu0 %973
  %977 = vset.pattern.permute.xlu0 0
  %978 = vperm.xlu0 %977, %v97
  %v979 = vpop.permute.xlu0 %978
  %982 = vset.pattern.permute.xlu0 0
  %983 = vperm.xlu0 %982, %v98
  %v984 = vpop.permute.xlu0 %983
  %987 = vset.pattern.permute.xlu0 0
  %988 = vperm.xlu0 %987, %v99
  %v989 = vpop.permute.xlu0 %988
  %992 = vset.pattern.permute.xlu0 0
  %993 = vperm.xlu0 %992, %v100
  %v994 = vpop.permute.xlu0 %993
  %997 = vset.pattern.permute.xlu0 0
  %998 = vperm.xlu0 %997, %v101
  %v999 = vpop.permute.xlu0 %998
  %1002 = vset.pattern.permute.xlu0 0
  %1003 = vperm.xlu0 %1002, %v102
  %v1004 = vpop.permute.xlu0 %1003
  %1007 = vset.pattern.permute.xlu0 0
  %1008 = vperm.xlu0 %1007, %v103
  %v1009 = vpop.permute.xlu0 %1008
  %1012 = vset.pattern.permute.xlu0 0
  %1013 = vperm.xlu0 %1012, %v104
  %v1014 = vpop.permute.xlu0 %1013
  %1017 = vset.pattern.permute.xlu0 0
  %1018 = vperm.xlu0 %1017, %v105
  %v1019 = vpop.permute.xlu0 %1018
  %1022 = vset.pattern.permute.xlu0 0
  %1023 = vperm.xlu0 %1022, %v106
  %v1024 = vpop.permute.xlu0 %1023
  %1027 = vset.pattern.permute.xlu0 0
  %1028 = vperm.xlu0 %1027, %v107
  %v1029 = vpop.permute.xlu0 %1028
  %1032 = vset.pattern.permute.xlu0 0
  %1033 = vperm.xlu0 %1032, %v108
  %v1034 = vpop.permute.xlu0 %1033
  %1037 = vset.pattern.permute.xlu0 0
  %1038 = vperm.xlu0 %1037, %v109
  %v1039 = vpop.permute.xlu0 %1038
  %1042 = vset.pattern.permute.xlu0 0
  %1043 = vperm.xlu0 %1042, %v110
  %v1044 = vpop.permute.xlu0 %1043
  %1047 = vset.pattern.permute.xlu0 0
  %1048 = vperm.xlu0 %1047, %v111
  %v1049 = vpop.permute.xlu0 %1048
  %1052 = vset.pattern.permute.xlu0 0
  %1053 = vperm.xlu0 %1052, %v112
  %v1054 = vpop.permute.xlu0 %1053
  %1057 = vset.pattern.permute.xlu0 0
  %1058 = vperm.xlu0 %1057, %v113
  %v1059 = vpop.permute.xlu0 %1058
  %1062 = vset.pattern.permute.xlu0 0
  %1063 = vperm.xlu0 %1062, %v114
  %v1064 = vpop.permute.xlu0 %1063
  %1067 = vset.pattern.permute.xlu0 0
  %1068 = vperm.xlu0 %1067, %v115
  %v1069 = vpop.permute.xlu0 %1068
  %1072 = vset.pattern.permute.xlu0 0
  %1073 = vperm.xlu0 %1072, %v116
  %v1074 = vpop.permute.xlu0 %1073
  %1077 = vset.pattern.permute.xlu0 0
  %1078 = vperm.xlu0 %1077, %v117
  %v1079 = vpop.permute.xlu0 %1078
  %1082 = vset.pattern.permute.xlu0 0
  %1083 = vperm.xlu0 %1082, %v118
  %v1084 = vpop.permute.xlu0 %1083
  %1087 = vset.pattern.permute.xlu0 0
  %1088 = vperm.xlu0 %1087, %v119
  %v1089 = vpop.permute.xlu0 %1088
  %1092 = vset.pattern.permute.xlu0 0
  %1093 = vperm.xlu0 %1092, %v120
  %v1094 = vpop.permute.xlu0 %1093
  %1097 = vset.pattern.permute.xlu0 0
  %1098 = vperm.xlu0 %1097, %v121
  %v1099 = vpop.permute.xlu0 %1098
  %1102 = vset.pattern.permute.xlu0 0
  %1103 = vperm.xlu0 %1102, %v122
  %v1104 = vpop.permute.xlu0 %1103
  %v1106 = vmul.f32 %v944, %v949
  %v1107 = vmul.f32 %v943, %v954
  %v1108 = vmul.f32 %v942, %v959
  %v1109 = vmul.f32 %v941, %v964
  %v1110 = vmul.f32 %v940, %v969
  %v1111 = vmul.f32 %v939, %v974
  %v1112 = vmul.f32 %v938, %v979
  %v1113 = vmul.f32 %v937, %v984
  %v1114 = vmul.f32 %v936, %v989
  %v1115 = vmul.f32 %v935, %v994
  %v1116 = vmul.f32 %v934, %v999
  %v1117 = vmul.f32 %v933, %v1004
  %v1118 = vmul.f32 %v932, %v1009
  %v1119 = vmul.f32 %v931, %v1014
  %v1120 = vmul.f32 %v930, %v1019
  %v1121 = vmul.f32 %v929, %v1024
  %v1122 = vmul.f32 %v928, %v1029
  %v1123 = vmul.f32 %v927, %v1034
  %v1124 = vmul.f32 %v926, %v1039
  %v1125 = vmul.f32 %v925, %v1044
  %v1126 = vmul.f32 %v924, %v1049
  %v1127 = vmul.f32 %v923, %v1054
  %v1128 = vmul.f32 %v922, %v1059
  %v1129 = vmul.f32 %v921, %v1064
  %v1130 = vmul.f32 %v920, %v1069
  %v1131 = vmul.f32 %v919, %v1074
  %v1132 = vmul.f32 %v918, %v1079
  %v1133 = vmul.f32 %v917, %v1084
  %v1134 = vmul.f32 %v916, %v1089
  %v1135 = vmul.f32 %v915, %v1094
  %v1136 = vmul.f32 %v914, %v1099
  %v1137 = vmul.f32 %v945, %v1104
  %v1138 = vadd.f32 %v753, %v1106
  %v1139 = vadd.f32 %v754, %v1107
  %v1140 = vadd.f32 %v755, %v1108
  %v1141 = vadd.f32 %v756, %v1109
  %v1142 = vadd.f32 %v757, %v1110
  %v1143 = vadd.f32 %v758, %v1111
  %v1144 = vadd.f32 %v759, %v1112
  %v1145 = vadd.f32 %v760, %v1113
  %v1146 = vadd.f32 %v761, %v1114
  %v1147 = vadd.f32 %v762, %v1115
  %v1148 = vadd.f32 %v763, %v1116
  %v1149 = vadd.f32 %v764, %v1117
  %v1150 = vadd.f32 %v765, %v1118
  %v1151 = vadd.f32 %v766, %v1119
  %v1152 = vadd.f32 %v767, %v1120
  %v1153 = vadd.f32 %v768, %v1121
  %v1154 = vadd.f32 %v769, %v1122
  %v1155 = vadd.f32 %v770, %v1123
  %v1156 = vadd.f32 %v771, %v1124
  %v1157 = vadd.f32 %v772, %v1125
  %v1158 = vadd.f32 %v773, %v1126
  %v1159 = vadd.f32 %v774, %v1127
  %v1160 = vadd.f32 %v775, %v1128
  %v1161 = vadd.f32 %v776, %v1129
  %v1162 = vadd.f32 %v777, %v1130
  %v1163 = vadd.f32 %v778, %v1131
  %v1164 = vadd.f32 %v779, %v1132
  %v1165 = vadd.f32 %v780, %v1133
  %v1166 = vadd.f32 %v781, %v1134
  %v1167 = vadd.f32 %v782, %v1135
  %v1168 = vadd.f32 %v783, %v1136
  %v1169 = vadd.f32 %v784, %v1137
  %v1170 = vld [vmem:[%s6] sm:$0x1]
  %v1172 = vperm.slane %v1170, 0
  %v1174 = vadd.f32 %v1138, %v1172
  %v1175 = vadd.f32 %v1139, %v1172
  %v1176 = vadd.f32 %v1140, %v1172
  %v1177 = vadd.f32 %v1141, %v1172
  %v1178 = vadd.f32 %v1142, %v1172
  %v1179 = vadd.f32 %v1143, %v1172
  %v1180 = vadd.f32 %v1144, %v1172
  %v1181 = vadd.f32 %v1145, %v1172
  %v1182 = vadd.f32 %v1146, %v1172
  %v1183 = vadd.f32 %v1147, %v1172
  %v1184 = vadd.f32 %v1148, %v1172
  %v1185 = vadd.f32 %v1149, %v1172
  %v1186 = vadd.f32 %v1150, %v1172
  %v1187 = vadd.f32 %v1151, %v1172
  %v1188 = vadd.f32 %v1152, %v1172
  %v1189 = vadd.f32 %v1153, %v1172
  %v1190 = vadd.f32 %v1154, %v1172
  %v1191 = vadd.f32 %v1155, %v1172
  %v1192 = vadd.f32 %v1156, %v1172
  %v1193 = vadd.f32 %v1157, %v1172
  %v1194 = vadd.f32 %v1158, %v1172
  %v1195 = vadd.f32 %v1159, %v1172
  %v1196 = vadd.f32 %v1160, %v1172
  %v1197 = vadd.f32 %v1161, %v1172
  %v1198 = vadd.f32 %v1162, %v1172
  %v1199 = vadd.f32 %v1163, %v1172
  %v1200 = vadd.f32 %v1164, %v1172
  %v1201 = vadd.f32 %v1165, %v1172
  %v1202 = vadd.f32 %v1166, %v1172
  %v1203 = vadd.f32 %v1167, %v1172
  %v1204 = vadd.f32 %v1168, %v1172
  %v1205 = vadd.f32 %v1169, %v1172
  %v1206 = vmax.f32 %v1174, 0.0
  %v1207 = vmax.f32 %v1175, 0.0
  %v1208 = vmax.f32 %v1176, 0.0
  %v1209 = vmax.f32 %v1177, 0.0
  %v1210 = vmax.f32 %v1178, 0.0
  %v1211 = vmax.f32 %v1179, 0.0
  %v1212 = vmax.f32 %v1180, 0.0
  %v1213 = vmax.f32 %v1181, 0.0
  %v1214 = vmax.f32 %v1182, 0.0
  %v1215 = vmax.f32 %v1183, 0.0
  %v1216 = vmax.f32 %v1184, 0.0
  %v1217 = vmax.f32 %v1185, 0.0
  %v1218 = vmax.f32 %v1186, 0.0
  %v1219 = vmax.f32 %v1187, 0.0
  %v1220 = vmax.f32 %v1188, 0.0
  %v1221 = vmax.f32 %v1189, 0.0
  %v1222 = vmax.f32 %v1190, 0.0
  %v1223 = vmax.f32 %v1191, 0.0
  %v1224 = vmax.f32 %v1192, 0.0
  %v1225 = vmax.f32 %v1193, 0.0
  %v1226 = vmax.f32 %v1194, 0.0
  %v1227 = vmax.f32 %v1195, 0.0
  %v1228 = vmax.f32 %v1196, 0.0
  %v1229 = vmax.f32 %v1197, 0.0
  %v1230 = vmax.f32 %v1198, 0.0
  %v1231 = vmax.f32 %v1199, 0.0
  %v1232 = vmax.f32 %v1200, 0.0
  %v1233 = vmax.f32 %v1201, 0.0
  %v1234 = vmax.f32 %v1202, 0.0
  %v1235 = vmax.f32 %v1203, 0.0
  %v1236 = vmax.f32 %v1204, 0.0
  %v1237 = vmax.f32 %v1205, 0.0
  %v1238 = vld [vmem:[%s7] sm:$0xff]
  %v1239 = vld [vmem:[%s7 + $0x8] sm:$0xff]
  %v1240 = vld [vmem:[%s7 + $0x10] sm:$0xff]
  %v1241 = vld [vmem:[%s7 + $0x18] sm:$0xff]
  %vm1242 = vcmask 261120
  %v1244 = vsel %vm1242, %v1206, 0
  %v1247 = vsel %vm1242, %v1207, 0
  %v1250 = vsel %vm1242, %v1208, 0
  %v1253 = vsel %vm1242, %v1209, 0
  %v1256 = vsel %vm1242, %v1210, 0
  %v1259 = vsel %vm1242, %v1211, 0
  %v1262 = vsel %vm1242, %v1212, 0
  %v1265 = vsel %vm1242, %v1213, 0
  %v1268 = vsel %vm1242, %v1214, 0
  %v1271 = vsel %vm1242, %v1215, 0
  %v1274 = vsel %vm1242, %v1216, 0
  %v1277 = vsel %vm1242, %v1217, 0
  %v1280 = vsel %vm1242, %v1218, 0
  %v1283 = vsel %vm1242, %v1219, 0
  %v1286 = vsel %vm1242, %v1220, 0
  %v1289 = vsel %vm1242, %v1221, 0
  %v1292 = vsel %vm1242, %v1222, 0
  %v1295 = vsel %vm1242, %v1223, 0
  %v1298 = vsel %vm1242, %v1224, 0
  %v1301 = vsel %vm1242, %v1225, 0
  %v1304 = vsel %vm1242, %v1226, 0
  %v1307 = vsel %vm1242, %v1227, 0
  %v1310 = vsel %vm1242, %v1228, 0
  %v1313 = vsel %vm1242, %v1229, 0
  %v1316 = vsel %vm1242, %v1230, 0
  %v1319 = vsel %vm1242, %v1231, 0
  %v1322 = vsel %vm1242, %v1232, 0
  %v1325 = vsel %vm1242, %v1233, 0
  %v1328 = vsel %vm1242, %v1234, 0
  %v1331 = vsel %vm1242, %v1235, 0
  %v1334 = vsel %vm1242, %v1236, 0
  %v1337 = vsel %vm1242, %v1237, 0
  %1339 = vmatpush.msra.mxu0 0.0
  %1340 = vmatpush.msra.mxu0 0.0
  %1341 = vmatpush.msra.mxu0 0.0
  %1342 = vmatpush.msra.mxu0 0.0
  %1343 = vmatpush.msra.mxu0 0.0
  %1344 = vmatpush.msra.mxu0 0.0
  %1345 = vmatpush.msra.mxu0 0.0
  %1346 = vmatpush.msra.mxu0 0.0
  %1347 = vmatpush.msra.mxu0 0.0
  %1348 = vmatpush.msra.mxu0 0.0
  %1349 = vmatpush.msra.mxu0 0.0
  %1350 = vmatpush.msra.mxu0 0.0
  %1351 = vmatpush.msra.mxu0 %v1241
  %1352 = vmatpush.msra.mxu0 %v1240
  %1353 = vmatpush.msra.mxu0 %v1239
  %1354 = vmatpush.msra.mxu0 %v1238
  %1355 = vmatmul.f32.gmra.mxu0 %v1244
  %v1356 = vpop.f32.mrf.mxu0
  %v1357 = vadd.f32 0.0, %v1356
  %1358 = vmatmul.f32.gmra.mxu0 %v1247
  %v1359 = vpop.f32.mrf.mxu0
  %v1360 = vadd.f32 0.0, %v1359
  %1361 = vmatmul.f32.gmra.mxu0 %v1250
  %v1362 = vpop.f32.mrf.mxu0
  %v1363 = vadd.f32 0.0, %v1362
  %1364 = vmatmul.f32.gmra.mxu0 %v1253
  %v1365 = vpop.f32.mrf.mxu0
  %v1366 = vadd.f32 0.0, %v1365
  %1367 = vmatmul.f32.gmra.mxu0 %v1256
  %v1368 = vpop.f32.mrf.mxu0
  %v1369 = vadd.f32 0.0, %v1368
  %1370 = vmatmul.f32.gmra.mxu0 %v1259
  %v1371 = vpop.f32.mrf.mxu0
  %v1372 = vadd.f32 0.0, %v1371
  %1373 = vmatmul.f32.gmra.mxu0 %v1262
  %v1374 = vpop.f32.mrf.mxu0
  %v1375 = vadd.f32 0.0, %v1374
  %1376 = vmatmul.f32.gmra.mxu0 %v1265
  %v1377 = vpop.f32.mrf.mxu0
  %v1378 = vadd.f32 0.0, %v1377
  %1379 = vmatmul.f32.gmra.mxu0 %v1268
  %v1380 = vpop.f32.mrf.mxu0
  %v1381 = vadd.f32 0.0, %v1380
  %1382 = vmatmul.f32.gmra.mxu0 %v1271
  %v1383 = vpop.f32.mrf.mxu0
  %v1384 = vadd.f32 0.0, %v1383
  %1385 = vmatmul.f32.gmra.mxu0 %v1274
  %v1386 = vpop.f32.mrf.mxu0
  %v1387 = vadd.f32 0.0, %v1386
  %1388 = vmatmul.f32.gmra.mxu0 %v1277
  %v1389 = vpop.f32.mrf.mxu0
  %v1390 = vadd.f32 0.0, %v1389
  %1391 = vmatmul.f32.gmra.mxu0 %v1280
  %v1392 = vpop.f32.mrf.mxu0
  %v1393 = vadd.f32 0.0, %v1392
  %1394 = vmatmul.f32.gmra.mxu0 %v1283
  %v1395 = vpop.f32.mrf.mxu0
  %v1396 = vadd.f32 0.0, %v1395
  %1397 = vmatmul.f32.gmra.mxu0 %v1286
  %v1398 = vpop.f32.mrf.mxu0
  %v1399 = vadd.f32 0.0, %v1398
  %1400 = vmatmul.f32.gmra.mxu0 %v1289
  %v1401 = vpop.f32.mrf.mxu0
  %v1402 = vadd.f32 0.0, %v1401
  %1403 = vmatmul.f32.gmra.mxu0 %v1292
  %v1404 = vpop.f32.mrf.mxu0
  %v1405 = vadd.f32 0.0, %v1404
  %1406 = vmatmul.f32.gmra.mxu0 %v1295
  %v1407 = vpop.f32.mrf.mxu0
  %v1408 = vadd.f32 0.0, %v1407
  %1409 = vmatmul.f32.gmra.mxu0 %v1298
  %v1410 = vpop.f32.mrf.mxu0
  %v1411 = vadd.f32 0.0, %v1410
  %1412 = vmatmul.f32.gmra.mxu0 %v1301
  %v1413 = vpop.f32.mrf.mxu0
  %v1414 = vadd.f32 0.0, %v1413
  %1415 = vmatmul.f32.gmra.mxu0 %v1304
  %v1416 = vpop.f32.mrf.mxu0
  %v1417 = vadd.f32 0.0, %v1416
  %1418 = vmatmul.f32.gmra.mxu0 %v1307
  %v1419 = vpop.f32.mrf.mxu0
  %v1420 = vadd.f32 0.0, %v1419
  %1421 = vmatmul.f32.gmra.mxu0 %v1310
  %v1422 = vpop.f32.mrf.mxu0
  %v1423 = vadd.f32 0.0, %v1422
  %1424 = vmatmul.f32.gmra.mxu0 %v1313
  %v1425 = vpop.f32.mrf.mxu0
  %v1426 = vadd.f32 0.0, %v1425
  %1427 = vmatmul.f32.gmra.mxu0 %v1316
  %v1428 = vpop.f32.mrf.mxu0
  %v1429 = vadd.f32 0.0, %v1428
  %1430 = vmatmul.f32.gmra.mxu0 %v1319
  %v1431 = vpop.f32.mrf.mxu0
  %v1432 = vadd.f32 0.0, %v1431
  %1433 = vmatmul.f32.gmra.mxu0 %v1322
  %v1434 = vpop.f32.mrf.mxu0
  %v1435 = vadd.f32 0.0, %v1434
  %1436 = vmatmul.f32.gmra.mxu0 %v1325
  %v1437 = vpop.f32.mrf.mxu0
  %v1438 = vadd.f32 0.0, %v1437
  %1439 = vmatmul.f32.gmra.mxu0 %v1328
  %v1440 = vpop.f32.mrf.mxu0
  %v1441 = vadd.f32 0.0, %v1440
  %1442 = vmatmul.f32.gmra.mxu0 %v1331
  %v1443 = vpop.f32.mrf.mxu0
  %v1444 = vadd.f32 0.0, %v1443
  %1445 = vmatmul.f32.gmra.mxu0 %v1334
  %v1446 = vpop.f32.mrf.mxu0
  %v1447 = vadd.f32 0.0, %v1446
  %1448 = vmatmul.f32.gmra.mxu0 %v1337
  %v1449 = vpop.f32.mrf.mxu0
  %v1450 = vadd.f32 0.0, %v1449
  %1451 = vdwg.mxu0
  %v1452 = vrot.slane %v1357, 7
  %v1453 = vrot.slane %v1360, 7
  %v1454 = vrot.slane %v1363, 7
  %v1455 = vrot.slane %v1366, 7
  %v1456 = vrot.slane %v1369, 7
  %v1457 = vrot.slane %v1372, 7
  %v1458 = vrot.slane %v1375, 7
  %v1459 = vrot.slane %v1378, 7
  %v1460 = vrot.slane %v1381, 7
  %v1461 = vrot.slane %v1384, 7
  %v1462 = vrot.slane %v1387, 7
  %v1463 = vrot.slane %v1390, 7
  %v1464 = vrot.slane %v1393, 7
  %v1465 = vrot.slane %v1396, 7
  %v1466 = vrot.slane %v1399, 7
  %v1467 = vrot.slane %v1402, 7
  %v1468 = vrot.slane %v1405, 7
  %v1469 = vrot.slane %v1408, 7
  %v1470 = vrot.slane %v1411, 7
  %v1471 = vrot.slane %v1414, 7
  %v1472 = vrot.slane %v1417, 7
  %v1473 = vrot.slane %v1420, 7
  %v1474 = vrot.slane %v1423, 7
  %v1475 = vrot.slane %v1426, 7
  %v1476 = vrot.slane %v1429, 7
  %v1477 = vrot.slane %v1432, 7
  %v1478 = vrot.slane %v1435, 7
  %v1479 = vrot.slane %v1438, 7
  %v1480 = vrot.slane %v1441, 7
  %v1481 = vrot.slane %v1444, 7
  %v1482 = vrot.slane %v1447, 7
  %v1483 = vrot.slane %v1450, 7
  %v1484 = vsel %vm400, %v1482, %v1483
  %v1485 = vsel %vm400, %v1481, %v1482
  %v1486 = vsel %vm400, %v1480, %v1481
  %v1487 = vsel %vm400, %v1479, %v1480
  %v1488 = vsel %vm400, %v1478, %v1479
  %v1489 = vsel %vm400, %v1477, %v1478
  %v1490 = vsel %vm400, %v1476, %v1477
  %v1491 = vsel %vm400, %v1475, %v1476
  %v1492 = vsel %vm400, %v1474, %v1475
  %v1493 = vsel %vm400, %v1473, %v1474
  %v1494 = vsel %vm400, %v1472, %v1473
  %v1495 = vsel %vm400, %v1471, %v1472
  %v1496 = vsel %vm400, %v1470, %v1471
  %v1497 = vsel %vm400, %v1469, %v1470
  %v1498 = vsel %vm400, %v1468, %v1469
  %v1499 = vsel %vm400, %v1467, %v1468
  %v1500 = vsel %vm400, %v1466, %v1467
  %v1501 = vsel %vm400, %v1465, %v1466
  %v1502 = vsel %vm400, %v1464, %v1465
  %v1503 = vsel %vm400, %v1463, %v1464
  %v1504 = vsel %vm400, %v1462, %v1463
  %v1505 = vsel %vm400, %v1461, %v1462
  %v1506 = vsel %vm400, %v1460, %v1461
  %v1507 = vsel %vm400, %v1459, %v1460
  %v1508 = vsel %vm400, %v1458, %v1459
  %v1509 = vsel %vm400, %v1457, %v1458
  %v1510 = vsel %vm400, %v1456, %v1457
  %v1511 = vsel %vm400, %v1455, %v1456
  %v1512 = vsel %vm400, %v1454, %v1455
  %v1513 = vsel %vm400, %v1453, %v1454
  %v1514 = vsel %vm400, %v1452, %v1453
  %v1515 = vsel %vm400, %v1483, %v1452
  %v1516 = vmul.f32 %v1515, %v436
  %v1517 = vmul.f32 %v1514, %v441
  %v1518 = vmul.f32 %v1513, %v446
  %v1519 = vmul.f32 %v1512, %v451
  %v1520 = vmul.f32 %v1511, %v456
  %v1521 = vmul.f32 %v1510, %v461
  %v1522 = vmul.f32 %v1509, %v466
  %v1523 = vmul.f32 %v1508, %v471
  %v1524 = vmul.f32 %v1507, %v476
  %v1525 = vmul.f32 %v1506, %v481
  %v1526 = vmul.f32 %v1505, %v486
  %v1527 = vmul.f32 %v1504, %v491
  %v1528 = vmul.f32 %v1503, %v496
  %v1529 = vmul.f32 %v1502, %v501
  %v1530 = vmul.f32 %v1501, %v506
  %v1531 = vmul.f32 %v1500, %v511
  %v1532 = vmul.f32 %v1499, %v516
  %v1533 = vmul.f32 %v1498, %v521
  %v1534 = vmul.f32 %v1497, %v526
  %v1535 = vmul.f32 %v1496, %v531
  %v1536 = vmul.f32 %v1495, %v536
  %v1537 = vmul.f32 %v1494, %v541
  %v1538 = vmul.f32 %v1493, %v546
  %v1539 = vmul.f32 %v1492, %v551
  %v1540 = vmul.f32 %v1491, %v556
  %v1541 = vmul.f32 %v1490, %v561
  %v1542 = vmul.f32 %v1489, %v566
  %v1543 = vmul.f32 %v1488, %v571
  %v1544 = vmul.f32 %v1487, %v576
  %v1545 = vmul.f32 %v1486, %v581
  %v1546 = vmul.f32 %v1485, %v586
  %v1547 = vmul.f32 %v1484, %v591
  %1580 = vrot.lane.b32.xlu0 %v1357, 96
  %v1581 = vpop.permute.xlu0 %1580
  %1582 = vrot.lane.b32.xlu0 %v1360, 96
  %v1583 = vpop.permute.xlu0 %1582
  %1584 = vrot.lane.b32.xlu0 %v1363, 96
  %v1585 = vpop.permute.xlu0 %1584
  %1586 = vrot.lane.b32.xlu0 %v1366, 96
  %v1587 = vpop.permute.xlu0 %1586
  %1588 = vrot.lane.b32.xlu0 %v1369, 96
  %v1589 = vpop.permute.xlu0 %1588
  %1590 = vrot.lane.b32.xlu0 %v1372, 96
  %v1591 = vpop.permute.xlu0 %1590
  %1592 = vrot.lane.b32.xlu0 %v1375, 96
  %v1593 = vpop.permute.xlu0 %1592
  %1594 = vrot.lane.b32.xlu0 %v1378, 96
  %v1595 = vpop.permute.xlu0 %1594
  %1596 = vrot.lane.b32.xlu0 %v1381, 96
  %v1597 = vpop.permute.xlu0 %1596
  %1598 = vrot.lane.b32.xlu0 %v1384, 96
  %v1599 = vpop.permute.xlu0 %1598
  %1600 = vrot.lane.b32.xlu0 %v1387, 96
  %v1601 = vpop.permute.xlu0 %1600
  %1602 = vrot.lane.b32.xlu0 %v1390, 96
  %v1603 = vpop.permute.xlu0 %1602
  %1604 = vrot.lane.b32.xlu0 %v1393, 96
  %v1605 = vpop.permute.xlu0 %1604
  %1606 = vrot.lane.b32.xlu0 %v1396, 96
  %v1607 = vpop.permute.xlu0 %1606
  %1608 = vrot.lane.b32.xlu0 %v1399, 96
  %v1609 = vpop.permute.xlu0 %1608
  %1610 = vrot.lane.b32.xlu0 %v1402, 96
  %v1611 = vpop.permute.xlu0 %1610
  %1612 = vrot.lane.b32.xlu0 %v1405, 96
  %v1613 = vpop.permute.xlu0 %1612
  %1614 = vrot.lane.b32.xlu0 %v1408, 96
  %v1615 = vpop.permute.xlu0 %1614
  %1616 = vrot.lane.b32.xlu0 %v1411, 96
  %v1617 = vpop.permute.xlu0 %1616
  %1618 = vrot.lane.b32.xlu0 %v1414, 96
  %v1619 = vpop.permute.xlu0 %1618
  %1620 = vrot.lane.b32.xlu0 %v1417, 96
  %v1621 = vpop.permute.xlu0 %1620
  %1622 = vrot.lane.b32.xlu0 %v1420, 96
  %v1623 = vpop.permute.xlu0 %1622
  %1624 = vrot.lane.b32.xlu0 %v1423, 96
  %v1625 = vpop.permute.xlu0 %1624
  %1626 = vrot.lane.b32.xlu0 %v1426, 96
  %v1627 = vpop.permute.xlu0 %1626
  %1628 = vrot.lane.b32.xlu0 %v1429, 96
  %v1629 = vpop.permute.xlu0 %1628
  %1630 = vrot.lane.b32.xlu0 %v1432, 96
  %v1631 = vpop.permute.xlu0 %1630
  %1632 = vrot.lane.b32.xlu0 %v1435, 96
  %v1633 = vpop.permute.xlu0 %1632
  %1634 = vrot.lane.b32.xlu0 %v1438, 96
  %v1635 = vpop.permute.xlu0 %1634
  %1636 = vrot.lane.b32.xlu0 %v1441, 96
  %v1637 = vpop.permute.xlu0 %1636
  %1638 = vrot.lane.b32.xlu0 %v1444, 96
  %v1639 = vpop.permute.xlu0 %1638
  %1640 = vrot.lane.b32.xlu0 %v1447, 96
  %v1641 = vpop.permute.xlu0 %1640
  %1642 = vrot.lane.b32.xlu0 %v1450, 96
  %v1643 = vpop.permute.xlu0 %1642
  %v1676 = vadd.f32 %v1516, %v1581
  %v1677 = vadd.f32 %v1517, %v1583
  %v1678 = vadd.f32 %v1518, %v1585
  %v1679 = vadd.f32 %v1519, %v1587
  %v1680 = vadd.f32 %v1520, %v1589
  %v1681 = vadd.f32 %v1521, %v1591
  %v1682 = vadd.f32 %v1522, %v1593
  %v1683 = vadd.f32 %v1523, %v1595
  %v1684 = vadd.f32 %v1524, %v1597
  %v1685 = vadd.f32 %v1525, %v1599
  %v1686 = vadd.f32 %v1526, %v1601
  %v1687 = vadd.f32 %v1527, %v1603
  %v1688 = vadd.f32 %v1528, %v1605
  %v1689 = vadd.f32 %v1529, %v1607
  %v1690 = vadd.f32 %v1530, %v1609
  %v1691 = vadd.f32 %v1531, %v1611
  %v1692 = vadd.f32 %v1532, %v1613
  %v1693 = vadd.f32 %v1533, %v1615
  %v1694 = vadd.f32 %v1534, %v1617
  %v1695 = vadd.f32 %v1535, %v1619
  %v1696 = vadd.f32 %v1536, %v1621
  %v1697 = vadd.f32 %v1537, %v1623
  %v1698 = vadd.f32 %v1538, %v1625
  %v1699 = vadd.f32 %v1539, %v1627
  %v1700 = vadd.f32 %v1540, %v1629
  %v1701 = vadd.f32 %v1541, %v1631
  %v1702 = vadd.f32 %v1542, %v1633
  %v1703 = vadd.f32 %v1543, %v1635
  %v1704 = vadd.f32 %v1544, %v1637
  %v1705 = vadd.f32 %v1545, %v1639
  %v1706 = vadd.f32 %v1546, %v1641
  %v1707 = vadd.f32 %v1547, %v1643
  %1708 = vrot.lane.b32.xlu0 %v1357, 64
  %v1709 = vpop.permute.xlu0 %1708
  %1710 = vrot.lane.b32.xlu0 %v1360, 64
  %v1711 = vpop.permute.xlu0 %1710
  %1712 = vrot.lane.b32.xlu0 %v1363, 64
  %v1713 = vpop.permute.xlu0 %1712
  %1714 = vrot.lane.b32.xlu0 %v1366, 64
  %v1715 = vpop.permute.xlu0 %1714
  %1716 = vrot.lane.b32.xlu0 %v1369, 64
  %v1717 = vpop.permute.xlu0 %1716
  %1718 = vrot.lane.b32.xlu0 %v1372, 64
  %v1719 = vpop.permute.xlu0 %1718
  %1720 = vrot.lane.b32.xlu0 %v1375, 64
  %v1721 = vpop.permute.xlu0 %1720
  %1722 = vrot.lane.b32.xlu0 %v1378, 64
  %v1723 = vpop.permute.xlu0 %1722
  %1724 = vrot.lane.b32.xlu0 %v1381, 64
  %v1725 = vpop.permute.xlu0 %1724
  %1726 = vrot.lane.b32.xlu0 %v1384, 64
  %v1727 = vpop.permute.xlu0 %1726
  %1728 = vrot.lane.b32.xlu0 %v1387, 64
  %v1729 = vpop.permute.xlu0 %1728
  %1730 = vrot.lane.b32.xlu0 %v1390, 64
  %v1731 = vpop.permute.xlu0 %1730
  %1732 = vrot.lane.b32.xlu0 %v1393, 64
  %v1733 = vpop.permute.xlu0 %1732
  %1734 = vrot.lane.b32.xlu0 %v1396, 64
  %v1735 = vpop.permute.xlu0 %1734
  %1736 = vrot.lane.b32.xlu0 %v1399, 64
  %v1737 = vpop.permute.xlu0 %1736
  %1738 = vrot.lane.b32.xlu0 %v1402, 64
  %v1739 = vpop.permute.xlu0 %1738
  %1740 = vrot.lane.b32.xlu0 %v1405, 64
  %v1741 = vpop.permute.xlu0 %1740
  %1742 = vrot.lane.b32.xlu0 %v1408, 64
  %v1743 = vpop.permute.xlu0 %1742
  %1744 = vrot.lane.b32.xlu0 %v1411, 64
  %v1745 = vpop.permute.xlu0 %1744
  %1746 = vrot.lane.b32.xlu0 %v1414, 64
  %v1747 = vpop.permute.xlu0 %1746
  %1748 = vrot.lane.b32.xlu0 %v1417, 64
  %v1749 = vpop.permute.xlu0 %1748
  %1750 = vrot.lane.b32.xlu0 %v1420, 64
  %v1751 = vpop.permute.xlu0 %1750
  %1752 = vrot.lane.b32.xlu0 %v1423, 64
  %v1753 = vpop.permute.xlu0 %1752
  %1754 = vrot.lane.b32.xlu0 %v1426, 64
  %v1755 = vpop.permute.xlu0 %1754
  %1756 = vrot.lane.b32.xlu0 %v1429, 64
  %v1757 = vpop.permute.xlu0 %1756
  %1758 = vrot.lane.b32.xlu0 %v1432, 64
  %v1759 = vpop.permute.xlu0 %1758
  %1760 = vrot.lane.b32.xlu0 %v1435, 64
  %v1761 = vpop.permute.xlu0 %1760
  %1762 = vrot.lane.b32.xlu0 %v1438, 64
  %v1763 = vpop.permute.xlu0 %1762
  %1764 = vrot.lane.b32.xlu0 %v1441, 64
  %v1765 = vpop.permute.xlu0 %1764
  %1766 = vrot.lane.b32.xlu0 %v1444, 64
  %v1767 = vpop.permute.xlu0 %1766
  %1768 = vrot.lane.b32.xlu0 %v1447, 64
  %v1769 = vpop.permute.xlu0 %1768
  %1770 = vrot.lane.b32.xlu0 %v1450, 64
  %v1771 = vpop.permute.xlu0 %1770
  %v1804 = vrot.slane %v1709, 1
  %v1805 = vrot.slane %v1711, 1
  %v1806 = vrot.slane %v1713, 1
  %v1807 = vrot.slane %v1715, 1
  %v1808 = vrot.slane %v1717, 1
  %v1809 = vrot.slane %v1719, 1
  %v1810 = vrot.slane %v1721, 1
  %v1811 = vrot.slane %v1723, 1
  %v1812 = vrot.slane %v1725, 1
  %v1813 = vrot.slane %v1727, 1
  %v1814 = vrot.slane %v1729, 1
  %v1815 = vrot.slane %v1731, 1
  %v1816 = vrot.slane %v1733, 1
  %v1817 = vrot.slane %v1735, 1
  %v1818 = vrot.slane %v1737, 1
  %v1819 = vrot.slane %v1739, 1
  %v1820 = vrot.slane %v1741, 1
  %v1821 = vrot.slane %v1743, 1
  %v1822 = vrot.slane %v1745, 1
  %v1823 = vrot.slane %v1747, 1
  %v1824 = vrot.slane %v1749, 1
  %v1825 = vrot.slane %v1751, 1
  %v1826 = vrot.slane %v1753, 1
  %v1827 = vrot.slane %v1755, 1
  %v1828 = vrot.slane %v1757, 1
  %v1829 = vrot.slane %v1759, 1
  %v1830 = vrot.slane %v1761, 1
  %v1831 = vrot.slane %v1763, 1
  %v1832 = vrot.slane %v1765, 1
  %v1833 = vrot.slane %v1767, 1
  %v1834 = vrot.slane %v1769, 1
  %v1835 = vrot.slane %v1771, 1
  %v1836 = vsel %vm913, %v1834, %v1835
  %v1837 = vsel %vm913, %v1833, %v1834
  %v1838 = vsel %vm913, %v1832, %v1833
  %v1839 = vsel %vm913, %v1831, %v1832
  %v1840 = vsel %vm913, %v1830, %v1831
  %v1841 = vsel %vm913, %v1829, %v1830
  %v1842 = vsel %vm913, %v1828, %v1829
  %v1843 = vsel %vm913, %v1827, %v1828
  %v1844 = vsel %vm913, %v1826, %v1827
  %v1845 = vsel %vm913, %v1825, %v1826
  %v1846 = vsel %vm913, %v1824, %v1825
  %v1847 = vsel %vm913, %v1823, %v1824
  %v1848 = vsel %vm913, %v1822, %v1823
  %v1849 = vsel %vm913, %v1821, %v1822
  %v1850 = vsel %vm913, %v1820, %v1821
  %v1851 = vsel %vm913, %v1819, %v1820
  %v1852 = vsel %vm913, %v1818, %v1819
  %v1853 = vsel %vm913, %v1817, %v1818
  %v1854 = vsel %vm913, %v1816, %v1817
  %v1855 = vsel %vm913, %v1815, %v1816
  %v1856 = vsel %vm913, %v1814, %v1815
  %v1857 = vsel %vm913, %v1813, %v1814
  %v1858 = vsel %vm913, %v1812, %v1813
  %v1859 = vsel %vm913, %v1811, %v1812
  %v1860 = vsel %vm913, %v1810, %v1811
  %v1861 = vsel %vm913, %v1809, %v1810
  %v1862 = vsel %vm913, %v1808, %v1809
  %v1863 = vsel %vm913, %v1807, %v1808
  %v1864 = vsel %vm913, %v1806, %v1807
  %v1865 = vsel %vm913, %v1805, %v1806
  %v1866 = vsel %vm913, %v1804, %v1805
  %v1867 = vsel %vm913, %v1835, %v1804
  %v1868 = vmul.f32 %v1866, %v949
  %v1869 = vmul.f32 %v1865, %v954
  %v1870 = vmul.f32 %v1864, %v959
  %v1871 = vmul.f32 %v1863, %v964
  %v1872 = vmul.f32 %v1862, %v969
  %v1873 = vmul.f32 %v1861, %v974
  %v1874 = vmul.f32 %v1860, %v979
  %v1875 = vmul.f32 %v1859, %v984
  %v1876 = vmul.f32 %v1858, %v989
  %v1877 = vmul.f32 %v1857, %v994
  %v1878 = vmul.f32 %v1856, %v999
  %v1879 = vmul.f32 %v1855, %v1004
  %v1880 = vmul.f32 %v1854, %v1009
  %v1881 = vmul.f32 %v1853, %v1014
  %v1882 = vmul.f32 %v1852, %v1019
  %v1883 = vmul.f32 %v1851, %v1024
  %v1884 = vmul.f32 %v1850, %v1029
  %v1885 = vmul.f32 %v1849, %v1034
  %v1886 = vmul.f32 %v1848, %v1039
  %v1887 = vmul.f32 %v1847, %v1044
  %v1888 = vmul.f32 %v1846, %v1049
  %v1889 = vmul.f32 %v1845, %v1054
  %v1890 = vmul.f32 %v1844, %v1059
  %v1891 = vmul.f32 %v1843, %v1064
  %v1892 = vmul.f32 %v1842, %v1069
  %v1893 = vmul.f32 %v1841, %v1074
  %v1894 = vmul.f32 %v1840, %v1079
  %v1895 = vmul.f32 %v1839, %v1084
  %v1896 = vmul.f32 %v1838, %v1089
  %v1897 = vmul.f32 %v1837, %v1094
  %v1898 = vmul.f32 %v1836, %v1099
  %v1899 = vmul.f32 %v1867, %v1104
  %v1900 = vadd.f32 %v1676, %v1868
  %v1901 = vadd.f32 %v1677, %v1869
  %v1902 = vadd.f32 %v1678, %v1870
  %v1903 = vadd.f32 %v1679, %v1871
  %v1904 = vadd.f32 %v1680, %v1872
  %v1905 = vadd.f32 %v1681, %v1873
  %v1906 = vadd.f32 %v1682, %v1874
  %v1907 = vadd.f32 %v1683, %v1875
  %v1908 = vadd.f32 %v1684, %v1876
  %v1909 = vadd.f32 %v1685, %v1877
  %v1910 = vadd.f32 %v1686, %v1878
  %v1911 = vadd.f32 %v1687, %v1879
  %v1912 = vadd.f32 %v1688, %v1880
  %v1913 = vadd.f32 %v1689, %v1881
  %v1914 = vadd.f32 %v1690, %v1882
  %v1915 = vadd.f32 %v1691, %v1883
  %v1916 = vadd.f32 %v1692, %v1884
  %v1917 = vadd.f32 %v1693, %v1885
  %v1918 = vadd.f32 %v1694, %v1886
  %v1919 = vadd.f32 %v1695, %v1887
  %v1920 = vadd.f32 %v1696, %v1888
  %v1921 = vadd.f32 %v1697, %v1889
  %v1922 = vadd.f32 %v1698, %v1890
  %v1923 = vadd.f32 %v1699, %v1891
  %v1924 = vadd.f32 %v1700, %v1892
  %v1925 = vadd.f32 %v1701, %v1893
  %v1926 = vadd.f32 %v1702, %v1894
  %v1927 = vadd.f32 %v1703, %v1895
  %v1928 = vadd.f32 %v1704, %v1896
  %v1929 = vadd.f32 %v1705, %v1897
  %v1930 = vadd.f32 %v1706, %v1898
  %v1931 = vadd.f32 %v1707, %v1899
  %v1932 = vld [vmem:[%s8] sm:$0x1]
  %v1934 = vperm.slane %v1932, 0
  %v1936 = vadd.f32 %v1900, %v1934
  %v1937 = vadd.f32 %v1901, %v1934
  %v1938 = vadd.f32 %v1902, %v1934
  %v1939 = vadd.f32 %v1903, %v1934
  %v1940 = vadd.f32 %v1904, %v1934
  %v1941 = vadd.f32 %v1905, %v1934
  %v1942 = vadd.f32 %v1906, %v1934
  %v1943 = vadd.f32 %v1907, %v1934
  %v1944 = vadd.f32 %v1908, %v1934
  %v1945 = vadd.f32 %v1909, %v1934
  %v1946 = vadd.f32 %v1910, %v1934
  %v1947 = vadd.f32 %v1911, %v1934
  %v1948 = vadd.f32 %v1912, %v1934
  %v1949 = vadd.f32 %v1913, %v1934
  %v1950 = vadd.f32 %v1914, %v1934
  %v1951 = vadd.f32 %v1915, %v1934
  %v1952 = vadd.f32 %v1916, %v1934
  %v1953 = vadd.f32 %v1917, %v1934
  %v1954 = vadd.f32 %v1918, %v1934
  %v1955 = vadd.f32 %v1919, %v1934
  %v1956 = vadd.f32 %v1920, %v1934
  %v1957 = vadd.f32 %v1921, %v1934
  %v1958 = vadd.f32 %v1922, %v1934
  %v1959 = vadd.f32 %v1923, %v1934
  %v1960 = vadd.f32 %v1924, %v1934
  %v1961 = vadd.f32 %v1925, %v1934
  %v1962 = vadd.f32 %v1926, %v1934
  %v1963 = vadd.f32 %v1927, %v1934
  %v1964 = vadd.f32 %v1928, %v1934
  %v1965 = vadd.f32 %v1929, %v1934
  %v1966 = vadd.f32 %v1930, %v1934
  %v1967 = vadd.f32 %v1931, %v1934
  %v1968 = vmax.f32 %v1936, 0.0
  %v1969 = vmax.f32 %v1937, 0.0
  %v1970 = vmax.f32 %v1938, 0.0
  %v1971 = vmax.f32 %v1939, 0.0
  %v1972 = vmax.f32 %v1940, 0.0
  %v1973 = vmax.f32 %v1941, 0.0
  %v1974 = vmax.f32 %v1942, 0.0
  %v1975 = vmax.f32 %v1943, 0.0
  %v1976 = vmax.f32 %v1944, 0.0
  %v1977 = vmax.f32 %v1945, 0.0
  %v1978 = vmax.f32 %v1946, 0.0
  %v1979 = vmax.f32 %v1947, 0.0
  %v1980 = vmax.f32 %v1948, 0.0
  %v1981 = vmax.f32 %v1949, 0.0
  %v1982 = vmax.f32 %v1950, 0.0
  %v1983 = vmax.f32 %v1951, 0.0
  %v1984 = vmax.f32 %v1952, 0.0
  %v1985 = vmax.f32 %v1953, 0.0
  %v1986 = vmax.f32 %v1954, 0.0
  %v1987 = vmax.f32 %v1955, 0.0
  %v1988 = vmax.f32 %v1956, 0.0
  %v1989 = vmax.f32 %v1957, 0.0
  %v1990 = vmax.f32 %v1958, 0.0
  %v1991 = vmax.f32 %v1959, 0.0
  %v1992 = vmax.f32 %v1960, 0.0
  %v1993 = vmax.f32 %v1961, 0.0
  %v1994 = vmax.f32 %v1962, 0.0
  %v1995 = vmax.f32 %v1963, 0.0
  %v1996 = vmax.f32 %v1964, 0.0
  %v1997 = vmax.f32 %v1965, 0.0
  %v1998 = vmax.f32 %v1966, 0.0
  %v1999 = vmax.f32 %v1967, 0.0
  %v2000 = vld [vmem:[%s9] sm:$0xff]
  %v2001 = vld [vmem:[%s9 + $0x8] sm:$0xff]
  %v2002 = vld [vmem:[%s9 + $0x10] sm:$0xff]
  %v2003 = vld [vmem:[%s9 + $0x18] sm:$0xff]
  %v2005 = vsel %vm1242, %v1968, 0
  %v2008 = vsel %vm1242, %v1969, 0
  %v2011 = vsel %vm1242, %v1970, 0
  %v2014 = vsel %vm1242, %v1971, 0
  %v2017 = vsel %vm1242, %v1972, 0
  %v2020 = vsel %vm1242, %v1973, 0
  %v2023 = vsel %vm1242, %v1974, 0
  %v2026 = vsel %vm1242, %v1975, 0
  %v2029 = vsel %vm1242, %v1976, 0
  %v2032 = vsel %vm1242, %v1977, 0
  %v2035 = vsel %vm1242, %v1978, 0
  %v2038 = vsel %vm1242, %v1979, 0
  %v2041 = vsel %vm1242, %v1980, 0
  %v2044 = vsel %vm1242, %v1981, 0
  %v2047 = vsel %vm1242, %v1982, 0
  %v2050 = vsel %vm1242, %v1983, 0
  %v2053 = vsel %vm1242, %v1984, 0
  %v2056 = vsel %vm1242, %v1985, 0
  %v2059 = vsel %vm1242, %v1986, 0
  %v2062 = vsel %vm1242, %v1987, 0
  %v2065 = vsel %vm1242, %v1988, 0
  %v2068 = vsel %vm1242, %v1989, 0
  %v2071 = vsel %vm1242, %v1990, 0
  %v2074 = vsel %vm1242, %v1991, 0
  %v2077 = vsel %vm1242, %v1992, 0
  %v2080 = vsel %vm1242, %v1993, 0
  %v2083 = vsel %vm1242, %v1994, 0
  %v2086 = vsel %vm1242, %v1995, 0
  %v2089 = vsel %vm1242, %v1996, 0
  %v2092 = vsel %vm1242, %v1997, 0
  %v2095 = vsel %vm1242, %v1998, 0
  %v2098 = vsel %vm1242, %v1999, 0
  %2100 = vmatpush.msra.mxu0 0.0
  %2101 = vmatpush.msra.mxu0 0.0
  %2102 = vmatpush.msra.mxu0 0.0
  %2103 = vmatpush.msra.mxu0 0.0
  %2104 = vmatpush.msra.mxu0 0.0
  %2105 = vmatpush.msra.mxu0 0.0
  %2106 = vmatpush.msra.mxu0 0.0
  %2107 = vmatpush.msra.mxu0 0.0
  %2108 = vmatpush.msra.mxu0 0.0
  %2109 = vmatpush.msra.mxu0 0.0
  %2110 = vmatpush.msra.mxu0 0.0
  %2111 = vmatpush.msra.mxu0 0.0
  %2112 = vmatpush.msra.mxu0 %v2003
  %2113 = vmatpush.msra.mxu0 %v2002
  %2114 = vmatpush.msra.mxu0 %v2001
  %2115 = vmatpush.msra.mxu0 %v2000
  %2116 = vmatmul.f32.gmra.mxu0 %v2005
  %v2117 = vpop.f32.mrf.mxu0
  %v2118 = vadd.f32 0.0, %v2117
  %2119 = vmatmul.f32.gmra.mxu0 %v2008
  %v2120 = vpop.f32.mrf.mxu0
  %v2121 = vadd.f32 0.0, %v2120
  %2122 = vmatmul.f32.gmra.mxu0 %v2011
  %v2123 = vpop.f32.mrf.mxu0
  %v2124 = vadd.f32 0.0, %v2123
  %2125 = vmatmul.f32.gmra.mxu0 %v2014
  %v2126 = vpop.f32.mrf.mxu0
  %v2127 = vadd.f32 0.0, %v2126
  %2128 = vmatmul.f32.gmra.mxu0 %v2017
  %v2129 = vpop.f32.mrf.mxu0
  %v2130 = vadd.f32 0.0, %v2129
  %2131 = vmatmul.f32.gmra.mxu0 %v2020
  %v2132 = vpop.f32.mrf.mxu0
  %v2133 = vadd.f32 0.0, %v2132
  %2134 = vmatmul.f32.gmra.mxu0 %v2023
  %v2135 = vpop.f32.mrf.mxu0
  %v2136 = vadd.f32 0.0, %v2135
  %2137 = vmatmul.f32.gmra.mxu0 %v2026
  %v2138 = vpop.f32.mrf.mxu0
  %v2139 = vadd.f32 0.0, %v2138
  %2140 = vmatmul.f32.gmra.mxu0 %v2029
  %v2141 = vpop.f32.mrf.mxu0
  %v2142 = vadd.f32 0.0, %v2141
  %2143 = vmatmul.f32.gmra.mxu0 %v2032
  %v2144 = vpop.f32.mrf.mxu0
  %v2145 = vadd.f32 0.0, %v2144
  %2146 = vmatmul.f32.gmra.mxu0 %v2035
  %v2147 = vpop.f32.mrf.mxu0
  %v2148 = vadd.f32 0.0, %v2147
  %2149 = vmatmul.f32.gmra.mxu0 %v2038
  %v2150 = vpop.f32.mrf.mxu0
  %v2151 = vadd.f32 0.0, %v2150
  %2152 = vmatmul.f32.gmra.mxu0 %v2041
  %v2153 = vpop.f32.mrf.mxu0
  %v2154 = vadd.f32 0.0, %v2153
  %2155 = vmatmul.f32.gmra.mxu0 %v2044
  %v2156 = vpop.f32.mrf.mxu0
  %v2157 = vadd.f32 0.0, %v2156
  %2158 = vmatmul.f32.gmra.mxu0 %v2047
  %v2159 = vpop.f32.mrf.mxu0
  %v2160 = vadd.f32 0.0, %v2159
  %2161 = vmatmul.f32.gmra.mxu0 %v2050
  %v2162 = vpop.f32.mrf.mxu0
  %v2163 = vadd.f32 0.0, %v2162
  %2164 = vmatmul.f32.gmra.mxu0 %v2053
  %v2165 = vpop.f32.mrf.mxu0
  %v2166 = vadd.f32 0.0, %v2165
  %2167 = vmatmul.f32.gmra.mxu0 %v2056
  %v2168 = vpop.f32.mrf.mxu0
  %v2169 = vadd.f32 0.0, %v2168
  %2170 = vmatmul.f32.gmra.mxu0 %v2059
  %v2171 = vpop.f32.mrf.mxu0
  %v2172 = vadd.f32 0.0, %v2171
  %2173 = vmatmul.f32.gmra.mxu0 %v2062
  %v2174 = vpop.f32.mrf.mxu0
  %v2175 = vadd.f32 0.0, %v2174
  %2176 = vmatmul.f32.gmra.mxu0 %v2065
  %v2177 = vpop.f32.mrf.mxu0
  %v2178 = vadd.f32 0.0, %v2177
  %2179 = vmatmul.f32.gmra.mxu0 %v2068
  %v2180 = vpop.f32.mrf.mxu0
  %v2181 = vadd.f32 0.0, %v2180
  %2182 = vmatmul.f32.gmra.mxu0 %v2071
  %v2183 = vpop.f32.mrf.mxu0
  %v2184 = vadd.f32 0.0, %v2183
  %2185 = vmatmul.f32.gmra.mxu0 %v2074
  %v2186 = vpop.f32.mrf.mxu0
  %v2187 = vadd.f32 0.0, %v2186
  %2188 = vmatmul.f32.gmra.mxu0 %v2077
  %v2189 = vpop.f32.mrf.mxu0
  %v2190 = vadd.f32 0.0, %v2189
  %2191 = vmatmul.f32.gmra.mxu0 %v2080
  %v2192 = vpop.f32.mrf.mxu0
  %v2193 = vadd.f32 0.0, %v2192
  %2194 = vmatmul.f32.gmra.mxu0 %v2083
  %v2195 = vpop.f32.mrf.mxu0
  %v2196 = vadd.f32 0.0, %v2195
  %2197 = vmatmul.f32.gmra.mxu0 %v2086
  %v2198 = vpop.f32.mrf.mxu0
  %v2199 = vadd.f32 0.0, %v2198
  %2200 = vmatmul.f32.gmra.mxu0 %v2089
  %v2201 = vpop.f32.mrf.mxu0
  %v2202 = vadd.f32 0.0, %v2201
  %2203 = vmatmul.f32.gmra.mxu0 %v2092
  %v2204 = vpop.f32.mrf.mxu0
  %v2205 = vadd.f32 0.0, %v2204
  %2206 = vmatmul.f32.gmra.mxu0 %v2095
  %v2207 = vpop.f32.mrf.mxu0
  %v2208 = vadd.f32 0.0, %v2207
  %2209 = vmatmul.f32.gmra.mxu0 %v2098
  %v2210 = vpop.f32.mrf.mxu0
  %v2211 = vadd.f32 0.0, %v2210
  %2212 = vdwg.mxu0
  %v2213 = vrot.slane %v2118, 7
  %v2214 = vrot.slane %v2121, 7
  %v2215 = vrot.slane %v2124, 7
  %v2216 = vrot.slane %v2127, 7
  %v2217 = vrot.slane %v2130, 7
  %v2218 = vrot.slane %v2133, 7
  %v2219 = vrot.slane %v2136, 7
  %v2220 = vrot.slane %v2139, 7
  %v2221 = vrot.slane %v2142, 7
  %v2222 = vrot.slane %v2145, 7
  %v2223 = vrot.slane %v2148, 7
  %v2224 = vrot.slane %v2151, 7
  %v2225 = vrot.slane %v2154, 7
  %v2226 = vrot.slane %v2157, 7
  %v2227 = vrot.slane %v2160, 7
  %v2228 = vrot.slane %v2163, 7
  %v2229 = vrot.slane %v2166, 7
  %v2230 = vrot.slane %v2169, 7
  %v2231 = vrot.slane %v2172, 7
  %v2232 = vrot.slane %v2175, 7
  %v2233 = vrot.slane %v2178, 7
  %v2234 = vrot.slane %v2181, 7
  %v2235 = vrot.slane %v2184, 7
  %v2236 = vrot.slane %v2187, 7
  %v2237 = vrot.slane %v2190, 7
  %v2238 = vrot.slane %v2193, 7
  %v2239 = vrot.slane %v2196, 7
  %v2240 = vrot.slane %v2199, 7
  %v2241 = vrot.slane %v2202, 7
  %v2242 = vrot.slane %v2205, 7
  %v2243 = vrot.slane %v2208, 7
  %v2244 = vrot.slane %v2211, 7
  %v2245 = vsel %vm400, %v2243, %v2244
  %v2246 = vsel %vm400, %v2242, %v2243
  %v2247 = vsel %vm400, %v2241, %v2242
  %v2248 = vsel %vm400, %v2240, %v2241
  %v2249 = vsel %vm400, %v2239, %v2240
  %v2250 = vsel %vm400, %v2238, %v2239
  %v2251 = vsel %vm400, %v2237, %v2238
  %v2252 = vsel %vm400, %v2236, %v2237
  %v2253 = vsel %vm400, %v2235, %v2236
  %v2254 = vsel %vm400, %v2234, %v2235
  %v2255 = vsel %vm400, %v2233, %v2234
  %v2256 = vsel %vm400, %v2232, %v2233
  %v2257 = vsel %vm400, %v2231, %v2232
  %v2258 = vsel %vm400, %v2230, %v2231
  %v2259 = vsel %vm400, %v2229, %v2230
  %v2260 = vsel %vm400, %v2228, %v2229
  %v2261 = vsel %vm400, %v2227, %v2228
  %v2262 = vsel %vm400, %v2226, %v2227
  %v2263 = vsel %vm400, %v2225, %v2226
  %v2264 = vsel %vm400, %v2224, %v2225
  %v2265 = vsel %vm400, %v2223, %v2224
  %v2266 = vsel %vm400, %v2222, %v2223
  %v2267 = vsel %vm400, %v2221, %v2222
  %v2268 = vsel %vm400, %v2220, %v2221
  %v2269 = vsel %vm400, %v2219, %v2220
  %v2270 = vsel %vm400, %v2218, %v2219
  %v2271 = vsel %vm400, %v2217, %v2218
  %v2272 = vsel %vm400, %v2216, %v2217
  %v2273 = vsel %vm400, %v2215, %v2216
  %v2274 = vsel %vm400, %v2214, %v2215
  %v2275 = vsel %vm400, %v2213, %v2214
  %v2276 = vsel %vm400, %v2244, %v2213
  %v2277 = vmul.f32 %v2276, %v436
  %v2278 = vmul.f32 %v2275, %v441
  %v2279 = vmul.f32 %v2274, %v446
  %v2280 = vmul.f32 %v2273, %v451
  %v2281 = vmul.f32 %v2272, %v456
  %v2282 = vmul.f32 %v2271, %v461
  %v2283 = vmul.f32 %v2270, %v466
  %v2284 = vmul.f32 %v2269, %v471
  %v2285 = vmul.f32 %v2268, %v476
  %v2286 = vmul.f32 %v2267, %v481
  %v2287 = vmul.f32 %v2266, %v486
  %v2288 = vmul.f32 %v2265, %v491
  %v2289 = vmul.f32 %v2264, %v496
  %v2290 = vmul.f32 %v2263, %v501
  %v2291 = vmul.f32 %v2262, %v506
  %v2292 = vmul.f32 %v2261, %v511
  %v2293 = vmul.f32 %v2260, %v516
  %v2294 = vmul.f32 %v2259, %v521
  %v2295 = vmul.f32 %v2258, %v526
  %v2296 = vmul.f32 %v2257, %v531
  %v2297 = vmul.f32 %v2256, %v536
  %v2298 = vmul.f32 %v2255, %v541
  %v2299 = vmul.f32 %v2254, %v546
  %v2300 = vmul.f32 %v2253, %v551
  %v2301 = vmul.f32 %v2252, %v556
  %v2302 = vmul.f32 %v2251, %v561
  %v2303 = vmul.f32 %v2250, %v566
  %v2304 = vmul.f32 %v2249, %v571
  %v2305 = vmul.f32 %v2248, %v576
  %v2306 = vmul.f32 %v2247, %v581
  %v2307 = vmul.f32 %v2246, %v586
  %v2308 = vmul.f32 %v2245, %v591
  %2341 = vrot.lane.b32.xlu0 %v2118, 96
  %v2342 = vpop.permute.xlu0 %2341
  %2343 = vrot.lane.b32.xlu0 %v2121, 96
  %v2344 = vpop.permute.xlu0 %2343
  %2345 = vrot.lane.b32.xlu0 %v2124, 96
  %v2346 = vpop.permute.xlu0 %2345
  %2347 = vrot.lane.b32.xlu0 %v2127, 96
  %v2348 = vpop.permute.xlu0 %2347
  %2349 = vrot.lane.b32.xlu0 %v2130, 96
  %v2350 = vpop.permute.xlu0 %2349
  %2351 = vrot.lane.b32.xlu0 %v2133, 96
  %v2352 = vpop.permute.xlu0 %2351
  %2353 = vrot.lane.b32.xlu0 %v2136, 96
  %v2354 = vpop.permute.xlu0 %2353
  %2355 = vrot.lane.b32.xlu0 %v2139, 96
  %v2356 = vpop.permute.xlu0 %2355
  %2357 = vrot.lane.b32.xlu0 %v2142, 96
  %v2358 = vpop.permute.xlu0 %2357
  %2359 = vrot.lane.b32.xlu0 %v2145, 96
  %v2360 = vpop.permute.xlu0 %2359
  %2361 = vrot.lane.b32.xlu0 %v2148, 96
  %v2362 = vpop.permute.xlu0 %2361
  %2363 = vrot.lane.b32.xlu0 %v2151, 96
  %v2364 = vpop.permute.xlu0 %2363
  %2365 = vrot.lane.b32.xlu0 %v2154, 96
  %v2366 = vpop.permute.xlu0 %2365
  %2367 = vrot.lane.b32.xlu0 %v2157, 96
  %v2368 = vpop.permute.xlu0 %2367
  %2369 = vrot.lane.b32.xlu0 %v2160, 96
  %v2370 = vpop.permute.xlu0 %2369
  %2371 = vrot.lane.b32.xlu0 %v2163, 96
  %v2372 = vpop.permute.xlu0 %2371
  %2373 = vrot.lane.b32.xlu0 %v2166, 96
  %v2374 = vpop.permute.xlu0 %2373
  %2375 = vrot.lane.b32.xlu0 %v2169, 96
  %v2376 = vpop.permute.xlu0 %2375
  %2377 = vrot.lane.b32.xlu0 %v2172, 96
  %v2378 = vpop.permute.xlu0 %2377
  %2379 = vrot.lane.b32.xlu0 %v2175, 96
  %v2380 = vpop.permute.xlu0 %2379
  %2381 = vrot.lane.b32.xlu0 %v2178, 96
  %v2382 = vpop.permute.xlu0 %2381
  %2383 = vrot.lane.b32.xlu0 %v2181, 96
  %v2384 = vpop.permute.xlu0 %2383
  %2385 = vrot.lane.b32.xlu0 %v2184, 96
  %v2386 = vpop.permute.xlu0 %2385
  %2387 = vrot.lane.b32.xlu0 %v2187, 96
  %v2388 = vpop.permute.xlu0 %2387
  %2389 = vrot.lane.b32.xlu0 %v2190, 96
  %v2390 = vpop.permute.xlu0 %2389
  %2391 = vrot.lane.b32.xlu0 %v2193, 96
  %v2392 = vpop.permute.xlu0 %2391
  %2393 = vrot.lane.b32.xlu0 %v2196, 96
  %v2394 = vpop.permute.xlu0 %2393
  %2395 = vrot.lane.b32.xlu0 %v2199, 96
  %v2396 = vpop.permute.xlu0 %2395
  %2397 = vrot.lane.b32.xlu0 %v2202, 96
  %v2398 = vpop.permute.xlu0 %2397
  %2399 = vrot.lane.b32.xlu0 %v2205, 96
  %v2400 = vpop.permute.xlu0 %2399
  %2401 = vrot.lane.b32.xlu0 %v2208, 96
  %v2402 = vpop.permute.xlu0 %2401
  %2403 = vrot.lane.b32.xlu0 %v2211, 96
  %v2404 = vpop.permute.xlu0 %2403
  %v2437 = vadd.f32 %v2277, %v2342
  %v2438 = vadd.f32 %v2278, %v2344
  %v2439 = vadd.f32 %v2279, %v2346
  %v2440 = vadd.f32 %v2280, %v2348
  %v2441 = vadd.f32 %v2281, %v2350
  %v2442 = vadd.f32 %v2282, %v2352
  %v2443 = vadd.f32 %v2283, %v2354
  %v2444 = vadd.f32 %v2284, %v2356
  %v2445 = vadd.f32 %v2285, %v2358
  %v2446 = vadd.f32 %v2286, %v2360
  %v2447 = vadd.f32 %v2287, %v2362
  %v2448 = vadd.f32 %v2288, %v2364
  %v2449 = vadd.f32 %v2289, %v2366
  %v2450 = vadd.f32 %v2290, %v2368
  %v2451 = vadd.f32 %v2291, %v2370
  %v2452 = vadd.f32 %v2292, %v2372
  %v2453 = vadd.f32 %v2293, %v2374
  %v2454 = vadd.f32 %v2294, %v2376
  %v2455 = vadd.f32 %v2295, %v2378
  %v2456 = vadd.f32 %v2296, %v2380
  %v2457 = vadd.f32 %v2297, %v2382
  %v2458 = vadd.f32 %v2298, %v2384
  %v2459 = vadd.f32 %v2299, %v2386
  %v2460 = vadd.f32 %v2300, %v2388
  %v2461 = vadd.f32 %v2301, %v2390
  %v2462 = vadd.f32 %v2302, %v2392
  %v2463 = vadd.f32 %v2303, %v2394
  %v2464 = vadd.f32 %v2304, %v2396
  %v2465 = vadd.f32 %v2305, %v2398
  %v2466 = vadd.f32 %v2306, %v2400
  %v2467 = vadd.f32 %v2307, %v2402
  %v2468 = vadd.f32 %v2308, %v2404
  %2469 = vrot.lane.b32.xlu0 %v2118, 64
  %v2470 = vpop.permute.xlu0 %2469
  %2471 = vrot.lane.b32.xlu0 %v2121, 64
  %v2472 = vpop.permute.xlu0 %2471
  %2473 = vrot.lane.b32.xlu0 %v2124, 64
  %v2474 = vpop.permute.xlu0 %2473
  %2475 = vrot.lane.b32.xlu0 %v2127, 64
  %v2476 = vpop.permute.xlu0 %2475
  %2477 = vrot.lane.b32.xlu0 %v2130, 64
  %v2478 = vpop.permute.xlu0 %2477
  %2479 = vrot.lane.b32.xlu0 %v2133, 64
  %v2480 = vpop.permute.xlu0 %2479
  %2481 = vrot.lane.b32.xlu0 %v2136, 64
  %v2482 = vpop.permute.xlu0 %2481
  %2483 = vrot.lane.b32.xlu0 %v2139, 64
  %v2484 = vpop.permute.xlu0 %2483
  %2485 = vrot.lane.b32.xlu0 %v2142, 64
  %v2486 = vpop.permute.xlu0 %2485
  %2487 = vrot.lane.b32.xlu0 %v2145, 64
  %v2488 = vpop.permute.xlu0 %2487
  %2489 = vrot.lane.b32.xlu0 %v2148, 64
  %v2490 = vpop.permute.xlu0 %2489
  %2491 = vrot.lane.b32.xlu0 %v2151, 64
  %v2492 = vpop.permute.xlu0 %2491
  %2493 = vrot.lane.b32.xlu0 %v2154, 64
  %v2494 = vpop.permute.xlu0 %2493
  %2495 = vrot.lane.b32.xlu0 %v2157, 64
  %v2496 = vpop.permute.xlu0 %2495
  %2497 = vrot.lane.b32.xlu0 %v2160, 64
  %v2498 = vpop.permute.xlu0 %2497
  %2499 = vrot.lane.b32.xlu0 %v2163, 64
  %v2500 = vpop.permute.xlu0 %2499
  %2501 = vrot.lane.b32.xlu0 %v2166, 64
  %v2502 = vpop.permute.xlu0 %2501
  %2503 = vrot.lane.b32.xlu0 %v2169, 64
  %v2504 = vpop.permute.xlu0 %2503
  %2505 = vrot.lane.b32.xlu0 %v2172, 64
  %v2506 = vpop.permute.xlu0 %2505
  %2507 = vrot.lane.b32.xlu0 %v2175, 64
  %v2508 = vpop.permute.xlu0 %2507
  %2509 = vrot.lane.b32.xlu0 %v2178, 64
  %v2510 = vpop.permute.xlu0 %2509
  %2511 = vrot.lane.b32.xlu0 %v2181, 64
  %v2512 = vpop.permute.xlu0 %2511
  %2513 = vrot.lane.b32.xlu0 %v2184, 64
  %v2514 = vpop.permute.xlu0 %2513
  %2515 = vrot.lane.b32.xlu0 %v2187, 64
  %v2516 = vpop.permute.xlu0 %2515
  %2517 = vrot.lane.b32.xlu0 %v2190, 64
  %v2518 = vpop.permute.xlu0 %2517
  %2519 = vrot.lane.b32.xlu0 %v2193, 64
  %v2520 = vpop.permute.xlu0 %2519
  %2521 = vrot.lane.b32.xlu0 %v2196, 64
  %v2522 = vpop.permute.xlu0 %2521
  %2523 = vrot.lane.b32.xlu0 %v2199, 64
  %v2524 = vpop.permute.xlu0 %2523
  %2525 = vrot.lane.b32.xlu0 %v2202, 64
  %v2526 = vpop.permute.xlu0 %2525
  %2527 = vrot.lane.b32.xlu0 %v2205, 64
  %v2528 = vpop.permute.xlu0 %2527
  %2529 = vrot.lane.b32.xlu0 %v2208, 64
  %v2530 = vpop.permute.xlu0 %2529
  %2531 = vrot.lane.b32.xlu0 %v2211, 64
  %v2532 = vpop.permute.xlu0 %2531
  %v2565 = vrot.slane %v2470, 1
  %v2566 = vrot.slane %v2472, 1
  %v2567 = vrot.slane %v2474, 1
  %v2568 = vrot.slane %v2476, 1
  %v2569 = vrot.slane %v2478, 1
  %v2570 = vrot.slane %v2480, 1
  %v2571 = vrot.slane %v2482, 1
  %v2572 = vrot.slane %v2484, 1
  %v2573 = vrot.slane %v2486, 1
  %v2574 = vrot.slane %v2488, 1
  %v2575 = vrot.slane %v2490, 1
  %v2576 = vrot.slane %v2492, 1
  %v2577 = vrot.slane %v2494, 1
  %v2578 = vrot.slane %v2496, 1
  %v2579 = vrot.slane %v2498, 1
  %v2580 = vrot.slane %v2500, 1
  %v2581 = vrot.slane %v2502, 1
  %v2582 = vrot.slane %v2504, 1
  %v2583 = vrot.slane %v2506, 1
  %v2584 = vrot.slane %v2508, 1
  %v2585 = vrot.slane %v2510, 1
  %v2586 = vrot.slane %v2512, 1
  %v2587 = vrot.slane %v2514, 1
  %v2588 = vrot.slane %v2516, 1
  %v2589 = vrot.slane %v2518, 1
  %v2590 = vrot.slane %v2520, 1
  %v2591 = vrot.slane %v2522, 1
  %v2592 = vrot.slane %v2524, 1
  %v2593 = vrot.slane %v2526, 1
  %v2594 = vrot.slane %v2528, 1
  %v2595 = vrot.slane %v2530, 1
  %v2596 = vrot.slane %v2532, 1
  %v2597 = vsel %vm913, %v2595, %v2596
  %v2598 = vsel %vm913, %v2594, %v2595
  %v2599 = vsel %vm913, %v2593, %v2594
  %v2600 = vsel %vm913, %v2592, %v2593
  %v2601 = vsel %vm913, %v2591, %v2592
  %v2602 = vsel %vm913, %v2590, %v2591
  %v2603 = vsel %vm913, %v2589, %v2590
  %v2604 = vsel %vm913, %v2588, %v2589
  %v2605 = vsel %vm913, %v2587, %v2588
  %v2606 = vsel %vm913, %v2586, %v2587
  %v2607 = vsel %vm913, %v2585, %v2586
  %v2608 = vsel %vm913, %v2584, %v2585
  %v2609 = vsel %vm913, %v2583, %v2584
  %v2610 = vsel %vm913, %v2582, %v2583
  %v2611 = vsel %vm913, %v2581, %v2582
  %v2612 = vsel %vm913, %v2580, %v2581
  %v2613 = vsel %vm913, %v2579, %v2580
  %v2614 = vsel %vm913, %v2578, %v2579
  %v2615 = vsel %vm913, %v2577, %v2578
  %v2616 = vsel %vm913, %v2576, %v2577
  %v2617 = vsel %vm913, %v2575, %v2576
  %v2618 = vsel %vm913, %v2574, %v2575
  %v2619 = vsel %vm913, %v2573, %v2574
  %v2620 = vsel %vm913, %v2572, %v2573
  %v2621 = vsel %vm913, %v2571, %v2572
  %v2622 = vsel %vm913, %v2570, %v2571
  %v2623 = vsel %vm913, %v2569, %v2570
  %v2624 = vsel %vm913, %v2568, %v2569
  %v2625 = vsel %vm913, %v2567, %v2568
  %v2626 = vsel %vm913, %v2566, %v2567
  %v2627 = vsel %vm913, %v2565, %v2566
  %v2628 = vsel %vm913, %v2596, %v2565
  %v2629 = vmul.f32 %v2627, %v949
  %v2630 = vmul.f32 %v2626, %v954
  %v2631 = vmul.f32 %v2625, %v959
  %v2632 = vmul.f32 %v2624, %v964
  %v2633 = vmul.f32 %v2623, %v969
  %v2634 = vmul.f32 %v2622, %v974
  %v2635 = vmul.f32 %v2621, %v979
  %v2636 = vmul.f32 %v2620, %v984
  %v2637 = vmul.f32 %v2619, %v989
  %v2638 = vmul.f32 %v2618, %v994
  %v2639 = vmul.f32 %v2617, %v999
  %v2640 = vmul.f32 %v2616, %v1004
  %v2641 = vmul.f32 %v2615, %v1009
  %v2642 = vmul.f32 %v2614, %v1014
  %v2643 = vmul.f32 %v2613, %v1019
  %v2644 = vmul.f32 %v2612, %v1024
  %v2645 = vmul.f32 %v2611, %v1029
  %v2646 = vmul.f32 %v2610, %v1034
  %v2647 = vmul.f32 %v2609, %v1039
  %v2648 = vmul.f32 %v2608, %v1044
  %v2649 = vmul.f32 %v2607, %v1049
  %v2650 = vmul.f32 %v2606, %v1054
  %v2651 = vmul.f32 %v2605, %v1059
  %v2652 = vmul.f32 %v2604, %v1064
  %v2653 = vmul.f32 %v2603, %v1069
  %v2654 = vmul.f32 %v2602, %v1074
  %v2655 = vmul.f32 %v2601, %v1079
  %v2656 = vmul.f32 %v2600, %v1084
  %v2657 = vmul.f32 %v2599, %v1089
  %v2658 = vmul.f32 %v2598, %v1094
  %v2659 = vmul.f32 %v2597, %v1099
  %v2660 = vmul.f32 %v2628, %v1104
  %v2661 = vadd.f32 %v2437, %v2629
  %v2662 = vadd.f32 %v2438, %v2630
  %v2663 = vadd.f32 %v2439, %v2631
  %v2664 = vadd.f32 %v2440, %v2632
  %v2665 = vadd.f32 %v2441, %v2633
  %v2666 = vadd.f32 %v2442, %v2634
  %v2667 = vadd.f32 %v2443, %v2635
  %v2668 = vadd.f32 %v2444, %v2636
  %v2669 = vadd.f32 %v2445, %v2637
  %v2670 = vadd.f32 %v2446, %v2638
  %v2671 = vadd.f32 %v2447, %v2639
  %v2672 = vadd.f32 %v2448, %v2640
  %v2673 = vadd.f32 %v2449, %v2641
  %v2674 = vadd.f32 %v2450, %v2642
  %v2675 = vadd.f32 %v2451, %v2643
  %v2676 = vadd.f32 %v2452, %v2644
  %v2677 = vadd.f32 %v2453, %v2645
  %v2678 = vadd.f32 %v2454, %v2646
  %v2679 = vadd.f32 %v2455, %v2647
  %v2680 = vadd.f32 %v2456, %v2648
  %v2681 = vadd.f32 %v2457, %v2649
  %v2682 = vadd.f32 %v2458, %v2650
  %v2683 = vadd.f32 %v2459, %v2651
  %v2684 = vadd.f32 %v2460, %v2652
  %v2685 = vadd.f32 %v2461, %v2653
  %v2686 = vadd.f32 %v2462, %v2654
  %v2687 = vadd.f32 %v2463, %v2655
  %v2688 = vadd.f32 %v2464, %v2656
  %v2689 = vadd.f32 %v2465, %v2657
  %v2690 = vadd.f32 %v2466, %v2658
  %v2691 = vadd.f32 %v2467, %v2659
  %v2692 = vadd.f32 %v2468, %v2660
  %v2693 = vld [vmem:[%s10] sm:$0x1]
  %v2695 = vperm.slane %v2693, 0
  %v2697 = vadd.f32 %v2661, %v2695
  %v2698 = vadd.f32 %v2662, %v2695
  %v2699 = vadd.f32 %v2663, %v2695
  %v2700 = vadd.f32 %v2664, %v2695
  %v2701 = vadd.f32 %v2665, %v2695
  %v2702 = vadd.f32 %v2666, %v2695
  %v2703 = vadd.f32 %v2667, %v2695
  %v2704 = vadd.f32 %v2668, %v2695
  %v2705 = vadd.f32 %v2669, %v2695
  %v2706 = vadd.f32 %v2670, %v2695
  %v2707 = vadd.f32 %v2671, %v2695
  %v2708 = vadd.f32 %v2672, %v2695
  %v2709 = vadd.f32 %v2673, %v2695
  %v2710 = vadd.f32 %v2674, %v2695
  %v2711 = vadd.f32 %v2675, %v2695
  %v2712 = vadd.f32 %v2676, %v2695
  %v2713 = vadd.f32 %v2677, %v2695
  %v2714 = vadd.f32 %v2678, %v2695
  %v2715 = vadd.f32 %v2679, %v2695
  %v2716 = vadd.f32 %v2680, %v2695
  %v2717 = vadd.f32 %v2681, %v2695
  %v2718 = vadd.f32 %v2682, %v2695
  %v2719 = vadd.f32 %v2683, %v2695
  %v2720 = vadd.f32 %v2684, %v2695
  %v2721 = vadd.f32 %v2685, %v2695
  %v2722 = vadd.f32 %v2686, %v2695
  %v2723 = vadd.f32 %v2687, %v2695
  %v2724 = vadd.f32 %v2688, %v2695
  %v2725 = vadd.f32 %v2689, %v2695
  %v2726 = vadd.f32 %v2690, %v2695
  %v2727 = vadd.f32 %v2691, %v2695
  %v2728 = vadd.f32 %v2692, %v2695
  %v2729 = vmax.f32 %v2697, 0.0
  %v2730 = vmax.f32 %v2698, 0.0
  %v2731 = vmax.f32 %v2699, 0.0
  %v2732 = vmax.f32 %v2700, 0.0
  %v2733 = vmax.f32 %v2701, 0.0
  %v2734 = vmax.f32 %v2702, 0.0
  %v2735 = vmax.f32 %v2703, 0.0
  %v2736 = vmax.f32 %v2704, 0.0
  %v2737 = vmax.f32 %v2705, 0.0
  %v2738 = vmax.f32 %v2706, 0.0
  %v2739 = vmax.f32 %v2707, 0.0
  %v2740 = vmax.f32 %v2708, 0.0
  %v2741 = vmax.f32 %v2709, 0.0
  %v2742 = vmax.f32 %v2710, 0.0
  %v2743 = vmax.f32 %v2711, 0.0
  %v2744 = vmax.f32 %v2712, 0.0
  %v2745 = vmax.f32 %v2713, 0.0
  %v2746 = vmax.f32 %v2714, 0.0
  %v2747 = vmax.f32 %v2715, 0.0
  %v2748 = vmax.f32 %v2716, 0.0
  %v2749 = vmax.f32 %v2717, 0.0
  %v2750 = vmax.f32 %v2718, 0.0
  %v2751 = vmax.f32 %v2719, 0.0
  %v2752 = vmax.f32 %v2720, 0.0
  %v2753 = vmax.f32 %v2721, 0.0
  %v2754 = vmax.f32 %v2722, 0.0
  %v2755 = vmax.f32 %v2723, 0.0
  %v2756 = vmax.f32 %v2724, 0.0
  %v2757 = vmax.f32 %v2725, 0.0
  %v2758 = vmax.f32 %v2726, 0.0
  %v2759 = vmax.f32 %v2727, 0.0
  %v2760 = vmax.f32 %v2728, 0.0
  %v2761 = vld [vmem:[%s11] sm:$0xff]
  %v2762 = vld [vmem:[%s11 + $0x8] sm:$0xff]
  %v2763 = vld [vmem:[%s11 + $0x10] sm:$0xff]
  %v2764 = vld [vmem:[%s11 + $0x18] sm:$0xff]
  %v2766 = vsel %vm1242, %v2729, 0
  %v2769 = vsel %vm1242, %v2730, 0
  %v2772 = vsel %vm1242, %v2731, 0
  %v2775 = vsel %vm1242, %v2732, 0
  %v2778 = vsel %vm1242, %v2733, 0
  %v2781 = vsel %vm1242, %v2734, 0
  %v2784 = vsel %vm1242, %v2735, 0
  %v2787 = vsel %vm1242, %v2736, 0
  %v2790 = vsel %vm1242, %v2737, 0
  %v2793 = vsel %vm1242, %v2738, 0
  %v2796 = vsel %vm1242, %v2739, 0
  %v2799 = vsel %vm1242, %v2740, 0
  %v2802 = vsel %vm1242, %v2741, 0
  %v2805 = vsel %vm1242, %v2742, 0
  %v2808 = vsel %vm1242, %v2743, 0
  %v2811 = vsel %vm1242, %v2744, 0
  %v2814 = vsel %vm1242, %v2745, 0
  %v2817 = vsel %vm1242, %v2746, 0
  %v2820 = vsel %vm1242, %v2747, 0
  %v2823 = vsel %vm1242, %v2748, 0
  %v2826 = vsel %vm1242, %v2749, 0
  %v2829 = vsel %vm1242, %v2750, 0
  %v2832 = vsel %vm1242, %v2751, 0
  %v2835 = vsel %vm1242, %v2752, 0
  %v2838 = vsel %vm1242, %v2753, 0
  %v2841 = vsel %vm1242, %v2754, 0
  %v2844 = vsel %vm1242, %v2755, 0
  %v2847 = vsel %vm1242, %v2756, 0
  %v2850 = vsel %vm1242, %v2757, 0
  %v2853 = vsel %vm1242, %v2758, 0
  %v2856 = vsel %vm1242, %v2759, 0
  %v2859 = vsel %vm1242, %v2760, 0
  %2861 = vmatpush.msra.mxu0 0.0
  %2862 = vmatpush.msra.mxu0 0.0
  %2863 = vmatpush.msra.mxu0 0.0
  %2864 = vmatpush.msra.mxu0 0.0
  %2865 = vmatpush.msra.mxu0 0.0
  %2866 = vmatpush.msra.mxu0 0.0
  %2867 = vmatpush.msra.mxu0 0.0
  %2868 = vmatpush.msra.mxu0 0.0
  %2869 = vmatpush.msra.mxu0 0.0
  %2870 = vmatpush.msra.mxu0 0.0
  %2871 = vmatpush.msra.mxu0 0.0
  %2872 = vmatpush.msra.mxu0 0.0
  %2873 = vmatpush.msra.mxu0 %v2764
  %2874 = vmatpush.msra.mxu0 %v2763
  %2875 = vmatpush.msra.mxu0 %v2762
  %2876 = vmatpush.msra.mxu0 %v2761
  %2877 = vmatmul.f32.gmra.mxu0 %v2766
  %v2878 = vpop.f32.mrf.mxu0
  %v2879 = vadd.f32 0.0, %v2878
  %2880 = vmatmul.f32.gmra.mxu0 %v2769
  %v2881 = vpop.f32.mrf.mxu0
  %v2882 = vadd.f32 0.0, %v2881
  %2883 = vmatmul.f32.gmra.mxu0 %v2772
  %v2884 = vpop.f32.mrf.mxu0
  %v2885 = vadd.f32 0.0, %v2884
  %2886 = vmatmul.f32.gmra.mxu0 %v2775
  %v2887 = vpop.f32.mrf.mxu0
  %v2888 = vadd.f32 0.0, %v2887
  %2889 = vmatmul.f32.gmra.mxu0 %v2778
  %v2890 = vpop.f32.mrf.mxu0
  %v2891 = vadd.f32 0.0, %v2890
  %2892 = vmatmul.f32.gmra.mxu0 %v2781
  %v2893 = vpop.f32.mrf.mxu0
  %v2894 = vadd.f32 0.0, %v2893
  %2895 = vmatmul.f32.gmra.mxu0 %v2784
  %v2896 = vpop.f32.mrf.mxu0
  %v2897 = vadd.f32 0.0, %v2896
  %2898 = vmatmul.f32.gmra.mxu0 %v2787
  %v2899 = vpop.f32.mrf.mxu0
  %v2900 = vadd.f32 0.0, %v2899
  %2901 = vmatmul.f32.gmra.mxu0 %v2790
  %v2902 = vpop.f32.mrf.mxu0
  %v2903 = vadd.f32 0.0, %v2902
  %2904 = vmatmul.f32.gmra.mxu0 %v2793
  %v2905 = vpop.f32.mrf.mxu0
  %v2906 = vadd.f32 0.0, %v2905
  %2907 = vmatmul.f32.gmra.mxu0 %v2796
  %v2908 = vpop.f32.mrf.mxu0
  %v2909 = vadd.f32 0.0, %v2908
  %2910 = vmatmul.f32.gmra.mxu0 %v2799
  %v2911 = vpop.f32.mrf.mxu0
  %v2912 = vadd.f32 0.0, %v2911
  %2913 = vmatmul.f32.gmra.mxu0 %v2802
  %v2914 = vpop.f32.mrf.mxu0
  %v2915 = vadd.f32 0.0, %v2914
  %2916 = vmatmul.f32.gmra.mxu0 %v2805
  %v2917 = vpop.f32.mrf.mxu0
  %v2918 = vadd.f32 0.0, %v2917
  %2919 = vmatmul.f32.gmra.mxu0 %v2808
  %v2920 = vpop.f32.mrf.mxu0
  %v2921 = vadd.f32 0.0, %v2920
  %2922 = vmatmul.f32.gmra.mxu0 %v2811
  %v2923 = vpop.f32.mrf.mxu0
  %v2924 = vadd.f32 0.0, %v2923
  %2925 = vmatmul.f32.gmra.mxu0 %v2814
  %v2926 = vpop.f32.mrf.mxu0
  %v2927 = vadd.f32 0.0, %v2926
  %2928 = vmatmul.f32.gmra.mxu0 %v2817
  %v2929 = vpop.f32.mrf.mxu0
  %v2930 = vadd.f32 0.0, %v2929
  %2931 = vmatmul.f32.gmra.mxu0 %v2820
  %v2932 = vpop.f32.mrf.mxu0
  %v2933 = vadd.f32 0.0, %v2932
  %2934 = vmatmul.f32.gmra.mxu0 %v2823
  %v2935 = vpop.f32.mrf.mxu0
  %v2936 = vadd.f32 0.0, %v2935
  %2937 = vmatmul.f32.gmra.mxu0 %v2826
  %v2938 = vpop.f32.mrf.mxu0
  %v2939 = vadd.f32 0.0, %v2938
  %2940 = vmatmul.f32.gmra.mxu0 %v2829
  %v2941 = vpop.f32.mrf.mxu0
  %v2942 = vadd.f32 0.0, %v2941
  %2943 = vmatmul.f32.gmra.mxu0 %v2832
  %v2944 = vpop.f32.mrf.mxu0
  %v2945 = vadd.f32 0.0, %v2944
  %2946 = vmatmul.f32.gmra.mxu0 %v2835
  %v2947 = vpop.f32.mrf.mxu0
  %v2948 = vadd.f32 0.0, %v2947
  %2949 = vmatmul.f32.gmra.mxu0 %v2838
  %v2950 = vpop.f32.mrf.mxu0
  %v2951 = vadd.f32 0.0, %v2950
  %2952 = vmatmul.f32.gmra.mxu0 %v2841
  %v2953 = vpop.f32.mrf.mxu0
  %v2954 = vadd.f32 0.0, %v2953
  %2955 = vmatmul.f32.gmra.mxu0 %v2844
  %v2956 = vpop.f32.mrf.mxu0
  %v2957 = vadd.f32 0.0, %v2956
  %2958 = vmatmul.f32.gmra.mxu0 %v2847
  %v2959 = vpop.f32.mrf.mxu0
  %v2960 = vadd.f32 0.0, %v2959
  %2961 = vmatmul.f32.gmra.mxu0 %v2850
  %v2962 = vpop.f32.mrf.mxu0
  %v2963 = vadd.f32 0.0, %v2962
  %2964 = vmatmul.f32.gmra.mxu0 %v2853
  %v2965 = vpop.f32.mrf.mxu0
  %v2966 = vadd.f32 0.0, %v2965
  %2967 = vmatmul.f32.gmra.mxu0 %v2856
  %v2968 = vpop.f32.mrf.mxu0
  %v2969 = vadd.f32 0.0, %v2968
  %2970 = vmatmul.f32.gmra.mxu0 %v2859
  %v2971 = vpop.f32.mrf.mxu0
  %v2972 = vadd.f32 0.0, %v2971
  %2973 = vdwg.mxu0
  %v2974 = vrot.slane %v2879, 7
  %v2975 = vrot.slane %v2882, 7
  %v2976 = vrot.slane %v2885, 7
  %v2977 = vrot.slane %v2888, 7
  %v2978 = vrot.slane %v2891, 7
  %v2979 = vrot.slane %v2894, 7
  %v2980 = vrot.slane %v2897, 7
  %v2981 = vrot.slane %v2900, 7
  %v2982 = vrot.slane %v2903, 7
  %v2983 = vrot.slane %v2906, 7
  %v2984 = vrot.slane %v2909, 7
  %v2985 = vrot.slane %v2912, 7
  %v2986 = vrot.slane %v2915, 7
  %v2987 = vrot.slane %v2918, 7
  %v2988 = vrot.slane %v2921, 7
  %v2989 = vrot.slane %v2924, 7
  %v2990 = vrot.slane %v2927, 7
  %v2991 = vrot.slane %v2930, 7
  %v2992 = vrot.slane %v2933, 7
  %v2993 = vrot.slane %v2936, 7
  %v2994 = vrot.slane %v2939, 7
  %v2995 = vrot.slane %v2942, 7
  %v2996 = vrot.slane %v2945, 7
  %v2997 = vrot.slane %v2948, 7
  %v2998 = vrot.slane %v2951, 7
  %v2999 = vrot.slane %v2954, 7
  %v3000 = vrot.slane %v2957, 7
  %v3001 = vrot.slane %v2960, 7
  %v3002 = vrot.slane %v2963, 7
  %v3003 = vrot.slane %v2966, 7
  %v3004 = vrot.slane %v2969, 7
  %v3005 = vrot.slane %v2972, 7
  %v3006 = vsel %vm400, %v3004, %v3005
  %v3007 = vsel %vm400, %v3003, %v3004
  %v3008 = vsel %vm400, %v3002, %v3003
  %v3009 = vsel %vm400, %v3001, %v3002
  %v3010 = vsel %vm400, %v3000, %v3001
  %v3011 = vsel %vm400, %v2999, %v3000
  %v3012 = vsel %vm400, %v2998, %v2999
  %v3013 = vsel %vm400, %v2997, %v2998
  %v3014 = vsel %vm400, %v2996, %v2997
  %v3015 = vsel %vm400, %v2995, %v2996
  %v3016 = vsel %vm400, %v2994, %v2995
  %v3017 = vsel %vm400, %v2993, %v2994
  %v3018 = vsel %vm400, %v2992, %v2993
  %v3019 = vsel %vm400, %v2991, %v2992
  %v3020 = vsel %vm400, %v2990, %v2991
  %v3021 = vsel %vm400, %v2989, %v2990
  %v3022 = vsel %vm400, %v2988, %v2989
  %v3023 = vsel %vm400, %v2987, %v2988
  %v3024 = vsel %vm400, %v2986, %v2987
  %v3025 = vsel %vm400, %v2985, %v2986
  %v3026 = vsel %vm400, %v2984, %v2985
  %v3027 = vsel %vm400, %v2983, %v2984
  %v3028 = vsel %vm400, %v2982, %v2983
  %v3029 = vsel %vm400, %v2981, %v2982
  %v3030 = vsel %vm400, %v2980, %v2981
  %v3031 = vsel %vm400, %v2979, %v2980
  %v3032 = vsel %vm400, %v2978, %v2979
  %v3033 = vsel %vm400, %v2977, %v2978
  %v3034 = vsel %vm400, %v2976, %v2977
  %v3035 = vsel %vm400, %v2975, %v2976
  %v3036 = vsel %vm400, %v2974, %v2975
  %v3037 = vsel %vm400, %v3005, %v2974
  %v3038 = vmul.f32 %v3037, %v436
  %v3039 = vmul.f32 %v3036, %v441
  %v3040 = vmul.f32 %v3035, %v446
  %v3041 = vmul.f32 %v3034, %v451
  %v3042 = vmul.f32 %v3033, %v456
  %v3043 = vmul.f32 %v3032, %v461
  %v3044 = vmul.f32 %v3031, %v466
  %v3045 = vmul.f32 %v3030, %v471
  %v3046 = vmul.f32 %v3029, %v476
  %v3047 = vmul.f32 %v3028, %v481
  %v3048 = vmul.f32 %v3027, %v486
  %v3049 = vmul.f32 %v3026, %v491
  %v3050 = vmul.f32 %v3025, %v496
  %v3051 = vmul.f32 %v3024, %v501
  %v3052 = vmul.f32 %v3023, %v506
  %v3053 = vmul.f32 %v3022, %v511
  %v3054 = vmul.f32 %v3021, %v516
  %v3055 = vmul.f32 %v3020, %v521
  %v3056 = vmul.f32 %v3019, %v526
  %v3057 = vmul.f32 %v3018, %v531
  %v3058 = vmul.f32 %v3017, %v536
  %v3059 = vmul.f32 %v3016, %v541
  %v3060 = vmul.f32 %v3015, %v546
  %v3061 = vmul.f32 %v3014, %v551
  %v3062 = vmul.f32 %v3013, %v556
  %v3063 = vmul.f32 %v3012, %v561
  %v3064 = vmul.f32 %v3011, %v566
  %v3065 = vmul.f32 %v3010, %v571
  %v3066 = vmul.f32 %v3009, %v576
  %v3067 = vmul.f32 %v3008, %v581
  %v3068 = vmul.f32 %v3007, %v586
  %v3069 = vmul.f32 %v3006, %v591
  %3102 = vrot.lane.b32.xlu0 %v2879, 96
  %v3103 = vpop.permute.xlu0 %3102
  %3104 = vrot.lane.b32.xlu0 %v2882, 96
  %v3105 = vpop.permute.xlu0 %3104
  %3106 = vrot.lane.b32.xlu0 %v2885, 96
  %v3107 = vpop.permute.xlu0 %3106
  %3108 = vrot.lane.b32.xlu0 %v2888, 96
  %v3109 = vpop.permute.xlu0 %3108
  %3110 = vrot.lane.b32.xlu0 %v2891, 96
  %v3111 = vpop.permute.xlu0 %3110
  %3112 = vrot.lane.b32.xlu0 %v2894, 96
  %v3113 = vpop.permute.xlu0 %3112
  %3114 = vrot.lane.b32.xlu0 %v2897, 96
  %v3115 = vpop.permute.xlu0 %3114
  %3116 = vrot.lane.b32.xlu0 %v2900, 96
  %v3117 = vpop.permute.xlu0 %3116
  %3118 = vrot.lane.b32.xlu0 %v2903, 96
  %v3119 = vpop.permute.xlu0 %3118
  %3120 = vrot.lane.b32.xlu0 %v2906, 96
  %v3121 = vpop.permute.xlu0 %3120
  %3122 = vrot.lane.b32.xlu0 %v2909, 96
  %v3123 = vpop.permute.xlu0 %3122
  %3124 = vrot.lane.b32.xlu0 %v2912, 96
  %v3125 = vpop.permute.xlu0 %3124
  %3126 = vrot.lane.b32.xlu0 %v2915, 96
  %v3127 = vpop.permute.xlu0 %3126
  %3128 = vrot.lane.b32.xlu0 %v2918, 96
  %v3129 = vpop.permute.xlu0 %3128
  %3130 = vrot.lane.b32.xlu0 %v2921, 96
  %v3131 = vpop.permute.xlu0 %3130
  %3132 = vrot.lane.b32.xlu0 %v2924, 96
  %v3133 = vpop.permute.xlu0 %3132
  %3134 = vrot.lane.b32.xlu0 %v2927, 96
  %v3135 = vpop.permute.xlu0 %3134
  %3136 = vrot.lane.b32.xlu0 %v2930, 96
  %v3137 = vpop.permute.xlu0 %3136
  %3138 = vrot.lane.b32.xlu0 %v2933, 96
  %v3139 = vpop.permute.xlu0 %3138
  %3140 = vrot.lane.b32.xlu0 %v2936, 96
  %v3141 = vpop.permute.xlu0 %3140
  %3142 = vrot.lane.b32.xlu0 %v2939, 96
  %v3143 = vpop.permute.xlu0 %3142
  %3144 = vrot.lane.b32.xlu0 %v2942, 96
  %v3145 = vpop.permute.xlu0 %3144
  %3146 = vrot.lane.b32.xlu0 %v2945, 96
  %v3147 = vpop.permute.xlu0 %3146
  %3148 = vrot.lane.b32.xlu0 %v2948, 96
  %v3149 = vpop.permute.xlu0 %3148
  %3150 = vrot.lane.b32.xlu0 %v2951, 96
  %v3151 = vpop.permute.xlu0 %3150
  %3152 = vrot.lane.b32.xlu0 %v2954, 96
  %v3153 = vpop.permute.xlu0 %3152
  %3154 = vrot.lane.b32.xlu0 %v2957, 96
  %v3155 = vpop.permute.xlu0 %3154
  %3156 = vrot.lane.b32.xlu0 %v2960, 96
  %v3157 = vpop.permute.xlu0 %3156
  %3158 = vrot.lane.b32.xlu0 %v2963, 96
  %v3159 = vpop.permute.xlu0 %3158
  %3160 = vrot.lane.b32.xlu0 %v2966, 96
  %v3161 = vpop.permute.xlu0 %3160
  %3162 = vrot.lane.b32.xlu0 %v2969, 96
  %v3163 = vpop.permute.xlu0 %3162
  %3164 = vrot.lane.b32.xlu0 %v2972, 96
  %v3165 = vpop.permute.xlu0 %3164
  %v3198 = vadd.f32 %v3038, %v3103
  %v3199 = vadd.f32 %v3039, %v3105
  %v3200 = vadd.f32 %v3040, %v3107
  %v3201 = vadd.f32 %v3041, %v3109
  %v3202 = vadd.f32 %v3042, %v3111
  %v3203 = vadd.f32 %v3043, %v3113
  %v3204 = vadd.f32 %v3044, %v3115
  %v3205 = vadd.f32 %v3045, %v3117
  %v3206 = vadd.f32 %v3046, %v3119
  %v3207 = vadd.f32 %v3047, %v3121
  %v3208 = vadd.f32 %v3048, %v3123
  %v3209 = vadd.f32 %v3049, %v3125
  %v3210 = vadd.f32 %v3050, %v3127
  %v3211 = vadd.f32 %v3051, %v3129
  %v3212 = vadd.f32 %v3052, %v3131
  %v3213 = vadd.f32 %v3053, %v3133
  %v3214 = vadd.f32 %v3054, %v3135
  %v3215 = vadd.f32 %v3055, %v3137
  %v3216 = vadd.f32 %v3056, %v3139
  %v3217 = vadd.f32 %v3057, %v3141
  %v3218 = vadd.f32 %v3058, %v3143
  %v3219 = vadd.f32 %v3059, %v3145
  %v3220 = vadd.f32 %v3060, %v3147
  %v3221 = vadd.f32 %v3061, %v3149
  %v3222 = vadd.f32 %v3062, %v3151
  %v3223 = vadd.f32 %v3063, %v3153
  %v3224 = vadd.f32 %v3064, %v3155
  %v3225 = vadd.f32 %v3065, %v3157
  %v3226 = vadd.f32 %v3066, %v3159
  %v3227 = vadd.f32 %v3067, %v3161
  %v3228 = vadd.f32 %v3068, %v3163
  %v3229 = vadd.f32 %v3069, %v3165
  %3230 = vrot.lane.b32.xlu0 %v2879, 64
  %v3231 = vpop.permute.xlu0 %3230
  %3232 = vrot.lane.b32.xlu0 %v2882, 64
  %v3233 = vpop.permute.xlu0 %3232
  %3234 = vrot.lane.b32.xlu0 %v2885, 64
  %v3235 = vpop.permute.xlu0 %3234
  %3236 = vrot.lane.b32.xlu0 %v2888, 64
  %v3237 = vpop.permute.xlu0 %3236
  %3238 = vrot.lane.b32.xlu0 %v2891, 64
  %v3239 = vpop.permute.xlu0 %3238
  %3240 = vrot.lane.b32.xlu0 %v2894, 64
  %v3241 = vpop.permute.xlu0 %3240
  %3242 = vrot.lane.b32.xlu0 %v2897, 64
  %v3243 = vpop.permute.xlu0 %3242
  %3244 = vrot.lane.b32.xlu0 %v2900, 64
  %v3245 = vpop.permute.xlu0 %3244
  %3246 = vrot.lane.b32.xlu0 %v2903, 64
  %v3247 = vpop.permute.xlu0 %3246
  %3248 = vrot.lane.b32.xlu0 %v2906, 64
  %v3249 = vpop.permute.xlu0 %3248
  %3250 = vrot.lane.b32.xlu0 %v2909, 64
  %v3251 = vpop.permute.xlu0 %3250
  %3252 = vrot.lane.b32.xlu0 %v2912, 64
  %v3253 = vpop.permute.xlu0 %3252
  %3254 = vrot.lane.b32.xlu0 %v2915, 64
  %v3255 = vpop.permute.xlu0 %3254
  %3256 = vrot.lane.b32.xlu0 %v2918, 64
  %v3257 = vpop.permute.xlu0 %3256
  %3258 = vrot.lane.b32.xlu0 %v2921, 64
  %v3259 = vpop.permute.xlu0 %3258
  %3260 = vrot.lane.b32.xlu0 %v2924, 64
  %v3261 = vpop.permute.xlu0 %3260
  %3262 = vrot.lane.b32.xlu0 %v2927, 64
  %v3263 = vpop.permute.xlu0 %3262
  %3264 = vrot.lane.b32.xlu0 %v2930, 64
  %v3265 = vpop.permute.xlu0 %3264
  %3266 = vrot.lane.b32.xlu0 %v2933, 64
  %v3267 = vpop.permute.xlu0 %3266
  %3268 = vrot.lane.b32.xlu0 %v2936, 64
  %v3269 = vpop.permute.xlu0 %3268
  %3270 = vrot.lane.b32.xlu0 %v2939, 64
  %v3271 = vpop.permute.xlu0 %3270
  %3272 = vrot.lane.b32.xlu0 %v2942, 64
  %v3273 = vpop.permute.xlu0 %3272
  %3274 = vrot.lane.b32.xlu0 %v2945, 64
  %v3275 = vpop.permute.xlu0 %3274
  %3276 = vrot.lane.b32.xlu0 %v2948, 64
  %v3277 = vpop.permute.xlu0 %3276
  %3278 = vrot.lane.b32.xlu0 %v2951, 64
  %v3279 = vpop.permute.xlu0 %3278
  %3280 = vrot.lane.b32.xlu0 %v2954, 64
  %v3281 = vpop.permute.xlu0 %3280
  %3282 = vrot.lane.b32.xlu0 %v2957, 64
  %v3283 = vpop.permute.xlu0 %3282
  %3284 = vrot.lane.b32.xlu0 %v2960, 64
  %v3285 = vpop.permute.xlu0 %3284
  %3286 = vrot.lane.b32.xlu0 %v2963, 64
  %v3287 = vpop.permute.xlu0 %3286
  %3288 = vrot.lane.b32.xlu0 %v2966, 64
  %v3289 = vpop.permute.xlu0 %3288
  %3290 = vrot.lane.b32.xlu0 %v2969, 64
  %v3291 = vpop.permute.xlu0 %3290
  %3292 = vrot.lane.b32.xlu0 %v2972, 64
  %v3293 = vpop.permute.xlu0 %3292
  %v3326 = vrot.slane %v3231, 1
  %v3327 = vrot.slane %v3233, 1
  %v3328 = vrot.slane %v3235, 1
  %v3329 = vrot.slane %v3237, 1
  %v3330 = vrot.slane %v3239, 1
  %v3331 = vrot.slane %v3241, 1
  %v3332 = vrot.slane %v3243, 1
  %v3333 = vrot.slane %v3245, 1
  %v3334 = vrot.slane %v3247, 1
  %v3335 = vrot.slane %v3249, 1
  %v3336 = vrot.slane %v3251, 1
  %v3337 = vrot.slane %v3253, 1
  %v3338 = vrot.slane %v3255, 1
  %v3339 = vrot.slane %v3257, 1
  %v3340 = vrot.slane %v3259, 1
  %v3341 = vrot.slane %v3261, 1
  %v3342 = vrot.slane %v3263, 1
  %v3343 = vrot.slane %v3265, 1
  %v3344 = vrot.slane %v3267, 1
  %v3345 = vrot.slane %v3269, 1
  %v3346 = vrot.slane %v3271, 1
  %v3347 = vrot.slane %v3273, 1
  %v3348 = vrot.slane %v3275, 1
  %v3349 = vrot.slane %v3277, 1
  %v3350 = vrot.slane %v3279, 1
  %v3351 = vrot.slane %v3281, 1
  %v3352 = vrot.slane %v3283, 1
  %v3353 = vrot.slane %v3285, 1
  %v3354 = vrot.slane %v3287, 1
  %v3355 = vrot.slane %v3289, 1
  %v3356 = vrot.slane %v3291, 1
  %v3357 = vrot.slane %v3293, 1
  %v3358 = vsel %vm913, %v3356, %v3357
  %v3359 = vsel %vm913, %v3355, %v3356
  %v3360 = vsel %vm913, %v3354, %v3355
  %v3361 = vsel %vm913, %v3353, %v3354
  %v3362 = vsel %vm913, %v3352, %v3353
  %v3363 = vsel %vm913, %v3351, %v3352
  %v3364 = vsel %vm913, %v3350, %v3351
  %v3365 = vsel %vm913, %v3349, %v3350
  %v3366 = vsel %vm913, %v3348, %v3349
  %v3367 = vsel %vm913, %v3347, %v3348
  %v3368 = vsel %vm913, %v3346, %v3347
  %v3369 = vsel %vm913, %v3345, %v3346
  %v3370 = vsel %vm913, %v3344, %v3345
  %v3371 = vsel %vm913, %v3343, %v3344
  %v3372 = vsel %vm913, %v3342, %v3343
  %v3373 = vsel %vm913, %v3341, %v3342
  %v3374 = vsel %vm913, %v3340, %v3341
  %v3375 = vsel %vm913, %v3339, %v3340
  %v3376 = vsel %vm913, %v3338, %v3339
  %v3377 = vsel %vm913, %v3337, %v3338
  %v3378 = vsel %vm913, %v3336, %v3337
  %v3379 = vsel %vm913, %v3335, %v3336
  %v3380 = vsel %vm913, %v3334, %v3335
  %v3381 = vsel %vm913, %v3333, %v3334
  %v3382 = vsel %vm913, %v3332, %v3333
  %v3383 = vsel %vm913, %v3331, %v3332
  %v3384 = vsel %vm913, %v3330, %v3331
  %v3385 = vsel %vm913, %v3329, %v3330
  %v3386 = vsel %vm913, %v3328, %v3329
  %v3387 = vsel %vm913, %v3327, %v3328
  %v3388 = vsel %vm913, %v3326, %v3327
  %v3389 = vsel %vm913, %v3357, %v3326
  %v3390 = vmul.f32 %v3388, %v949
  %v3391 = vmul.f32 %v3387, %v954
  %v3392 = vmul.f32 %v3386, %v959
  %v3393 = vmul.f32 %v3385, %v964
  %v3394 = vmul.f32 %v3384, %v969
  %v3395 = vmul.f32 %v3383, %v974
  %v3396 = vmul.f32 %v3382, %v979
  %v3397 = vmul.f32 %v3381, %v984
  %v3398 = vmul.f32 %v3380, %v989
  %v3399 = vmul.f32 %v3379, %v994
  %v3400 = vmul.f32 %v3378, %v999
  %v3401 = vmul.f32 %v3377, %v1004
  %v3402 = vmul.f32 %v3376, %v1009
  %v3403 = vmul.f32 %v3375, %v1014
  %v3404 = vmul.f32 %v3374, %v1019
  %v3405 = vmul.f32 %v3373, %v1024
  %v3406 = vmul.f32 %v3372, %v1029
  %v3407 = vmul.f32 %v3371, %v1034
  %v3408 = vmul.f32 %v3370, %v1039
  %v3409 = vmul.f32 %v3369, %v1044
  %v3410 = vmul.f32 %v3368, %v1049
  %v3411 = vmul.f32 %v3367, %v1054
  %v3412 = vmul.f32 %v3366, %v1059
  %v3413 = vmul.f32 %v3365, %v1064
  %v3414 = vmul.f32 %v3364, %v1069
  %v3415 = vmul.f32 %v3363, %v1074
  %v3416 = vmul.f32 %v3362, %v1079
  %v3417 = vmul.f32 %v3361, %v1084
  %v3418 = vmul.f32 %v3360, %v1089
  %v3419 = vmul.f32 %v3359, %v1094
  %v3420 = vmul.f32 %v3358, %v1099
  %v3421 = vmul.f32 %v3389, %v1104
  %v3422 = vadd.f32 %v3198, %v3390
  %v3423 = vadd.f32 %v3199, %v3391
  %v3424 = vadd.f32 %v3200, %v3392
  %v3425 = vadd.f32 %v3201, %v3393
  %v3426 = vadd.f32 %v3202, %v3394
  %v3427 = vadd.f32 %v3203, %v3395
  %v3428 = vadd.f32 %v3204, %v3396
  %v3429 = vadd.f32 %v3205, %v3397
  %v3430 = vadd.f32 %v3206, %v3398
  %v3431 = vadd.f32 %v3207, %v3399
  %v3432 = vadd.f32 %v3208, %v3400
  %v3433 = vadd.f32 %v3209, %v3401
  %v3434 = vadd.f32 %v3210, %v3402
  %v3435 = vadd.f32 %v3211, %v3403
  %v3436 = vadd.f32 %v3212, %v3404
  %v3437 = vadd.f32 %v3213, %v3405
  %v3438 = vadd.f32 %v3214, %v3406
  %v3439 = vadd.f32 %v3215, %v3407
  %v3440 = vadd.f32 %v3216, %v3408
  %v3441 = vadd.f32 %v3217, %v3409
  %v3442 = vadd.f32 %v3218, %v3410
  %v3443 = vadd.f32 %v3219, %v3411
  %v3444 = vadd.f32 %v3220, %v3412
  %v3445 = vadd.f32 %v3221, %v3413
  %v3446 = vadd.f32 %v3222, %v3414
  %v3447 = vadd.f32 %v3223, %v3415
  %v3448 = vadd.f32 %v3224, %v3416
  %v3449 = vadd.f32 %v3225, %v3417
  %v3450 = vadd.f32 %v3226, %v3418
  %v3451 = vadd.f32 %v3227, %v3419
  %v3452 = vadd.f32 %v3228, %v3420
  %v3453 = vadd.f32 %v3229, %v3421
  %v3454 = vld [vmem:[%s12] sm:$0x1]
  %v3456 = vperm.slane %v3454, 0
  %v3458 = vadd.f32 %v3422, %v3456
  %v3459 = vadd.f32 %v3423, %v3456
  %v3460 = vadd.f32 %v3424, %v3456
  %v3461 = vadd.f32 %v3425, %v3456
  %v3462 = vadd.f32 %v3426, %v3456
  %v3463 = vadd.f32 %v3427, %v3456
  %v3464 = vadd.f32 %v3428, %v3456
  %v3465 = vadd.f32 %v3429, %v3456
  %v3466 = vadd.f32 %v3430, %v3456
  %v3467 = vadd.f32 %v3431, %v3456
  %v3468 = vadd.f32 %v3432, %v3456
  %v3469 = vadd.f32 %v3433, %v3456
  %v3470 = vadd.f32 %v3434, %v3456
  %v3471 = vadd.f32 %v3435, %v3456
  %v3472 = vadd.f32 %v3436, %v3456
  %v3473 = vadd.f32 %v3437, %v3456
  %v3474 = vadd.f32 %v3438, %v3456
  %v3475 = vadd.f32 %v3439, %v3456
  %v3476 = vadd.f32 %v3440, %v3456
  %v3477 = vadd.f32 %v3441, %v3456
  %v3478 = vadd.f32 %v3442, %v3456
  %v3479 = vadd.f32 %v3443, %v3456
  %v3480 = vadd.f32 %v3444, %v3456
  %v3481 = vadd.f32 %v3445, %v3456
  %v3482 = vadd.f32 %v3446, %v3456
  %v3483 = vadd.f32 %v3447, %v3456
  %v3484 = vadd.f32 %v3448, %v3456
  %v3485 = vadd.f32 %v3449, %v3456
  %v3486 = vadd.f32 %v3450, %v3456
  %v3487 = vadd.f32 %v3451, %v3456
  %v3488 = vadd.f32 %v3452, %v3456
  %v3489 = vadd.f32 %v3453, %v3456
  %v3490 = vmax.f32 %v3458, 0.0
  %v3491 = vmax.f32 %v3459, 0.0
  %v3492 = vmax.f32 %v3460, 0.0
  %v3493 = vmax.f32 %v3461, 0.0
  %v3494 = vmax.f32 %v3462, 0.0
  %v3495 = vmax.f32 %v3463, 0.0
  %v3496 = vmax.f32 %v3464, 0.0
  %v3497 = vmax.f32 %v3465, 0.0
  %v3498 = vmax.f32 %v3466, 0.0
  %v3499 = vmax.f32 %v3467, 0.0
  %v3500 = vmax.f32 %v3468, 0.0
  %v3501 = vmax.f32 %v3469, 0.0
  %v3502 = vmax.f32 %v3470, 0.0
  %v3503 = vmax.f32 %v3471, 0.0
  %v3504 = vmax.f32 %v3472, 0.0
  %v3505 = vmax.f32 %v3473, 0.0
  %v3506 = vmax.f32 %v3474, 0.0
  %v3507 = vmax.f32 %v3475, 0.0
  %v3508 = vmax.f32 %v3476, 0.0
  %v3509 = vmax.f32 %v3477, 0.0
  %v3510 = vmax.f32 %v3478, 0.0
  %v3511 = vmax.f32 %v3479, 0.0
  %v3512 = vmax.f32 %v3480, 0.0
  %v3513 = vmax.f32 %v3481, 0.0
  %v3514 = vmax.f32 %v3482, 0.0
  %v3515 = vmax.f32 %v3483, 0.0
  %v3516 = vmax.f32 %v3484, 0.0
  %v3517 = vmax.f32 %v3485, 0.0
  %v3518 = vmax.f32 %v3486, 0.0
  %v3519 = vmax.f32 %v3487, 0.0
  %v3520 = vmax.f32 %v3488, 0.0
  %v3521 = vmax.f32 %v3489, 0.0
  %v3522 = vld [vmem:[%s4] sm:$0xff]
  %v3523 = vld [vmem:[%s4 + $0x8] sm:$0xff]
  %v3524 = vld [vmem:[%s4 + $0x10] sm:$0xff]
  %v3525 = vld [vmem:[%s4 + $0x18] sm:$0xff]
  %3526 = vmatpush.msra.mxu0 %v3505
  %3527 = vmatpush.msra.mxu0 %v3504
  %3528 = vmatpush.msra.mxu0 %v3503
  %3529 = vmatpush.msra.mxu0 %v3502
  %3530 = vmatpush.msra.mxu0 %v3501
  %3531 = vmatpush.msra.mxu0 %v3500
  %3532 = vmatpush.msra.mxu0 %v3499
  %3533 = vmatpush.msra.mxu0 %v3498
  %3534 = vmatpush.msra.mxu0 %v3497
  %3535 = vmatpush.msra.mxu0 %v3496
  %3536 = vmatpush.msra.mxu0 %v3495
  %3537 = vmatpush.msra.mxu0 %v3494
  %3538 = vmatpush.msra.mxu0 %v3493
  %3539 = vmatpush.msra.mxu0 %v3492
  %3540 = vmatpush.msra.mxu0 %v3491
  %3541 = vmatpush.msra.mxu0 %v3490
  %3542 = vmatmul.f32.gmra.mxu0 %v3522
  %v3543 = vpop.f32.mrf.mxu0
  %v3544 = vadd.f32 0.0, %v3543
  %3545 = vmatmul.f32.gmra.mxu0 %v3524
  %v3546 = vpop.f32.mrf.mxu0
  %v3547 = vadd.f32 0.0, %v3546
  %3548 = vdwg.mxu0
  %3549 = vmatpush.msra.mxu0 %v3521
  %3550 = vmatpush.msra.mxu0 %v3520
  %3551 = vmatpush.msra.mxu0 %v3519
  %3552 = vmatpush.msra.mxu0 %v3518
  %3553 = vmatpush.msra.mxu0 %v3517
  %3554 = vmatpush.msra.mxu0 %v3516
  %3555 = vmatpush.msra.mxu0 %v3515
  %3556 = vmatpush.msra.mxu0 %v3514
  %3557 = vmatpush.msra.mxu0 %v3513
  %3558 = vmatpush.msra.mxu0 %v3512
  %3559 = vmatpush.msra.mxu0 %v3511
  %3560 = vmatpush.msra.mxu0 %v3510
  %3561 = vmatpush.msra.mxu0 %v3509
  %3562 = vmatpush.msra.mxu0 %v3508
  %3563 = vmatpush.msra.mxu0 %v3507
  %3564 = vmatpush.msra.mxu0 %v3506
  %3565 = vmatmul.f32.gmra.mxu0 %v3523
  %v3566 = vpop.f32.mrf.mxu0
  %v3567 = vadd.f32 %v3544, %v3566
  %3568 = vmatmul.f32.gmra.mxu0 %v3525
  %v3569 = vpop.f32.mrf.mxu0
  %v3570 = vadd.f32 %v3547, %v3569
  %3571 = vdwg.mxu0
  %v3572 = vld [vmem:[%s1] sm:$0xff]
  %v3573 = vld [vmem:[%s1 + $0x8] sm:$0xff]
  %v3574 = vld [vmem:[%s13] sm:$0xff]
  %v3575 = vld [vmem:[%s14] sm:$0x1]
  %v3577 = vperm.slane %v3575, 0
  %v3580 = vsel %vm156, %v3572, 0
  %v3583 = vsel %vm156, %v3573, 0
  %3585 = vmatpush.msra.mxu0 0.0
  %3586 = vmatpush.msra.mxu0 0.0
  %3587 = vmatpush.msra.mxu0 0.0
  %3588 = vmatpush.msra.mxu0 0.0
  %3589 = vmatpush.msra.mxu0 0.0
  %3590 = vmatpush.msra.mxu0 0.0
  %3591 = vmatpush.msra.mxu0 0.0
  %3592 = vmatpush.msra.mxu0 0.0
  %3593 = vmatpush.msra.mxu0 0.0
  %3594 = vmatpush.msra.mxu0 0.0
  %3595 = vmatpush.msra.mxu0 0.0
  %3596 = vmatpush.msra.mxu0 0.0
  %3597 = vmatpush.msra.mxu0 0.0
  %3598 = vmatpush.msra.mxu0 0.0
  %3599 = vmatpush.msra.mxu0 0.0
  %3600 = vmatpush.msra.mxu0 %v3574
  %3601 = vmatmul.f32.gmra.mxu0 %v3580
  %v3602 = vpop.f32.mrf.mxu0
  %v3603 = vadd.f32 %v3577, %v3602
  %3604 = vmatmul.f32.gmra.mxu0 %v3583
  %v3605 = vpop.f32.mrf.mxu0
  %v3606 = vadd.f32 %v3577, %v3605
  %3607 = vdwg.mxu0
  %v3608 = vmax.f32 %v3603, 0.0
  %v3609 = vmax.f32 %v3606, 0.0
  %v3610 = vld [vmem:[%s15] sm:$0xff]
  %v3611 = vld [vmem:[%s15 + $0x8] sm:$0xff]
  %v3612 = vld [vmem:[%s15 + $0x10] sm:$0xff]
  %v3613 = vld [vmem:[%s15 + $0x18] sm:$0xff]
  %v3614 = vld [vmem:[%s16] sm:$0xff]
  %v3615 = vld [vmem:[%s16 + $0x8] sm:$0xff]
  %v3616 = vld [vmem:[%s16 + $0x10] sm:$0xff]
  %v3617 = vld [vmem:[%s16 + $0x18] sm:$0xff]
  %v3619 = vsel %vm1242, %v3608, 0
  %v3622 = vsel %vm1242, %v3609, 0
  %3624 = vmatpush.msra.mxu0 0.0
  %3625 = vmatpush.msra.mxu0 0.0
  %3626 = vmatpush.msra.mxu0 0.0
  %3627 = vmatpush.msra.mxu0 0.0
  %3628 = vmatpush.msra.mxu0 0.0
  %3629 = vmatpush.msra.mxu0 0.0
  %3630 = vmatpush.msra.mxu0 0.0
  %3631 = vmatpush.msra.mxu0 0.0
  %3632 = vmatpush.msra.mxu0 0.0
  %3633 = vmatpush.msra.mxu0 0.0
  %3634 = vmatpush.msra.mxu0 0.0
  %3635 = vmatpush.msra.mxu0 0.0
  %3636 = vmatpush.msra.mxu0 %v3617
  %3637 = vmatpush.msra.mxu0 %v3616
  %3638 = vmatpush.msra.mxu0 %v3615
  %3639 = vmatpush.msra.mxu0 %v3614
  %3640 = vmatmul.f32.gmra.mxu0 %v3619
  %v3641 = vpop.f32.mrf.mxu0
  %v3642 = vadd.f32 0.0, %v3641
  %3643 = vmatmul.f32.gmra.mxu0 %v3622
  %v3644 = vpop.f32.mrf.mxu0
  %v3645 = vadd.f32 0.0, %v3644
  %3646 = vdwg.mxu0
  %v3648 = vsel %vm1242, %v3567, 0
  %v3651 = vsel %vm1242, %v3570, 0
  %3653 = vmatpush.msra.mxu0 0.0
  %3654 = vmatpush.msra.mxu0 0.0
  %3655 = vmatpush.msra.mxu0 0.0
  %3656 = vmatpush.msra.mxu0 0.0
  %3657 = vmatpush.msra.mxu0 0.0
  %3658 = vmatpush.msra.mxu0 0.0
  %3659 = vmatpush.msra.mxu0 0.0
  %3660 = vmatpush.msra.mxu0 0.0
  %3661 = vmatpush.msra.mxu0 0.0
  %3662 = vmatpush.msra.mxu0 0.0
  %3663 = vmatpush.msra.mxu0 0.0
  %3664 = vmatpush.msra.mxu0 0.0
  %3665 = vmatpush.msra.mxu0 %v3613
  %3666 = vmatpush.msra.mxu0 %v3612
  %3667 = vmatpush.msra.mxu0 %v3611
  %3668 = vmatpush.msra.mxu0 %v3610
  %3669 = vmatmul.f32.gmra.mxu0 %v3648
  %v3670 = vpop.f32.mrf.mxu0
  %v3671 = vadd.f32 %v3642, %v3670
  %3672 = vmatmul.f32.gmra.mxu0 %v3651
  %v3673 = vpop.f32.mrf.mxu0
  %v3674 = vadd.f32 %v3645, %v3673
  %3675 = vdwg.mxu0
  %v3676 = vld [vmem:[%s17] sm:$0x1]
  %v3678 = vperm.slane %v3676, 0
  %v3680 = vadd.f32 %v3671, %v3678
  %v3681 = vadd.f32 %v3674, %v3678
  %vm3682 = vcmask 31744
  %3683 = vst.msk [vmem:[%s18] sm:$0xff] %vm3682, %v3680
  %3684 = vst.msk [vmem:[%s18 + $0x8] sm:$0xff] %vm3682, %v3681
  // Predicated region
  $region74: #{tpu_custom_call.1} parent=0 // pred_check
    _
  $region75: #{tpu_custom_call.1} parent=0 // pred_check_branch
    %3686 = sbr.rel (0) target = $region77
  $region76: #{tpu_custom_call.1} parent=0 // pred_region
    _
  $region77: #{tpu_custom_call.1} parent=0 // pred_fallthru
    _
  // Predicated region
  $region78: #{tpu_custom_call.1} parent=0 // pred_check
    _
  $region79: #{tpu_custom_call.1} parent=0 // pred_check_branch
    %3688 = sbr.rel (0) target = $region81
  $region80: #{tpu_custom_call.1} parent=0 // pred_region
    _
  $region81: #{tpu_custom_call.1} parent=0 // pred_fallthru
    _

</llo_original>
